<compile_context>
chip_gen: v5e
topology: v5e:2x2
jax: 0.10.0
libtpu: 0.0.40
codegen_flags: <defaults>
</compile_context>

<pallas_src>
import functools

import jax
import jax.numpy as jnp
import numpy as np
from jax.experimental import pallas as pl
from jax.experimental.pallas import tpu as pltpu

ANCHORS_PER_SCALE = 5
NUM_CLASSES = 4                       # cfg.DATA['NUM'] (synthetic small value)
CP = 5 + NUM_CLASSES                  # 9 channels per anchor
OUT_CHANNEL = ANCHORS_PER_SCALE * CP  # 45
CPAD = ((OUT_CHANNEL + 127) // 128) * 128  # 128: lane-dense padded head width
CENTER_VARIANCE = 0.1
SIZE_VARIANCE = 0.2


# ----------------------------------------------------------------------------
# Fused per-scale kernel: proj (VPU FMAs) + ReLU + head matmul (MXU) + decode.
# Decode categories are interleaved per column (c = j mod Cp), so selection is
# done with a precomputed per-column category vector (0=xy, 1=wh, 2=sigmoid)
# broadcast over rows -- no lane slicing, no modulo in-kernel.
# ----------------------------------------------------------------------------
def _fused_scale_kernel(x_ref, wp_ref, bp_ref, wh_ref, bh_ref,
                        awh_ref, axy_ref, cat_ref, p_ref, pde_ref,
                        *, cin, cv, sv):
    x = x_ref[...]                                     # (tm, cin), cin tiny
    # 1x1 "projection" conv: K=cin broadcast multiply-adds on the VPU
    f = bp_ref[...]                                    # (1, Cproj)
    for c in range(cin):
        f = f + x[:, c:c + 1] * wp_ref[c:c + 1, :]     # (tm,1)*(1,Cproj)
    f = jnp.maximum(f, 0.0)                            # ReLU

    # 1x1 head conv on the MXU (output padded to lane-dense CPAD columns)
    y = jnp.dot(f, wh_ref[...], preferred_element_type=jnp.float32) + bh_ref[...]
    p_ref[...] = y.astype(p_ref.dtype)

    # YOLO/SSD decode, fused:
    #   cat==0 : cx,cy = y * cv * a_wh + a_xy
    #   cat==1 : w,h   = exp(y * sv) * a_wh
    #   cat==2 : sigmoid(y)   (conf / class probs; also the padded columns)
    a_wh = awh_ref[...]
    a_xy = axy_ref[...]
    cat = jnp.broadcast_to(cat_ref[...], y.shape)      # (tm, CPAD) f32
    lin = y * cv * a_wh + a_xy
    ex = jnp.exp(y * sv) * a_wh
    sg = jax.nn.sigmoid(y)
    out = jnp.where(cat < 0.5, lin, jnp.where(cat < 1.5, ex, sg))
    pde_ref[...] = out.astype(pde_ref.dtype)


def fused_head_decode(xs, w_proj, b_proj, w_head, b_head, a_wh, a_xy, cat_cols,
                      tm=256):
    M, cin = xs.shape
    cproj = w_proj.shape[1]
    cpad = w_head.shape[1]
    tm = min(tm, M)
    grid = (pl.cdiv(M, tm),)
    kernel = functools.partial(_fused_scale_kernel, cin=cin,
                               cv=CENTER_VARIANCE, sv=SIZE_VARIANCE)
    return pl.pallas_call(
        kernel,
        out_shape=(jax.ShapeDtypeStruct((M, cpad), jnp.float32),
                   jax.ShapeDtypeStruct((M, cpad), jnp.float32)),
        grid_spec=pltpu.PrefetchScalarGridSpec(
            num_scalar_prefetch=0,
            grid=grid,
            in_specs=[
                pl.BlockSpec((tm, cin), lambda i: (i, 0)),     # pooled input
                pl.BlockSpec((cin, cproj), lambda i: (0, 0)),  # proj weight
                pl.BlockSpec((1, cproj), lambda i: (0, 0)),    # proj bias
                pl.BlockSpec((cproj, cpad), lambda i: (0, 0)), # head weight
                pl.BlockSpec((1, cpad), lambda i: (0, 0)),     # head bias
                pl.BlockSpec((tm, cpad), lambda i: (i, 0)),    # anchor wh cols
                pl.BlockSpec((tm, cpad), lambda i: (i, 0)),    # anchor xy cols
                pl.BlockSpec((1, cpad), lambda i: (0, 0)),     # column category
            ],
            out_specs=(pl.BlockSpec((tm, cpad), lambda i: (i, 0)),
                       pl.BlockSpec((tm, cpad), lambda i: (i, 0))),
        ),
        compiler_params=pltpu.CompilerParams(dimension_semantics=("parallel",)),
    )(xs, w_proj, b_proj, w_head, b_head, a_wh, a_xy, cat_cols)


# ----------------------------------------------------------------------------
# Anchors (synthetic Anchors_4 stand-in) and column-layout decode constants.
# ----------------------------------------------------------------------------
def make_scale_anchors_np(nG, A=ANCHORS_PER_SCALE):
    """Center-form anchors (cx, cy, w, h), normalized, in (h, w, anchor) order."""
    coords = (np.arange(nG, dtype=np.float32) + 0.5) / nG
    cy, cx = np.meshgrid(coords, coords, indexing="ij")          # (nG, nG)
    cy = np.broadcast_to(cy[..., None], (nG, nG, A))
    cx = np.broadcast_to(cx[..., None], (nG, nG, A))
    aw = np.broadcast_to((np.arange(A, dtype=np.float32) + 1.0) / (A * nG),
                         (nG, nG, A))
    ah = aw * 1.5
    return np.stack([cx, cy, aw, ah], axis=-1).reshape(-1, 4).astype(np.float32)


def build_scale_consts_np(anc_s, nG, B, A=ANCHORS_PER_SCALE, Cp=CP, Cpad=CPAD):
    """Per-row (b,h,w) x per-column (a*Cp+c) anchor arrays for the fused decode."""
    a4 = anc_s.reshape(nG * nG, A, 4)
    wh = np.ones((nG * nG, A, Cp), np.float32)
    wh[..., 0] = a4[..., 2]
    wh[..., 1] = a4[..., 3]
    wh[..., 2] = a4[..., 2]
    wh[..., 3] = a4[..., 3]
    xy = np.zeros((nG * nG, A, Cp), np.float32)
    xy[..., 0] = a4[..., 0]
    xy[..., 1] = a4[..., 1]
    wh_pad = np.ones((nG * nG, Cpad), np.float32)
    xy_pad = np.zeros((nG * nG, Cpad), np.float32)
    wh_pad[:, :A * Cp] = wh.reshape(nG * nG, A * Cp)
    xy_pad[:, :A * Cp] = xy.reshape(nG * nG, A * Cp)
    return jnp.asarray(np.tile(wh_pad, (B, 1))), jnp.asarray(np.tile(xy_pad, (B, 1)))


def build_cat_cols_np(A=ANCHORS_PER_SCALE, Cp=CP, Cpad=CPAD):
    cat = np.full((1, Cpad), 2.0, np.float32)        # padded cols -> sigmoid path
    for j in range(A * Cp):
        c = j % Cp
        cat[0, j] = 0.0 if c < 2 else (1.0 if c < 4 else 2.0)
    return jnp.asarray(cat)


# ----------------------------------------------------------------------------
# Parameters (mirrors __init_weights: normal(0, 0.01) weights, zero biases)
# ----------------------------------------------------------------------------
def init_params(key, in_ch, channels, cpad=CPAD):
    params = []
    for c in channels:
        key, k1, k2 = jax.random.split(key, 3)
        w_proj = 0.01 * jax.random.normal(k1, (in_ch, c), jnp.float32)
        b_proj = jnp.zeros((1, c), jnp.float32)
        w_head = jnp.zeros((c, cpad), jnp.float32)
        w_head = w_head.at[:, :OUT_CHANNEL].set(
            0.01 * jax.random.normal(k2, (c, OUT_CHANNEL), jnp.float32))
        b_head = jnp.zeros((1, cpad), jnp.float32)
        params.append(dict(w_proj=w_proj, b_proj=b_proj,
                           w_head=w_head, b_head=b_head))
    return params


# ----------------------------------------------------------------------------
# Forward
# ----------------------------------------------------------------------------
def td_net_forward(x, params, awh_list, axy_list, cat_cols, grids,
                   A=ANCHORS_PER_SCALE, Cp=CP):
    B, Cin, H, W = x.shape
    x_nhwc = jnp.transpose(x, (0, 2, 3, 1))

    p_list, pde_list = [], []
    for s, nG in enumerate(grids):
        stride = H // nG
        # TODO(synk): stand-in for the ResNet50/FPN stage — avg-pool downsample
        # (XLA glue); the per-scale 1x1 convs run in the fused Pallas kernel.
        xs = x_nhwc.reshape(B, nG, stride, nG, stride, Cin).mean(axis=(2, 4))
        xs = xs.reshape(B * nG * nG, Cin)

        prm = params[s]
        p_pad, pde_pad = fused_head_decode(
            xs, prm["w_proj"], prm["b_proj"], prm["w_head"], prm["b_head"],
            awh_list[s], axy_list[s], cat_cols)

        nc = A * Cp
        # NHWC head (B*nG*nG, A*Cp) reshapes directly to the PyTorch
        # view/permute result ordering (h, w, anchor) with Cp last.
        p_list.append(p_pad[:, :nc].reshape(B, nG * nG * A, Cp))
        pde_list.append(pde_pad[:, :nc].reshape(B, nG * nG * A, Cp))

    p = jnp.concatenate(p_list, axis=1)
    p_de = jnp.concatenate(pde_list, axis=1)
    return p, p_de


def decode_reference(p, anchors):
    """Pure-JAX reference of __decode for a numerical cross-check."""
    xy = p[..., 0:2] * CENTER_VARIANCE * anchors[None, :, 2:4] + anchors[None, :, 0:2]
    wh = jnp.exp(p[..., 2:4] * SIZE_VARIANCE) * anchors[None, :, 2:4]
    conf = jax.nn.sigmoid(p[..., 4:5])
    prob = jax.nn.sigmoid(p[..., 5:])
    return jnp.concatenate([xy, wh, conf, prob], axis=-1)


if __name__ == "__main__":
    key = jax.random.PRNGKey(0)
    key, kx, kp = jax.random.split(key, 3)

    B, Cin, H, W = 2, 3, 32, 32
    grids = (16, 8, 4, 2)            # x_mini, x_s, x_m, x_l grid sizes
    channels = (32, 64, 128, 256)    # simplified fpn feature channels

    x = jax.random.normal(kx, (B, Cin, H, W), jnp.float32)
    params = init_params(kp, Cin, channels)

    # Deterministic anchors + column-layout decode constants (setup-time numpy)
    anchors_np = [make_scale_anchors_np(g) for g in grids]
    anchors_all = jnp.asarray(np.concatenate(anchors_np, axis=0))
    awh_list, axy_list = [], []
    for g, anc in zip(grids, anchors_np):
        a_wh, a_xy = build_scale_consts_np(anc, g, B)
        awh_list.append(a_wh)
        axy_list.append(a_xy)
    cat_cols = build_cat_cols_np()

    fwd = jax.jit(functools.partial(td_net_forward, grids=grids))
    p, p_de = fwd(x, params, awh_list, axy_list, cat_cols)
    jax.block_until_ready((p, p_de))

    n_total = sum(g * g * ANCHORS_PER_SCALE for g in grids)
    assert p.shape == (B, n_total, CP), p.shape
    assert p_de.shape == (B, n_total, CP), p_de.shape

    # cross-check the fused Pallas decode against the pure-JAX reference
    p_de_ref = decode_reference(p, anchors_all)
    np.testing.assert_allclose(np.asarray(p_de), np.asarray(p_de_ref),
                               rtol=1e-4, atol=1e-4)

    print("KERNEL_OK")
</pallas_src>

<mosaic_0001>
module attributes {stable_mosaic.version = 11 : i64} {
  func.func @_fused_scale_kernel(%arg0: i32, %arg1: memref<256x3xf32, #tpu.memory_space<vmem>>, %arg2: memref<3x32xf32, #tpu.memory_space<vmem>>, %arg3: memref<1x32xf32, #tpu.memory_space<vmem>>, %arg4: memref<32x128xf32, #tpu.memory_space<vmem>>, %arg5: memref<1x128xf32, #tpu.memory_space<vmem>>, %arg6: memref<256x128xf32, #tpu.memory_space<vmem>>, %arg7: memref<256x128xf32, #tpu.memory_space<vmem>>, %arg8: memref<1x128xf32, #tpu.memory_space<vmem>>, %arg9: memref<256x128xf32, #tpu.memory_space<vmem>>, %arg10: memref<256x128xf32, #tpu.memory_space<vmem>>) attributes {dimension_semantics = [#tpu.dimension_semantics<parallel>], iteration_bounds = array<i64: 2>, scalar_prefetch = 0 : i64, scratch_operands = 0 : i64, tpu.core_type = #tpu.core_type<tc>, window_params = [{transform_indices = @transform_0, window_bounds = array<i64: 256, 3>}, {pipeline_mode = #tpu.pipeline_mode<synchronous>, transform_indices = @transform_1, window_bounds = array<i64: 3, 32>}, {pipeline_mode = #tpu.pipeline_mode<synchronous>, transform_indices = @transform_2, window_bounds = array<i64: 1, 32>}, {pipeline_mode = #tpu.pipeline_mode<synchronous>, transform_indices = @transform_3, window_bounds = array<i64: 32, 128>}, {pipeline_mode = #tpu.pipeline_mode<synchronous>, transform_indices = @transform_4, window_bounds = array<i64: 1, 128>}, {transform_indices = @transform_5, window_bounds = array<i64: 256, 128>}, {transform_indices = @transform_6, window_bounds = array<i64: 256, 128>}, {pipeline_mode = #tpu.pipeline_mode<synchronous>, transform_indices = @transform_7, window_bounds = array<i64: 1, 128>}, {transform_indices = @transform_8, window_bounds = array<i64: 256, 128>}, {transform_indices = @transform_9, window_bounds = array<i64: 256, 128>}]} {
    %c0 = arith.constant 0 : index
    %c0_0 = arith.constant 0 : index
    %0 = vector.load %arg1[%c0, %c0_0] : memref<256x3xf32, #tpu.memory_space<vmem>>, vector<256x3xf32>
    %c0_1 = arith.constant 0 : index
    %c0_2 = arith.constant 0 : index
    %1 = vector.load %arg3[%c0_1, %c0_2] : memref<1x32xf32, #tpu.memory_space<vmem>>, vector<1x32xf32>
    %2 = vector.extract_strided_slice %0 {offsets = [0, 0], sizes = [256, 1], strides = [1, 1]} : vector<256x3xf32> to vector<256x1xf32>
    %c0_3 = arith.constant 0 : index
    %c0_4 = arith.constant 0 : index
    %3 = vector.load %arg2[%c0_3, %c0_4] : memref<3x32xf32, #tpu.memory_space<vmem>>, vector<1x32xf32>
    %4 = vector.broadcast %2 : vector<256x1xf32> to vector<256x32xf32>
    %5 = vector.broadcast %3 : vector<1x32xf32> to vector<256x32xf32>
    %6 = arith.mulf %4, %5 : vector<256x32xf32>
    %7 = vector.broadcast %1 : vector<1x32xf32> to vector<256x32xf32>
    %8 = arith.addf %7, %6 : vector<256x32xf32>
    %9 = vector.extract_strided_slice %0 {offsets = [0, 1], sizes = [256, 1], strides = [1, 1]} : vector<256x3xf32> to vector<256x1xf32>
    %c1 = arith.constant 1 : index
    %c0_5 = arith.constant 0 : index
    %10 = vector.load %arg2[%c1, %c0_5] : memref<3x32xf32, #tpu.memory_space<vmem>>, vector<1x32xf32>
    %11 = vector.broadcast %9 : vector<256x1xf32> to vector<256x32xf32>
    %12 = vector.broadcast %10 : vector<1x32xf32> to vector<256x32xf32>
    %13 = arith.mulf %11, %12 : vector<256x32xf32>
    %14 = arith.addf %8, %13 : vector<256x32xf32>
    %15 = vector.extract_strided_slice %0 {offsets = [0, 2], sizes = [256, 1], strides = [1, 1]} : vector<256x3xf32> to vector<256x1xf32>
    %c2 = arith.constant 2 : index
    %c0_6 = arith.constant 0 : index
    %16 = vector.load %arg2[%c2, %c0_6] : memref<3x32xf32, #tpu.memory_space<vmem>>, vector<1x32xf32>
    %17 = vector.broadcast %15 : vector<256x1xf32> to vector<256x32xf32>
    %18 = vector.broadcast %16 : vector<1x32xf32> to vector<256x32xf32>
    %19 = arith.mulf %17, %18 : vector<256x32xf32>
    %20 = arith.addf %14, %19 : vector<256x32xf32>
    %cst = arith.constant 0.000000e+00 : f32
    %21 = vector.broadcast %cst : f32 to vector<256x32xf32>
    %22 = arith.maximumf %20, %21 : vector<256x32xf32>
    %c0_7 = arith.constant 0 : index
    %c0_8 = arith.constant 0 : index
    %23 = vector.load %arg4[%c0_7, %c0_8] : memref<32x128xf32, #tpu.memory_space<vmem>>, vector<32x128xf32>
    %cst_9 = arith.constant dense<0.000000e+00> : vector<256x128xf32>
    %24 = tpu.matmul %22, %23, %cst_9 {dimension_numbers = #tpu.dot_dimension_numbers<[1], [0], [0], [1], [0, 0, 1, 1], [], []>} : vector<256x32xf32>, vector<32x128xf32>, vector<256x128xf32> -> vector<256x128xf32>
    %c0_10 = arith.constant 0 : index
    %c0_11 = arith.constant 0 : index
    %25 = vector.load %arg5[%c0_10, %c0_11] : memref<1x128xf32, #tpu.memory_space<vmem>>, vector<1x128xf32>
    %26 = vector.broadcast %25 : vector<1x128xf32> to vector<256x128xf32>
    %27 = arith.addf %24, %26 : vector<256x128xf32>
    %c0_12 = arith.constant 0 : index
    %c0_13 = arith.constant 0 : index
    %28 = vector.load %arg9[%c0_12, %c0_13] : memref<256x128xf32, #tpu.memory_space<vmem>>, vector<256x128xf32>
    tpu.vector_store %arg9[%c0_12, %c0_13], %27 {strides = array<i32>} : memref<256x128xf32, #tpu.memory_space<vmem>>, vector<256x128xf32>,
    %c0_14 = arith.constant 0 : index
    %c0_15 = arith.constant 0 : index
    %29 = vector.load %arg6[%c0_14, %c0_15] : memref<256x128xf32, #tpu.memory_space<vmem>>, vector<256x128xf32>
    %c0_16 = arith.constant 0 : index
    %c0_17 = arith.constant 0 : index
    %30 = vector.load %arg7[%c0_16, %c0_17] : memref<256x128xf32, #tpu.memory_space<vmem>>, vector<256x128xf32>
    %c0_18 = arith.constant 0 : index
    %c0_19 = arith.constant 0 : index
    %31 = vector.load %arg8[%c0_18, %c0_19] : memref<1x128xf32, #tpu.memory_space<vmem>>, vector<1x128xf32>
    %32 = vector.shape_cast %31 : vector<1x128xf32> to vector<1x128xf32>
    %33 = vector.broadcast %32 : vector<1x128xf32> to vector<256x128xf32>
    %cst_20 = arith.constant 1.000000e-01 : f32
    %34 = vector.broadcast %cst_20 : f32 to vector<256x128xf32>
    %35 = arith.mulf %27, %34 : vector<256x128xf32>
    %36 = arith.mulf %35, %29 : vector<256x128xf32>
    %37 = arith.addf %36, %30 : vector<256x128xf32>
    %cst_21 = arith.constant 2.000000e-01 : f32
    %38 = vector.broadcast %cst_21 : f32 to vector<256x128xf32>
    %39 = arith.mulf %27, %38 : vector<256x128xf32>
    %40 = math.exp %39 : vector<256x128xf32>
    %41 = arith.mulf %40, %29 : vector<256x128xf32>
    %42 = arith.negf %27 : vector<256x128xf32>
    %43 = math.exp %42 : vector<256x128xf32>
    %cst_22 = arith.constant 1.000000e+00 : f32
    %44 = vector.broadcast %cst_22 : f32 to vector<256x128xf32>
    %45 = arith.addf %44, %43 : vector<256x128xf32>
    %46 = arith.divf %44, %45 : vector<256x128xf32>
    %cst_23 = arith.constant 5.000000e-01 : f32
    %47 = vector.broadcast %cst_23 : f32 to vector<256x128xf32>
    %48 = arith.cmpf olt, %33, %47 : vector<256x128xf32>
    %cst_24 = arith.constant 1.500000e+00 : f32
    %49 = vector.broadcast %cst_24 : f32 to vector<256x128xf32>
    %50 = arith.cmpf olt, %33, %49 : vector<256x128xf32>
    %51 = arith.select %50, %41, %46 : vector<256x128xi1>, vector<256x128xf32>
    %52 = arith.select %48, %37, %51 : vector<256x128xi1>, vector<256x128xf32>
    %c0_25 = arith.constant 0 : index
    %c0_26 = arith.constant 0 : index
    %53 = vector.load %arg10[%c0_25, %c0_26] : memref<256x128xf32, #tpu.memory_space<vmem>>, vector<256x128xf32>
    tpu.vector_store %arg10[%c0_25, %c0_26], %52 {strides = array<i32>} : memref<256x128xf32, #tpu.memory_space<vmem>>, vector<256x128xf32>,
    return
  }
  func.func @transform_0(%arg0: i32) -> (i32, i32) {
    %c0_i32 = arith.constant 0 : i32
    %c0_i32_0 = arith.constant 0 : i32
    return %arg0, %c0_i32 : i32, i32
  }
  func.func @transform_1(%arg0: i32) -> (i32, i32) {
    %c0_i32 = arith.constant 0 : i32
    %c0_i32_0 = arith.constant 0 : i32
    %c0_i32_1 = arith.constant 0 : i32
    return %c0_i32, %c0_i32_0 : i32, i32
  }
  func.func @transform_2(%arg0: i32) -> (i32, i32) {
    %c0_i32 = arith.constant 0 : i32
    %c0_i32_0 = arith.constant 0 : i32
    %c0_i32_1 = arith.constant 0 : i32
    return %c0_i32, %c0_i32_0 : i32, i32
  }
  func.func @transform_3(%arg0: i32) -> (i32, i32) {
    %c0_i32 = arith.constant 0 : i32
    %c0_i32_0 = arith.constant 0 : i32
    %c0_i32_1 = arith.constant 0 : i32
    return %c0_i32, %c0_i32_0 : i32, i32
  }
  func.func @transform_4(%arg0: i32) -> (i32, i32) {
    %c0_i32 = arith.constant 0 : i32
    %c0_i32_0 = arith.constant 0 : i32
    %c0_i32_1 = arith.constant 0 : i32
    return %c0_i32, %c0_i32_0 : i32, i32
  }
  func.func @transform_5(%arg0: i32) -> (i32, i32) {
    %c0_i32 = arith.constant 0 : i32
    %c0_i32_0 = arith.constant 0 : i32
    return %arg0, %c0_i32 : i32, i32
  }
  func.func @transform_6(%arg0: i32) -> (i32, i32) {
    %c0_i32 = arith.constant 0 : i32
    %c0_i32_0 = arith.constant 0 : i32
    return %arg0, %c0_i32 : i32, i32
  }
  func.func @transform_7(%arg0: i32) -> (i32, i32) {
    %c0_i32 = arith.constant 0 : i32
    %c0_i32_0 = arith.constant 0 : i32
    %c0_i32_1 = arith.constant 0 : i32
    return %c0_i32, %c0_i32_0 : i32, i32
  }
  func.func @transform_8(%arg0: i32) -> (i32, i32) {
    %c0_i32 = arith.constant 0 : i32
    %c0_i32_0 = arith.constant 0 : i32
    return %arg0, %c0_i32 : i32, i32
  }
  func.func @transform_9(%arg0: i32) -> (i32, i32) {
    %c0_i32 = arith.constant 0 : i32
    %c0_i32_0 = arith.constant 0 : i32
    return %arg0, %c0_i32 : i32, i32
  }
}

module attributes {stable_mosaic.version = 11 : i64} {
  func.func @_fused_scale_kernel(%arg0: i32, %arg1: memref<128x3xf32, #tpu.memory_space<vmem>>, %arg2: memref<3x64xf32, #tpu.memory_space<vmem>>, %arg3: memref<1x64xf32, #tpu.memory_space<vmem>>, %arg4: memref<64x128xf32, #tpu.memory_space<vmem>>, %arg5: memref<1x128xf32, #tpu.memory_space<vmem>>, %arg6: memref<128x128xf32, #tpu.memory_space<vmem>>, %arg7: memref<128x128xf32, #tpu.memory_space<vmem>>, %arg8: memref<1x128xf32, #tpu.memory_space<vmem>>, %arg9: memref<128x128xf32, #tpu.memory_space<vmem>>, %arg10: memref<128x128xf32, #tpu.memory_space<vmem>>) attributes {dimension_semantics = [#tpu.dimension_semantics<parallel>], iteration_bounds = array<i64: 1>, scalar_prefetch = 0 : i64, scratch_operands = 0 : i64, tpu.core_type = #tpu.core_type<tc>, window_params = [{transform_indices = @transform_0, window_bounds = array<i64: 128, 3>}, {pipeline_mode = #tpu.pipeline_mode<synchronous>, transform_indices = @transform_1, window_bounds = array<i64: 3, 64>}, {pipeline_mode = #tpu.pipeline_mode<synchronous>, transform_indices = @transform_2, window_bounds = array<i64: 1, 64>}, {pipeline_mode = #tpu.pipeline_mode<synchronous>, transform_indices = @transform_3, window_bounds = array<i64: 64, 128>}, {pipeline_mode = #tpu.pipeline_mode<synchronous>, transform_indices = @transform_4, window_bounds = array<i64: 1, 128>}, {transform_indices = @transform_5, window_bounds = array<i64: 128, 128>}, {transform_indices = @transform_6, window_bounds = array<i64: 128, 128>}, {pipeline_mode = #tpu.pipeline_mode<synchronous>, transform_indices = @transform_7, window_bounds = array<i64: 1, 128>}, {transform_indices = @transform_8, window_bounds = array<i64: 128, 128>}, {transform_indices = @transform_9, window_bounds = array<i64: 128, 128>}]} {
    %c0 = arith.constant 0 : index
    %c0_0 = arith.constant 0 : index
    %0 = vector.load %arg1[%c0, %c0_0] : memref<128x3xf32, #tpu.memory_space<vmem>>, vector<128x3xf32>
    %c0_1 = arith.constant 0 : index
    %c0_2 = arith.constant 0 : index
    %1 = vector.load %arg3[%c0_1, %c0_2] : memref<1x64xf32, #tpu.memory_space<vmem>>, vector<1x64xf32>
    %2 = vector.extract_strided_slice %0 {offsets = [0, 0], sizes = [128, 1], strides = [1, 1]} : vector<128x3xf32> to vector<128x1xf32>
    %c0_3 = arith.constant 0 : index
    %c0_4 = arith.constant 0 : index
    %3 = vector.load %arg2[%c0_3, %c0_4] : memref<3x64xf32, #tpu.memory_space<vmem>>, vector<1x64xf32>
    %4 = vector.broadcast %2 : vector<128x1xf32> to vector<128x64xf32>
    %5 = vector.broadcast %3 : vector<1x64xf32> to vector<128x64xf32>
    %6 = arith.mulf %4, %5 : vector<128x64xf32>
    %7 = vector.broadcast %1 : vector<1x64xf32> to vector<128x64xf32>
    %8 = arith.addf %7, %6 : vector<128x64xf32>
    %9 = vector.extract_strided_slice %0 {offsets = [0, 1], sizes = [128, 1], strides = [1, 1]} : vector<128x3xf32> to vector<128x1xf32>
    %c1 = arith.constant 1 : index
    %c0_5 = arith.constant 0 : index
    %10 = vector.load %arg2[%c1, %c0_5] : memref<3x64xf32, #tpu.memory_space<vmem>>, vector<1x64xf32>
    %11 = vector.broadcast %9 : vector<128x1xf32> to vector<128x64xf32>
    %12 = vector.broadcast %10 : vector<1x64xf32> to vector<128x64xf32>
    %13 = arith.mulf %11, %12 : vector<128x64xf32>
    %14 = arith.addf %8, %13 : vector<128x64xf32>
    %15 = vector.extract_strided_slice %0 {offsets = [0, 2], sizes = [128, 1], strides = [1, 1]} : vector<128x3xf32> to vector<128x1xf32>
    %c2 = arith.constant 2 : index
    %c0_6 = arith.constant 0 : index
    %16 = vector.load %arg2[%c2, %c0_6] : memref<3x64xf32, #tpu.memory_space<vmem>>, vector<1x64xf32>
    %17 = vector.broadcast %15 : vector<128x1xf32> to vector<128x64xf32>
    %18 = vector.broadcast %16 : vector<1x64xf32> to vector<128x64xf32>
    %19 = arith.mulf %17, %18 : vector<128x64xf32>
    %20 = arith.addf %14, %19 : vector<128x64xf32>
    %cst = arith.constant 0.000000e+00 : f32
    %21 = vector.broadcast %cst : f32 to vector<128x64xf32>
    %22 = arith.maximumf %20, %21 : vector<128x64xf32>
    %c0_7 = arith.constant 0 : index
    %c0_8 = arith.constant 0 : index
    %23 = vector.load %arg4[%c0_7, %c0_8] : memref<64x128xf32, #tpu.memory_space<vmem>>, vector<64x128xf32>
    %cst_9 = arith.constant dense<0.000000e+00> : vector<128x128xf32>
    %24 = tpu.matmul %22, %23, %cst_9 {dimension_numbers = #tpu.dot_dimension_numbers<[1], [0], [0], [1], [0, 0, 1, 1], [], []>} : vector<128x64xf32>, vector<64x128xf32>, vector<128x128xf32> -> vector<128x128xf32>
    %c0_10 = arith.constant 0 : index
    %c0_11 = arith.constant 0 : index
    %25 = vector.load %arg5[%c0_10, %c0_11] : memref<1x128xf32, #tpu.memory_space<vmem>>, vector<1x128xf32>
    %26 = vector.broadcast %25 : vector<1x128xf32> to vector<128x128xf32>
    %27 = arith.addf %24, %26 : vector<128x128xf32>
    %c0_12 = arith.constant 0 : index
    %c0_13 = arith.constant 0 : index
    %28 = vector.load %arg9[%c0_12, %c0_13] : memref<128x128xf32, #tpu.memory_space<vmem>>, vector<128x128xf32>
    tpu.vector_store %arg9[%c0_12, %c0_13], %27 {strides = array<i32>} : memref<128x128xf32, #tpu.memory_space<vmem>>, vector<128x128xf32>,
    %c0_14 = arith.constant 0 : index
    %c0_15 = arith.constant 0 : index
    %29 = vector.load %arg6[%c0_14, %c0_15] : memref<128x128xf32, #tpu.memory_space<vmem>>, vector<128x128xf32>
    %c0_16 = arith.constant 0 : index
    %c0_17 = arith.constant 0 : index
    %30 = vector.load %arg7[%c0_16, %c0_17] : memref<128x128xf32, #tpu.memory_space<vmem>>, vector<128x128xf32>
    %c0_18 = arith.constant 0 : index
    %c0_19 = arith.constant 0 : index
    %31 = vector.load %arg8[%c0_18, %c0_19] : memref<1x128xf32, #tpu.memory_space<vmem>>, vector<1x128xf32>
    %32 = vector.shape_cast %31 : vector<1x128xf32> to vector<1x128xf32>
    %33 = vector.broadcast %32 : vector<1x128xf32> to vector<128x128xf32>
    %cst_20 = arith.constant 1.000000e-01 : f32
    %34 = vector.broadcast %cst_20 : f32 to vector<128x128xf32>
    %35 = arith.mulf %27, %34 : vector<128x128xf32>
    %36 = arith.mulf %35, %29 : vector<128x128xf32>
    %37 = arith.addf %36, %30 : vector<128x128xf32>
    %cst_21 = arith.constant 2.000000e-01 : f32
    %38 = vector.broadcast %cst_21 : f32 to vector<128x128xf32>
    %39 = arith.mulf %27, %38 : vector<128x128xf32>
    %40 = math.exp %39 : vector<128x128xf32>
    %41 = arith.mulf %40, %29 : vector<128x128xf32>
    %42 = arith.negf %27 : vector<128x128xf32>
    %43 = math.exp %42 : vector<128x128xf32>
    %cst_22 = arith.constant 1.000000e+00 : f32
    %44 = vector.broadcast %cst_22 : f32 to vector<128x128xf32>
    %45 = arith.addf %44, %43 : vector<128x128xf32>
    %46 = arith.divf %44, %45 : vector<128x128xf32>
    %cst_23 = arith.constant 5.000000e-01 : f32
    %47 = vector.broadcast %cst_23 : f32 to vector<128x128xf32>
    %48 = arith.cmpf olt, %33, %47 : vector<128x128xf32>
    %cst_24 = arith.constant 1.500000e+00 : f32
    %49 = vector.broadcast %cst_24 : f32 to vector<128x128xf32>
    %50 = arith.cmpf olt, %33, %49 : vector<128x128xf32>
    %51 = arith.select %50, %41, %46 : vector<128x128xi1>, vector<128x128xf32>
    %52 = arith.select %48, %37, %51 : vector<128x128xi1>, vector<128x128xf32>
    %c0_25 = arith.constant 0 : index
    %c0_26 = arith.constant 0 : index
    %53 = vector.load %arg10[%c0_25, %c0_26] : memref<128x128xf32, #tpu.memory_space<vmem>>, vector<128x128xf32>
    tpu.vector_store %arg10[%c0_25, %c0_26], %52 {strides = array<i32>} : memref<128x128xf32, #tpu.memory_space<vmem>>, vector<128x128xf32>,
    return
  }
  func.func @transform_0(%arg0: i32) -> (i32, i32) {
    %c0_i32 = arith.constant 0 : i32
    %c0_i32_0 = arith.constant 0 : i32
    return %arg0, %c0_i32 : i32, i32
  }
  func.func @transform_1(%arg0: i32) -> (i32, i32) {
    %c0_i32 = arith.constant 0 : i32
    %c0_i32_0 = arith.constant 0 : i32
    %c0_i32_1 = arith.constant 0 : i32
    return %c0_i32, %c0_i32_0 : i32, i32
  }
  func.func @transform_2(%arg0: i32) -> (i32, i32) {
    %c0_i32 = arith.constant 0 : i32
    %c0_i32_0 = arith.constant 0 : i32
    %c0_i32_1 = arith.constant 0 : i32
    return %c0_i32, %c0_i32_0 : i32, i32
  }
  func.func @transform_3(%arg0: i32) -> (i32, i32) {
    %c0_i32 = arith.constant 0 : i32
    %c0_i32_0 = arith.constant 0 : i32
    %c0_i32_1 = arith.constant 0 : i32
    return %c0_i32, %c0_i32_0 : i32, i32
  }
  func.func @transform_4(%arg0: i32) -> (i32, i32) {
    %c0_i32 = arith.constant 0 : i32
    %c0_i32_0 = arith.constant 0 : i32
    %c0_i32_1 = arith.constant 0 : i32
    return %c0_i32, %c0_i32_0 : i32, i32
  }
  func.func @transform_5(%arg0: i32) -> (i32, i32) {
    %c0_i32 = arith.constant 0 : i32
    %c0_i32_0 = arith.constant 0 : i32
    return %arg0, %c0_i32 : i32, i32
  }
  func.func @transform_6(%arg0: i32) -> (i32, i32) {
    %c0_i32 = arith.constant 0 : i32
    %c0_i32_0 = arith.constant 0 : i32
    return %arg0, %c0_i32 : i32, i32
  }
  func.func @transform_7(%arg0: i32) -> (i32, i32) {
    %c0_i32 = arith.constant 0 : i32
    %c0_i32_0 = arith.constant 0 : i32
    %c0_i32_1 = arith.constant 0 : i32
    return %c0_i32, %c0_i32_0 : i32, i32
  }
  func.func @transform_8(%arg0: i32) -> (i32, i32) {
    %c0_i32 = arith.constant 0 : i32
    %c0_i32_0 = arith.constant 0 : i32
    return %arg0, %c0_i32 : i32, i32
  }
  func.func @transform_9(%arg0: i32) -> (i32, i32) {
    %c0_i32 = arith.constant 0 : i32
    %c0_i32_0 = arith.constant 0 : i32
    return %arg0, %c0_i32 : i32, i32
  }
}

module attributes {stable_mosaic.version = 11 : i64} {
  func.func @_fused_scale_kernel(%arg0: i32, %arg1: memref<32x3xf32, #tpu.memory_space<vmem>>, %arg2: memref<3x128xf32, #tpu.memory_space<vmem>>, %arg3: memref<1x128xf32, #tpu.memory_space<vmem>>, %arg4: memref<128x128xf32, #tpu.memory_space<vmem>>, %arg5: memref<1x128xf32, #tpu.memory_space<vmem>>, %arg6: memref<32x128xf32, #tpu.memory_space<vmem>>, %arg7: memref<32x128xf32, #tpu.memory_space<vmem>>, %arg8: memref<1x128xf32, #tpu.memory_space<vmem>>, %arg9: memref<32x128xf32, #tpu.memory_space<vmem>>, %arg10: memref<32x128xf32, #tpu.memory_space<vmem>>) attributes {dimension_semantics = [#tpu.dimension_semantics<parallel>], iteration_bounds = array<i64: 1>, scalar_prefetch = 0 : i64, scratch_operands = 0 : i64, tpu.core_type = #tpu.core_type<tc>, window_params = [{transform_indices = @transform_0, window_bounds = array<i64: 32, 3>}, {pipeline_mode = #tpu.pipeline_mode<synchronous>, transform_indices = @transform_1, window_bounds = array<i64: 3, 128>}, {pipeline_mode = #tpu.pipeline_mode<synchronous>, transform_indices = @transform_2, window_bounds = array<i64: 1, 128>}, {pipeline_mode = #tpu.pipeline_mode<synchronous>, transform_indices = @transform_3, window_bounds = array<i64: 128, 128>}, {pipeline_mode = #tpu.pipeline_mode<synchronous>, transform_indices = @transform_4, window_bounds = array<i64: 1, 128>}, {transform_indices = @transform_5, window_bounds = array<i64: 32, 128>}, {transform_indices = @transform_6, window_bounds = array<i64: 32, 128>}, {pipeline_mode = #tpu.pipeline_mode<synchronous>, transform_indices = @transform_7, window_bounds = array<i64: 1, 128>}, {transform_indices = @transform_8, window_bounds = array<i64: 32, 128>}, {transform_indices = @transform_9, window_bounds = array<i64: 32, 128>}]} {
    %c0 = arith.constant 0 : index
    %c0_0 = arith.constant 0 : index
    %0 = vector.load %arg1[%c0, %c0_0] : memref<32x3xf32, #tpu.memory_space<vmem>>, vector<32x3xf32>
    %c0_1 = arith.constant 0 : index
    %c0_2 = arith.constant 0 : index
    %1 = vector.load %arg3[%c0_1, %c0_2] : memref<1x128xf32, #tpu.memory_space<vmem>>, vector<1x128xf32>
    %2 = vector.extract_strided_slice %0 {offsets = [0, 0], sizes = [32, 1], strides = [1, 1]} : vector<32x3xf32> to vector<32x1xf32>
    %c0_3 = arith.constant 0 : index
    %c0_4 = arith.constant 0 : index
    %3 = vector.load %arg2[%c0_3, %c0_4] : memref<3x128xf32, #tpu.memory_space<vmem>>, vector<1x128xf32>
    %4 = vector.broadcast %2 : vector<32x1xf32> to vector<32x128xf32>
    %5 = vector.broadcast %3 : vector<1x128xf32> to vector<32x128xf32>
    %6 = arith.mulf %4, %5 : vector<32x128xf32>
    %7 = vector.broadcast %1 : vector<1x128xf32> to vector<32x128xf32>
    %8 = arith.addf %7, %6 : vector<32x128xf32>
    %9 = vector.extract_strided_slice %0 {offsets = [0, 1], sizes = [32, 1], strides = [1, 1]} : vector<32x3xf32> to vector<32x1xf32>
    %c1 = arith.constant 1 : index
    %c0_5 = arith.constant 0 : index
    %10 = vector.load %arg2[%c1, %c0_5] : memref<3x128xf32, #tpu.memory_space<vmem>>, vector<1x128xf32>
    %11 = vector.broadcast %9 : vector<32x1xf32> to vector<32x128xf32>
    %12 = vector.broadcast %10 : vector<1x128xf32> to vector<32x128xf32>
    %13 = arith.mulf %11, %12 : vector<32x128xf32>
    %14 = arith.addf %8, %13 : vector<32x128xf32>
    %15 = vector.extract_strided_slice %0 {offsets = [0, 2], sizes = [32, 1], strides = [1, 1]} : vector<32x3xf32> to vector<32x1xf32>
    %c2 = arith.constant 2 : index
    %c0_6 = arith.constant 0 : index
    %16 = vector.load %arg2[%c2, %c0_6] : memref<3x128xf32, #tpu.memory_space<vmem>>, vector<1x128xf32>
    %17 = vector.broadcast %15 : vector<32x1xf32> to vector<32x128xf32>
    %18 = vector.broadcast %16 : vector<1x128xf32> to vector<32x128xf32>
    %19 = arith.mulf %17, %18 : vector<32x128xf32>
    %20 = arith.addf %14, %19 : vector<32x128xf32>
    %cst = arith.constant 0.000000e+00 : f32
    %21 = vector.broadcast %cst : f32 to vector<32x128xf32>
    %22 = arith.maximumf %20, %21 : vector<32x128xf32>
    %c0_7 = arith.constant 0 : index
    %c0_8 = arith.constant 0 : index
    %23 = vector.load %arg4[%c0_7, %c0_8] : memref<128x128xf32, #tpu.memory_space<vmem>>, vector<128x128xf32>
    %cst_9 = arith.constant dense<0.000000e+00> : vector<32x128xf32>
    %24 = tpu.matmul %22, %23, %cst_9 {dimension_numbers = #tpu.dot_dimension_numbers<[1], [0], [0], [1], [0, 0, 1, 1], [], []>} : vector<32x128xf32>, vector<128x128xf32>, vector<32x128xf32> -> vector<32x128xf32>
    %c0_10 = arith.constant 0 : index
    %c0_11 = arith.constant 0 : index
    %25 = vector.load %arg5[%c0_10, %c0_11] : memref<1x128xf32, #tpu.memory_space<vmem>>, vector<1x128xf32>
    %26 = vector.broadcast %25 : vector<1x128xf32> to vector<32x128xf32>
    %27 = arith.addf %24, %26 : vector<32x128xf32>
    %c0_12 = arith.constant 0 : index
    %c0_13 = arith.constant 0 : index
    %28 = vector.load %arg9[%c0_12, %c0_13] : memref<32x128xf32, #tpu.memory_space<vmem>>, vector<32x128xf32>
    tpu.vector_store %arg9[%c0_12, %c0_13], %27 {strides = array<i32>} : memref<32x128xf32, #tpu.memory_space<vmem>>, vector<32x128xf32>,
    %c0_14 = arith.constant 0 : index
    %c0_15 = arith.constant 0 : index
    %29 = vector.load %arg6[%c0_14, %c0_15] : memref<32x128xf32, #tpu.memory_space<vmem>>, vector<32x128xf32>
    %c0_16 = arith.constant 0 : index
    %c0_17 = arith.constant 0 : index
    %30 = vector.load %arg7[%c0_16, %c0_17] : memref<32x128xf32, #tpu.memory_space<vmem>>, vector<32x128xf32>
    %c0_18 = arith.constant 0 : index
    %c0_19 = arith.constant 0 : index
    %31 = vector.load %arg8[%c0_18, %c0_19] : memref<1x128xf32, #tpu.memory_space<vmem>>, vector<1x128xf32>
    %32 = vector.shape_cast %31 : vector<1x128xf32> to vector<1x128xf32>
    %33 = vector.broadcast %32 : vector<1x128xf32> to vector<32x128xf32>
    %cst_20 = arith.constant 1.000000e-01 : f32
    %34 = vector.broadcast %cst_20 : f32 to vector<32x128xf32>
    %35 = arith.mulf %27, %34 : vector<32x128xf32>
    %36 = arith.mulf %35, %29 : vector<32x128xf32>
    %37 = arith.addf %36, %30 : vector<32x128xf32>
    %cst_21 = arith.constant 2.000000e-01 : f32
    %38 = vector.broadcast %cst_21 : f32 to vector<32x128xf32>
    %39 = arith.mulf %27, %38 : vector<32x128xf32>
    %40 = math.exp %39 : vector<32x128xf32>
    %41 = arith.mulf %40, %29 : vector<32x128xf32>
    %42 = arith.negf %27 : vector<32x128xf32>
    %43 = math.exp %42 : vector<32x128xf32>
    %cst_22 = arith.constant 1.000000e+00 : f32
    %44 = vector.broadcast %cst_22 : f32 to vector<32x128xf32>
    %45 = arith.addf %44, %43 : vector<32x128xf32>
    %46 = arith.divf %44, %45 : vector<32x128xf32>
    %cst_23 = arith.constant 5.000000e-01 : f32
    %47 = vector.broadcast %cst_23 : f32 to vector<32x128xf32>
    %48 = arith.cmpf olt, %33, %47 : vector<32x128xf32>
    %cst_24 = arith.constant 1.500000e+00 : f32
    %49 = vector.broadcast %cst_24 : f32 to vector<32x128xf32>
    %50 = arith.cmpf olt, %33, %49 : vector<32x128xf32>
    %51 = arith.select %50, %41, %46 : vector<32x128xi1>, vector<32x128xf32>
    %52 = arith.select %48, %37, %51 : vector<32x128xi1>, vector<32x128xf32>
    %c0_25 = arith.constant 0 : index
    %c0_26 = arith.constant 0 : index
    %53 = vector.load %arg10[%c0_25, %c0_26] : memref<32x128xf32, #tpu.memory_space<vmem>>, vector<32x128xf32>
    tpu.vector_store %arg10[%c0_25, %c0_26], %52 {strides = array<i32>} : memref<32x128xf32, #tpu.memory_space<vmem>>, vector<32x128xf32>,
    return
  }
  func.func @transform_0(%arg0: i32) -> (i32, i32) {
    %c0_i32 = arith.constant 0 : i32
    %c0_i32_0 = arith.constant 0 : i32
    return %arg0, %c0_i32 : i32, i32
  }
  func.func @transform_1(%arg0: i32) -> (i32, i32) {
    %c0_i32 = arith.constant 0 : i32
    %c0_i32_0 = arith.constant 0 : i32
    %c0_i32_1 = arith.constant 0 : i32
    return %c0_i32, %c0_i32_0 : i32, i32
  }
  func.func @transform_2(%arg0: i32) -> (i32, i32) {
    %c0_i32 = arith.constant 0 : i32
    %c0_i32_0 = arith.constant 0 : i32
    %c0_i32_1 = arith.constant 0 : i32
    return %c0_i32, %c0_i32_0 : i32, i32
  }
  func.func @transform_3(%arg0: i32) -> (i32, i32) {
    %c0_i32 = arith.constant 0 : i32
    %c0_i32_0 = arith.constant 0 : i32
    %c0_i32_1 = arith.constant 0 : i32
    return %c0_i32, %c0_i32_0 : i32, i32
  }
  func.func @transform_4(%arg0: i32) -> (i32, i32) {
    %c0_i32 = arith.constant 0 : i32
    %c0_i32_0 = arith.constant 0 : i32
    %c0_i32_1 = arith.constant 0 : i32
    return %c0_i32, %c0_i32_0 : i32, i32
  }
  func.func @transform_5(%arg0: i32) -> (i32, i32) {
    %c0_i32 = arith.constant 0 : i32
    %c0_i32_0 = arith.constant 0 : i32
    return %arg0, %c0_i32 : i32, i32
  }
  func.func @transform_6(%arg0: i32) -> (i32, i32) {
    %c0_i32 = arith.constant 0 : i32
    %c0_i32_0 = arith.constant 0 : i32
    return %arg0, %c0_i32 : i32, i32
  }
  func.func @transform_7(%arg0: i32) -> (i32, i32) {
    %c0_i32 = arith.constant 0 : i32
    %c0_i32_0 = arith.constant 0 : i32
    %c0_i32_1 = arith.constant 0 : i32
    return %c0_i32, %c0_i32_0 : i32, i32
  }
  func.func @transform_8(%arg0: i32) -> (i32, i32) {
    %c0_i32 = arith.constant 0 : i32
    %c0_i32_0 = arith.constant 0 : i32
    return %arg0, %c0_i32 : i32, i32
  }
  func.func @transform_9(%arg0: i32) -> (i32, i32) {
    %c0_i32 = arith.constant 0 : i32
    %c0_i32_0 = arith.constant 0 : i32
    return %arg0, %c0_i32 : i32, i32
  }
}

module attributes {stable_mosaic.version = 11 : i64} {
  func.func @_fused_scale_kernel(%arg0: i32, %arg1: memref<8x3xf32, #tpu.memory_space<vmem>>, %arg2: memref<3x256xf32, #tpu.memory_space<vmem>>, %arg3: memref<1x256xf32, #tpu.memory_space<vmem>>, %arg4: memref<256x128xf32, #tpu.memory_space<vmem>>, %arg5: memref<1x128xf32, #tpu.memory_space<vmem>>, %arg6: memref<8x128xf32, #tpu.memory_space<vmem>>, %arg7: memref<8x128xf32, #tpu.memory_space<vmem>>, %arg8: memref<1x128xf32, #tpu.memory_space<vmem>>, %arg9: memref<8x128xf32, #tpu.memory_space<vmem>>, %arg10: memref<8x128xf32, #tpu.memory_space<vmem>>) attributes {dimension_semantics = [#tpu.dimension_semantics<parallel>], iteration_bounds = array<i64: 1>, scalar_prefetch = 0 : i64, scratch_operands = 0 : i64, tpu.core_type = #tpu.core_type<tc>, window_params = [{transform_indices = @transform_0, window_bounds = array<i64: 8, 3>}, {pipeline_mode = #tpu.pipeline_mode<synchronous>, transform_indices = @transform_1, window_bounds = array<i64: 3, 256>}, {pipeline_mode = #tpu.pipeline_mode<synchronous>, transform_indices = @transform_2, window_bounds = array<i64: 1, 256>}, {pipeline_mode = #tpu.pipeline_mode<synchronous>, transform_indices = @transform_3, window_bounds = array<i64: 256, 128>}, {pipeline_mode = #tpu.pipeline_mode<synchronous>, transform_indices = @transform_4, window_bounds = array<i64: 1, 128>}, {transform_indices = @transform_5, window_bounds = array<i64: 8, 128>}, {transform_indices = @transform_6, window_bounds = array<i64: 8, 128>}, {pipeline_mode = #tpu.pipeline_mode<synchronous>, transform_indices = @transform_7, window_bounds = array<i64: 1, 128>}, {transform_indices = @transform_8, window_bounds = array<i64: 8, 128>}, {transform_indices = @transform_9, window_bounds = array<i64: 8, 128>}]} {
    %c0 = arith.constant 0 : index
    %c0_0 = arith.constant 0 : index
    %0 = vector.load %arg1[%c0, %c0_0] : memref<8x3xf32, #tpu.memory_space<vmem>>, vector<8x3xf32>
    %c0_1 = arith.constant 0 : index
    %c0_2 = arith.constant 0 : index
    %1 = vector.load %arg3[%c0_1, %c0_2] : memref<1x256xf32, #tpu.memory_space<vmem>>, vector<1x256xf32>
    %2 = vector.extract_strided_slice %0 {offsets = [0, 0], sizes = [8, 1], strides = [1, 1]} : vector<8x3xf32> to vector<8x1xf32>
    %c0_3 = arith.constant 0 : index
    %c0_4 = arith.constant 0 : index
    %3 = vector.load %arg2[%c0_3, %c0_4] : memref<3x256xf32, #tpu.memory_space<vmem>>, vector<1x256xf32>
    %4 = vector.broadcast %2 : vector<8x1xf32> to vector<8x256xf32>
    %5 = vector.broadcast %3 : vector<1x256xf32> to vector<8x256xf32>
    %6 = arith.mulf %4, %5 : vector<8x256xf32>
    %7 = vector.broadcast %1 : vector<1x256xf32> to vector<8x256xf32>
    %8 = arith.addf %7, %6 : vector<8x256xf32>
    %9 = vector.extract_strided_slice %0 {offsets = [0, 1], sizes = [8, 1], strides = [1, 1]} : vector<8x3xf32> to vector<8x1xf32>
    %c1 = arith.constant 1 : index
    %c0_5 = arith.constant 0 : index
    %10 = vector.load %arg2[%c1, %c0_5] : memref<3x256xf32, #tpu.memory_space<vmem>>, vector<1x256xf32>
    %11 = vector.broadcast %9 : vector<8x1xf32> to vector<8x256xf32>
    %12 = vector.broadcast %10 : vector<1x256xf32> to vector<8x256xf32>
    %13 = arith.mulf %11, %12 : vector<8x256xf32>
    %14 = arith.addf %8, %13 : vector<8x256xf32>
    %15 = vector.extract_strided_slice %0 {offsets = [0, 2], sizes = [8, 1], strides = [1, 1]} : vector<8x3xf32> to vector<8x1xf32>
    %c2 = arith.constant 2 : index
    %c0_6 = arith.constant 0 : index
    %16 = vector.load %arg2[%c2, %c0_6] : memref<3x256xf32, #tpu.memory_space<vmem>>, vector<1x256xf32>
    %17 = vector.broadcast %15 : vector<8x1xf32> to vector<8x256xf32>
    %18 = vector.broadcast %16 : vector<1x256xf32> to vector<8x256xf32>
    %19 = arith.mulf %17, %18 : vector<8x256xf32>
    %20 = arith.addf %14, %19 : vector<8x256xf32>
    %cst = arith.constant 0.000000e+00 : f32
    %21 = vector.broadcast %cst : f32 to vector<8x256xf32>
    %22 = arith.maximumf %20, %21 : vector<8x256xf32>
    %c0_7 = arith.constant 0 : index
    %c0_8 = arith.constant 0 : index
    %23 = vector.load %arg4[%c0_7, %c0_8] : memref<256x128xf32, #tpu.memory_space<vmem>>, vector<256x128xf32>
    %cst_9 = arith.constant dense<0.000000e+00> : vector<8x128xf32>
    %24 = tpu.matmul %22, %23, %cst_9 {dimension_numbers = #tpu.dot_dimension_numbers<[1], [0], [0], [1], [0, 0, 1, 1], [], []>} : vector<8x256xf32>, vector<256x128xf32>, vector<8x128xf32> -> vector<8x128xf32>
    %c0_10 = arith.constant 0 : index
    %c0_11 = arith.constant 0 : index
    %25 = vector.load %arg5[%c0_10, %c0_11] : memref<1x128xf32, #tpu.memory_space<vmem>>, vector<1x128xf32>
    %26 = vector.broadcast %25 : vector<1x128xf32> to vector<8x128xf32>
    %27 = arith.addf %24, %26 : vector<8x128xf32>
    %c0_12 = arith.constant 0 : index
    %c0_13 = arith.constant 0 : index
    %28 = vector.load %arg9[%c0_12, %c0_13] : memref<8x128xf32, #tpu.memory_space<vmem>>, vector<8x128xf32>
    tpu.vector_store %arg9[%c0_12, %c0_13], %27 {strides = array<i32>} : memref<8x128xf32, #tpu.memory_space<vmem>>, vector<8x128xf32>,
    %c0_14 = arith.constant 0 : index
    %c0_15 = arith.constant 0 : index
    %29 = vector.load %arg6[%c0_14, %c0_15] : memref<8x128xf32, #tpu.memory_space<vmem>>, vector<8x128xf32>
    %c0_16 = arith.constant 0 : index
    %c0_17 = arith.constant 0 : index
    %30 = vector.load %arg7[%c0_16, %c0_17] : memref<8x128xf32, #tpu.memory_space<vmem>>, vector<8x128xf32>
    %c0_18 = arith.constant 0 : index
    %c0_19 = arith.constant 0 : index
    %31 = vector.load %arg8[%c0_18, %c0_19] : memref<1x128xf32, #tpu.memory_space<vmem>>, vector<1x128xf32>
    %32 = vector.shape_cast %31 : vector<1x128xf32> to vector<1x128xf32>
    %33 = vector.broadcast %32 : vector<1x128xf32> to vector<8x128xf32>
    %cst_20 = arith.constant 1.000000e-01 : f32
    %34 = vector.broadcast %cst_20 : f32 to vector<8x128xf32>
    %35 = arith.mulf %27, %34 : vector<8x128xf32>
    %36 = arith.mulf %35, %29 : vector<8x128xf32>
    %37 = arith.addf %36, %30 : vector<8x128xf32>
    %cst_21 = arith.constant 2.000000e-01 : f32
    %38 = vector.broadcast %cst_21 : f32 to vector<8x128xf32>
    %39 = arith.mulf %27, %38 : vector<8x128xf32>
    %40 = math.exp %39 : vector<8x128xf32>
    %41 = arith.mulf %40, %29 : vector<8x128xf32>
    %42 = arith.negf %27 : vector<8x128xf32>
    %43 = math.exp %42 : vector<8x128xf32>
    %cst_22 = arith.constant 1.000000e+00 : f32
    %44 = vector.broadcast %cst_22 : f32 to vector<8x128xf32>
    %45 = arith.addf %44, %43 : vector<8x128xf32>
    %46 = arith.divf %44, %45 : vector<8x128xf32>
    %cst_23 = arith.constant 5.000000e-01 : f32
    %47 = vector.broadcast %cst_23 : f32 to vector<8x128xf32>
    %48 = arith.cmpf olt, %33, %47 : vector<8x128xf32>
    %cst_24 = arith.constant 1.500000e+00 : f32
    %49 = vector.broadcast %cst_24 : f32 to vector<8x128xf32>
    %50 = arith.cmpf olt, %33, %49 : vector<8x128xf32>
    %51 = arith.select %50, %41, %46 : vector<8x128xi1>, vector<8x128xf32>
    %52 = arith.select %48, %37, %51 : vector<8x128xi1>, vector<8x128xf32>
    %c0_25 = arith.constant 0 : index
    %c0_26 = arith.constant 0 : index
    %53 = vector.load %arg10[%c0_25, %c0_26] : memref<8x128xf32, #tpu.memory_space<vmem>>, vector<8x128xf32>
    tpu.vector_store %arg10[%c0_25, %c0_26], %52 {strides = array<i32>} : memref<8x128xf32, #tpu.memory_space<vmem>>, vector<8x128xf32>,
    return
  }
  func.func @transform_0(%arg0: i32) -> (i32, i32) {
    %c0_i32 = arith.constant 0 : i32
    %c0_i32_0 = arith.constant 0 : i32
    return %arg0, %c0_i32 : i32, i32
  }
  func.func @transform_1(%arg0: i32) -> (i32, i32) {
    %c0_i32 = arith.constant 0 : i32
    %c0_i32_0 = arith.constant 0 : i32
    %c0_i32_1 = arith.constant 0 : i32
    return %c0_i32, %c0_i32_0 : i32, i32
  }
  func.func @transform_2(%arg0: i32) -> (i32, i32) {
    %c0_i32 = arith.constant 0 : i32
    %c0_i32_0 = arith.constant 0 : i32
    %c0_i32_1 = arith.constant 0 : i32
    return %c0_i32, %c0_i32_0 : i32, i32
  }
  func.func @transform_3(%arg0: i32) -> (i32, i32) {
    %c0_i32 = arith.constant 0 : i32
    %c0_i32_0 = arith.constant 0 : i32
    %c0_i32_1 = arith.constant 0 : i32
    return %c0_i32, %c0_i32_0 : i32, i32
  }
  func.func @transform_4(%arg0: i32) -> (i32, i32) {
    %c0_i32 = arith.constant 0 : i32
    %c0_i32_0 = arith.constant 0 : i32
    %c0_i32_1 = arith.constant 0 : i32
    return %c0_i32, %c0_i32_0 : i32, i32
  }
  func.func @transform_5(%arg0: i32) -> (i32, i32) {
    %c0_i32 = arith.constant 0 : i32
    %c0_i32_0 = arith.constant 0 : i32
    return %arg0, %c0_i32 : i32, i32
  }
  func.func @transform_6(%arg0: i32) -> (i32, i32) {
    %c0_i32 = arith.constant 0 : i32
    %c0_i32_0 = arith.constant 0 : i32
    return %arg0, %c0_i32 : i32, i32
  }
  func.func @transform_7(%arg0: i32) -> (i32, i32) {
    %c0_i32 = arith.constant 0 : i32
    %c0_i32_0 = arith.constant 0 : i32
    %c0_i32_1 = arith.constant 0 : i32
    return %c0_i32, %c0_i32_0 : i32, i32
  }
  func.func @transform_8(%arg0: i32) -> (i32, i32) {
    %c0_i32 = arith.constant 0 : i32
    %c0_i32_0 = arith.constant 0 : i32
    return %arg0, %c0_i32 : i32, i32
  }
  func.func @transform_9(%arg0: i32) -> (i32, i32) {
    %c0_i32 = arith.constant 0 : i32
    %c0_i32_0 = arith.constant 0 : i32
    return %arg0, %c0_i32 : i32, i32
  }
}

</mosaic_0001>

<llo_original>
// kernel: td_net_forward.4
$region0: #{td_net_forward.4}
  #allocation0 [shape = 'u32[]', space=smem, size = 0x4, offset = 0x4, fixed_abs, tag = 'smem constant byte address 0x4 - core index']
  #allocation1 [shape = 'u32[72,128]{1,0:T(1,128)}', space=vmem, size = 0x9000, scoped, tag = 'internal scratch']
  %s0 = inlined_call_operand.vmem [shape: f32[512,3], index: 0, kind: input, shape index: {}]
  %s1 = inlined_call_operand.vmem [shape: f32[3,32], index: 1, kind: input, shape index: {}]
  %s2 = inlined_call_operand.vmem [shape: f32[1,32], index: 2, kind: input, shape index: {}]
  %s3 = inlined_call_operand.vmem [shape: f32[32,128], index: 3, kind: input, shape index: {}]
  %s4 = inlined_call_operand.vmem [shape: f32[1,128], index: 4, kind: input, shape index: {}]
  %s5 = inlined_call_operand.vmem [shape: f32[512,128], index: 5, kind: input, shape index: {}]
  %s6 = inlined_call_operand.vmem [shape: f32[512,128], index: 6, kind: input, shape index: {}]
  %s7 = inlined_call_operand.vmem [shape: f32[1,128], index: 7, kind: input, shape index: {}]
  %s8 = inlined_call_operand.vmem [shape: f32[512,128], index: 8, kind: output, shape index: {0}]
  %s9 = inlined_call_operand.vmem [shape: f32[512,128], index: 9, kind: output, shape index: {1}]
  %10 = xla_tuple %s8, %s9
  %s11 = sld [smem:[#allocation0]]
  $region73: #{td_net_forward.4} parent=0
    _
  %s13 = ssub.s32 1, %s11
  %s14 = scalar_select 0, %s13, %s11
  loop: start=0, step=1, limit=4
  $region2: #{td_net_forward.4} parent=0 // loop_pre_header
    _
  $region3: #{td_net_forward.4} parent=0 // loop_header
    %s16 = sphi 0, %s20
    %p17 = scmp.ge.s32.totalorder %s16, 4
    %s26 = sphi 0, %s28
    %s29 = sphi 0, %s26
    %s30 = sphi 0, %s29
    %s46 = sphi 0, %s30
    %s50 = sphi 0, %s50
    %s52 = sphi 0, %s50
    %s53 = sphi 0, %s52
    %s67 = sphi 0, %s53
    %s71 = sphi 0, %s71
    %s73 = sphi 0, %s71
    %s74 = sphi 0, %s73
    %s88 = sphi 0, %s74
    %s92 = sphi 0, %s92
    %s94 = sphi 0, %s92
    %s95 = sphi 0, %s94
    %s109 = sphi 0, %s95
    %s113 = sphi 0, %s113
    %s115 = sphi 0, %s113
    %s116 = sphi 0, %s115
    %s130 = sphi 0, %s116
    %s136 = sphi 0, %s138
    %s139 = sphi 0, %s136
    %s140 = sphi 0, %s139
    %s156 = sphi 0, %s140
    %s162 = sphi 0, %s164
    %s165 = sphi 0, %s162
    %s166 = sphi 0, %s165
    %s182 = sphi 0, %s166
    %s186 = sphi 0, %s186
    %s188 = sphi 0, %s186
    %s189 = sphi 0, %s188
    %s203 = sphi 0, %s189
    %s209 = sphi 0, %s211
    %s212 = sphi 0, %s209
    %s213 = sphi 0, %s212
    %s229 = sphi 0, %s213
    %s235 = sphi 0, %s237
    %s238 = sphi 0, %s235
    %s239 = sphi 0, %s238
    %s255 = sphi 0, %s239
  $region4: #{td_net_forward.4} parent=0 // loop_header_branch
    %19 = sbr.rel (%p17) target = $region8
  $region5: #{td_net_forward.4} parent=0 // loop_body
    %s21 = ssub.s32 %s16, 1
    %s22 = ssub.s32 %s16, 2
    %s23 = sadd.s32 %s16, 1
    %s24 = ssub.s32 %s16, %s23
    %p25 = scmp.eq.s32.totalorder %s24, 0
    %s27 = sadd.s32 %s26, 1
    %s28 = scalar_select %p25, %s26, %s27
    %p31 = pneg %p25
    %p32 = scmp.eq.s32.totalorder %s16, 1
    %p33 = por %p31, %p32
    %p34 = scmp.ne.s32.totalorder %s26, %s29
    %p35 = scmp.eq.s32.totalorder %s16, 0
    %p36 = por %p34, %p35
    %p37 = scmp.ne.s32.totalorder %s26, %s29
    %p38 = scmp.eq.s32.totalorder %s21, 1
    %p39 = por %p37, %p38
    %p40 = scmp.ne.s32.totalorder %s29, %s30
    %p41 = scmp.eq.s32.totalorder %s21, 0
    %p42 = por %p40, %p41
    %p43 = scmp.ne.s32.totalorder %s29, %s30
    %p44 = scmp.eq.s32.totalorder %s22, 1
    %p45 = por %p43, %p44
    %p47 = scmp.ne.s32.totalorder %s30, %s46
    %p48 = scmp.eq.s32.totalorder %s22, 0
    %p49 = por %p47, %p48
    %s51 = sadd.s32 %s50, 1
    %p54 = scmp.eq.s32.totalorder %s16, 1
    %p55 = scmp.ne.s32.totalorder %s50, %s52
    %p56 = scmp.eq.s32.totalorder %s16, 0
    %p57 = por %p55, %p56
    %p58 = scmp.ne.s32.totalorder %s50, %s52
    %p59 = scmp.eq.s32.totalorder %s21, 1
    %p60 = por %p58, %p59
    %p61 = scmp.ne.s32.totalorder %s52, %s53
    %p62 = scmp.eq.s32.totalorder %s21, 0
    %p63 = por %p61, %p62
    %p64 = scmp.ne.s32.totalorder %s52, %s53
    %p65 = scmp.eq.s32.totalorder %s22, 1
    %p66 = por %p64, %p65
    %p68 = scmp.ne.s32.totalorder %s53, %s67
    %p69 = scmp.eq.s32.totalorder %s22, 0
    %p70 = por %p68, %p69
    %s72 = sadd.s32 %s71, 1
    %p75 = scmp.eq.s32.totalorder %s16, 1
    %p76 = scmp.ne.s32.totalorder %s71, %s73
    %p77 = scmp.eq.s32.totalorder %s16, 0
    %p78 = por %p76, %p77
    %p79 = scmp.ne.s32.totalorder %s71, %s73
    %p80 = scmp.eq.s32.totalorder %s21, 1
    %p81 = por %p79, %p80
    %p82 = scmp.ne.s32.totalorder %s73, %s74
    %p83 = scmp.eq.s32.totalorder %s21, 0
    %p84 = por %p82, %p83
    %p85 = scmp.ne.s32.totalorder %s73, %s74
    %p86 = scmp.eq.s32.totalorder %s22, 1
    %p87 = por %p85, %p86
    %p89 = scmp.ne.s32.totalorder %s74, %s88
    %p90 = scmp.eq.s32.totalorder %s22, 0
    %p91 = por %p89, %p90
    %s93 = sadd.s32 %s92, 1
    %p96 = scmp.eq.s32.totalorder %s16, 1
    %p97 = scmp.ne.s32.totalorder %s92, %s94
    %p98 = scmp.eq.s32.totalorder %s16, 0
    %p99 = por %p97, %p98
    %p100 = scmp.ne.s32.totalorder %s92, %s94
    %p101 = scmp.eq.s32.totalorder %s21, 1
    %p102 = por %p100, %p101
    %p103 = scmp.ne.s32.totalorder %s94, %s95
    %p104 = scmp.eq.s32.totalorder %s21, 0
    %p105 = por %p103, %p104
    %p106 = scmp.ne.s32.totalorder %s94, %s95
    %p107 = scmp.eq.s32.totalorder %s22, 1
    %p108 = por %p106, %p107
    %p110 = scmp.ne.s32.totalorder %s95, %s109
    %p111 = scmp.eq.s32.totalorder %s22, 0
    %p112 = por %p110, %p111
    %s114 = sadd.s32 %s113, 1
    %p117 = scmp.eq.s32.totalorder %s16, 1
    %p118 = scmp.ne.s32.totalorder %s113, %s115
    %p119 = scmp.eq.s32.totalorder %s16, 0
    %p120 = por %p118, %p119
    %p121 = scmp.ne.s32.totalorder %s113, %s115
    %p122 = scmp.eq.s32.totalorder %s21, 1
    %p123 = por %p121, %p122
    %p124 = scmp.ne.s32.totalorder %s115, %s116
    %p125 = scmp.eq.s32.totalorder %s21, 0
    %p126 = por %p124, %p125
    %p127 = scmp.ne.s32.totalorder %s115, %s116
    %p128 = scmp.eq.s32.totalorder %s22, 1
    %p129 = por %p127, %p128
    %p131 = scmp.ne.s32.totalorder %s116, %s130
    %p132 = scmp.eq.s32.totalorder %s22, 0
    %p133 = por %p131, %p132
    %s134 = ssub.s32 %s16, %s23
    %p135 = scmp.eq.s32.totalorder %s134, 0
    %s137 = sadd.s32 %s136, 1
    %s138 = scalar_select %p135, %s136, %s137
    %p141 = pneg %p135
    %p142 = scmp.eq.s32.totalorder %s16, 1
    %p143 = por %p141, %p142
    %p144 = scmp.ne.s32.totalorder %s136, %s139
    %p145 = scmp.eq.s32.totalorder %s16, 0
    %p146 = por %p144, %p145
    %p147 = scmp.ne.s32.totalorder %s136, %s139
    %p148 = scmp.eq.s32.totalorder %s21, 1
    %p149 = por %p147, %p148
    %p150 = scmp.ne.s32.totalorder %s139, %s140
    %p151 = scmp.eq.s32.totalorder %s21, 0
    %p152 = por %p150, %p151
    %p153 = scmp.ne.s32.totalorder %s139, %s140
    %p154 = scmp.eq.s32.totalorder %s22, 1
    %p155 = por %p153, %p154
    %p157 = scmp.ne.s32.totalorder %s140, %s156
    %p158 = scmp.eq.s32.totalorder %s22, 0
    %p159 = por %p157, %p158
    %s160 = ssub.s32 %s16, %s23
    %p161 = scmp.eq.s32.totalorder %s160, 0
    %s163 = sadd.s32 %s162, 1
    %s164 = scalar_select %p161, %s162, %s163
    %p167 = pneg %p161
    %p168 = scmp.eq.s32.totalorder %s16, 1
    %p169 = por %p167, %p168
    %p170 = scmp.ne.s32.totalorder %s162, %s165
    %p171 = scmp.eq.s32.totalorder %s16, 0
    %p172 = por %p170, %p171
    %p173 = scmp.ne.s32.totalorder %s162, %s165
    %p174 = scmp.eq.s32.totalorder %s21, 1
    %p175 = por %p173, %p174
    %p176 = scmp.ne.s32.totalorder %s165, %s166
    %p177 = scmp.eq.s32.totalorder %s21, 0
    %p178 = por %p176, %p177
    %p179 = scmp.ne.s32.totalorder %s165, %s166
    %p180 = scmp.eq.s32.totalorder %s22, 1
    %p181 = por %p179, %p180
    %p183 = scmp.ne.s32.totalorder %s166, %s182
    %p184 = scmp.eq.s32.totalorder %s22, 0
    %p185 = por %p183, %p184
    %s187 = sadd.s32 %s186, 1
    %p190 = scmp.eq.s32.totalorder %s16, 1
    %p191 = scmp.ne.s32.totalorder %s186, %s188
    %p192 = scmp.eq.s32.totalorder %s16, 0
    %p193 = por %p191, %p192
    %p194 = scmp.ne.s32.totalorder %s186, %s188
    %p195 = scmp.eq.s32.totalorder %s21, 1
    %p196 = por %p194, %p195
    %p197 = scmp.ne.s32.totalorder %s188, %s189
    %p198 = scmp.eq.s32.totalorder %s21, 0
    %p199 = por %p197, %p198
    %p200 = scmp.ne.s32.totalorder %s188, %s189
    %p201 = scmp.eq.s32.totalorder %s22, 1
    %p202 = por %p200, %p201
    %p204 = scmp.ne.s32.totalorder %s189, %s203
    %p205 = scmp.eq.s32.totalorder %s22, 0
    %p206 = por %p204, %p205
    %s207 = ssub.s32 %s16, %s23
    %p208 = scmp.eq.s32.totalorder %s207, 0
    %s210 = sadd.s32 %s209, 1
    %s211 = scalar_select %p208, %s209, %s210
    %p214 = pneg %p208
    %p215 = scmp.eq.s32.totalorder %s16, 1
    %p216 = por %p214, %p215
    %p217 = scmp.ne.s32.totalorder %s209, %s212
    %p218 = scmp.eq.s32.totalorder %s16, 0
    %p219 = por %p217, %p218
    %p220 = scmp.ne.s32.totalorder %s209, %s212
    %p221 = scmp.eq.s32.totalorder %s21, 1
    %p222 = por %p220, %p221
    %p223 = scmp.ne.s32.totalorder %s212, %s213
    %p224 = scmp.eq.s32.totalorder %s21, 0
    %p225 = por %p223, %p224
    %p226 = scmp.ne.s32.totalorder %s212, %s213
    %p227 = scmp.eq.s32.totalorder %s22, 1
    %p228 = por %p226, %p227
    %p230 = scmp.ne.s32.totalorder %s213, %s229
    %p231 = scmp.eq.s32.totalorder %s22, 0
    %p232 = por %p230, %p231
    %s233 = ssub.s32 %s16, %s23
    %p234 = scmp.eq.s32.totalorder %s233, 0
    %s236 = sadd.s32 %s235, 1
    %s237 = scalar_select %p234, %s235, %s236
    %p240 = pneg %p234
    %p241 = scmp.eq.s32.totalorder %s16, 1
    %p242 = por %p240, %p241
    %p243 = scmp.ne.s32.totalorder %s235, %s238
    %p244 = scmp.eq.s32.totalorder %s16, 0
    %p245 = por %p243, %p244
    %p246 = scmp.ne.s32.totalorder %s235, %s238
    %p247 = scmp.eq.s32.totalorder %s21, 1
    %p248 = por %p246, %p247
    %p249 = scmp.ne.s32.totalorder %s238, %s239
    %p250 = scmp.eq.s32.totalorder %s21, 0
    %p251 = por %p249, %p250
    %p252 = scmp.ne.s32.totalorder %s238, %s239
    %p253 = scmp.eq.s32.totalorder %s22, 1
    %p254 = por %p252, %p253
    %p256 = scmp.ne.s32.totalorder %s239, %s255
    %p257 = scmp.eq.s32.totalorder %s22, 0
    %p258 = por %p256, %p257
    %p259 = scmp.le.s32.totalorder 1, %s16
    %p260 = scmp.lt.s32.totalorder %s16, 3
    %p261 = pnand %p259, %p260
    %p262 = pneg %p261
    // Predicated region
    $region9: #{td_net_forward.4} parent=5 // pred_check
      _
    $region10: #{td_net_forward.4} parent=5 // pred_check_branch
      %264 = sbr.rel (%p261) target = $region12
    $region11: #{td_net_forward.4} parent=5 // pred_region
      %s265 = ssub.s32 %s16, 1
      // Predicated region
      $region13: #{td_net_forward.4} parent=11 // pred_check
        %p266 = pneg %p63
      $region14: #{td_net_forward.4} parent=11 // pred_check_branch
        %268 = sbr.rel (%p266) target = $region16
      $region15: #{td_net_forward.4} parent=11 // pred_region
        _
      $region16: #{td_net_forward.4} parent=11 // pred_fallthru
        _
      // Predicated region
      $region17: #{td_net_forward.4} parent=11 // pred_check
        %p269 = pneg %p84
      $region18: #{td_net_forward.4} parent=11 // pred_check_branch
        %271 = sbr.rel (%p269) target = $region20
      $region19: #{td_net_forward.4} parent=11 // pred_region
        _
      $region20: #{td_net_forward.4} parent=11 // pred_fallthru
        _
      // Predicated region
      $region21: #{td_net_forward.4} parent=11 // pred_check
        %p272 = pneg %p105
      $region22: #{td_net_forward.4} parent=11 // pred_check_branch
        %274 = sbr.rel (%p272) target = $region24
      $region23: #{td_net_forward.4} parent=11 // pred_region
        _
      $region24: #{td_net_forward.4} parent=11 // pred_fallthru
        _
      // Predicated region
      $region25: #{td_net_forward.4} parent=11 // pred_check
        %p275 = pneg %p126
      $region26: #{td_net_forward.4} parent=11 // pred_check_branch
        %277 = sbr.rel (%p275) target = $region28
      $region27: #{td_net_forward.4} parent=11 // pred_region
        _
      $region28: #{td_net_forward.4} parent=11 // pred_fallthru
        _
      // Predicated region
      $region29: #{td_net_forward.4} parent=11 // pred_check
        %p278 = pneg %p199
      $region30: #{td_net_forward.4} parent=11 // pred_check_branch
        %280 = sbr.rel (%p278) target = $region32
      $region31: #{td_net_forward.4} parent=11 // pred_region
        _
      $region32: #{td_net_forward.4} parent=11 // pred_fallthru
        _
    $region12: #{td_net_forward.4} parent=5 // pred_fallthru
      _
    %p281 = scmp.lt.s32.totalorder %s16, 2
    // Predicated region
    $region33: #{td_net_forward.4} parent=5 // pred_check
      %p282 = pneg %p281
    $region34: #{td_net_forward.4} parent=5 // pred_check_branch
      %284 = sbr.rel (%p282) target = $region36
    $region35: #{td_net_forward.4} parent=5 // pred_region
      // Predicated region
      $region37: #{td_net_forward.4} parent=35 // pred_check
        %p285 = pneg %p36
      $region38: #{td_net_forward.4} parent=35 // pred_check_branch
        %287 = sbr.rel (%p285) target = $region40
      $region39: #{td_net_forward.4} parent=35 // pred_region
        %s288 = smul.u32 32, %s16
        %p289 = scmp.lt.s32.totalorder %s288, 63
        %s290 = scalar_select %p289, %s288, 63
        %s291 = smul.addr %s290, 8
        %s292 = scalar_lea.vmem %s0, %s291
        %s293 = smul.u32 32, %s16
      $region40: #{td_net_forward.4} parent=35 // pred_fallthru
        _
      // Predicated region
      $region41: #{td_net_forward.4} parent=35 // pred_check
        %p294 = pneg %p146
      $region42: #{td_net_forward.4} parent=35 // pred_check_branch
        %296 = sbr.rel (%p294) target = $region44
      $region43: #{td_net_forward.4} parent=35 // pred_region
        %s297 = smul.u32 32, %s16
        %p298 = scmp.lt.s32.totalorder %s297, 63
        %s299 = scalar_select %p298, %s297, 63
        %s300 = smul.addr %s299, 8
        %s301 = scalar_lea.vmem %s5, %s300
        %s302 = smul.u32 32, %s16
      $region44: #{td_net_forward.4} parent=35 // pred_fallthru
        _
      // Predicated region
      $region45: #{td_net_forward.4} parent=35 // pred_check
        %p303 = pneg %p172
      $region46: #{td_net_forward.4} parent=35 // pred_check_branch
        %305 = sbr.rel (%p303) target = $region48
      $region47: #{td_net_forward.4} parent=35 // pred_region
        %s306 = smul.u32 32, %s16
        %p307 = scmp.lt.s32.totalorder %s306, 63
        %s308 = scalar_select %p307, %s306, 63
        %s309 = smul.addr %s308, 8
        %s310 = scalar_lea.vmem %s6, %s309
        %s311 = smul.u32 32, %s16
      $region48: #{td_net_forward.4} parent=35 // pred_fallthru
        _
    $region36: #{td_net_forward.4} parent=5 // pred_fallthru
      _
    %p312 = scmp.le.s32.totalorder 1, %s16
    %p313 = scmp.lt.s32.totalorder %s16, 3
    %p314 = pnand %p312, %p313
    %p315 = pneg %p314
    // Predicated region
    $region49: #{td_net_forward.4} parent=5 // pred_check
      _
    $region50: #{td_net_forward.4} parent=5 // pred_check_branch
      %317 = sbr.rel (%p314) target = $region52
    $region51: #{td_net_forward.4} parent=5 // pred_region
      %s318 = ssub.s32 %s16, 1
      %s319 = smul.u32 32, %s21
      %p320 = scmp.lt.s32.totalorder %s319, 63
      %s321 = scalar_select %p320, %s319, 63
      %s322 = smul.addr %s321, 8
      %s323 = scalar_lea.vmem %s0, %s322
      %p324 = pneg %p42
      %p325 = pneg %p39
      %p326 = pneg %p63
      %p327 = pneg %p60
      %p328 = pneg %p84
      %p329 = pneg %p81
      %p330 = pneg %p105
      %p331 = pneg %p102
      %p332 = pneg %p126
      %p333 = pneg %p123
      %s334 = smul.u32 32, %s21
      %p335 = scmp.lt.s32.totalorder %s334, 63
      %s336 = scalar_select %p335, %s334, 63
      %s337 = smul.addr %s336, 8
      %s338 = scalar_lea.vmem %s5, %s337
      %p339 = pneg %p152
      %p340 = pneg %p149
      %s341 = smul.u32 32, %s21
      %p342 = scmp.lt.s32.totalorder %s341, 63
      %s343 = scalar_select %p342, %s341, 63
      %s344 = smul.addr %s343, 8
      %s345 = scalar_lea.vmem %s6, %s344
      %p346 = pneg %p178
      %p347 = pneg %p175
      %p348 = pneg %p199
      %p349 = pneg %p196
      %p350 = pneg %p225
      %p351 = pneg %p222
      %s352 = smul.u32 32, %s21
      %p353 = scmp.lt.s32.totalorder %s352, 63
      %s354 = scalar_select %p353, %s352, 63
      %s355 = smul.addr %s354, 8
      %s356 = scalar_lea.vmem %s8, %s355
      %p357 = pneg %p251
      %p358 = pneg %p248
      %s359 = smul.u32 32, %s21
      %p360 = scmp.lt.s32.totalorder %s359, 63
      %s361 = scalar_select %p360, %s359, 63
      %s362 = smul.addr %s361, 8
      %s363 = scalar_lea.vmem %s9, %s362
      %s364 = smul.u32 32, %s21
      %p365 = scmp.lt.s32.totalorder %s364, 63
      %s366 = scalar_select %p365, %s364, 63
      %s367 = smul.addr %s366, 8
      %s368 = scalar_lea.vmem %s0, %s367
      %s369 = smul.u32 32, %s21
      %s370 = smul.u32 32, %s21
      %p371 = scmp.lt.s32.totalorder %s370, 63
      %s372 = scalar_select %p371, %s370, 63
      %s373 = smul.addr %s372, 8
      %s374 = scalar_lea.vmem %s5, %s373
      %s375 = smul.u32 32, %s21
      %s376 = smul.u32 32, %s21
      %p377 = scmp.lt.s32.totalorder %s376, 63
      %s378 = scalar_select %p377, %s376, 63
      %s379 = smul.addr %s378, 8
      %s380 = scalar_lea.vmem %s6, %s379
      %s381 = smul.u32 32, %s21
      %s382 = smul.u32 32, %s21
      %p383 = scmp.lt.s32.totalorder %s382, 63
      %s384 = scalar_select %p383, %s382, 63
      %s385 = smul.addr %s384, 8
      %s386 = scalar_lea.vmem %s8, %s385
      %s387 = smul.u32 32, %s21
      %s388 = smul.u32 32, %s21
      %p389 = scmp.lt.s32.totalorder %s388, 63
      %s390 = scalar_select %p389, %s388, 63
      %s391 = smul.addr %s390, 8
      %s392 = scalar_lea.vmem %s9, %s391
      %s393 = smul.u32 32, %s21
      %v394 = vld [vmem:[%s368] sm:$0xff]
      %v395 = vld [vmem:[%s368 + $0x8] sm:$0xff]
      %v396 = vld [vmem:[%s368 + $0x10] sm:$0xff]
      %v397 = vld [vmem:[%s368 + $0x18] sm:$0xff]
      %v398 = vld [vmem:[%s368 + $0x20] sm:$0xff]
      %v399 = vld [vmem:[%s368 + $0x28] sm:$0xff]
      %v400 = vld [vmem:[%s368 + $0x30] sm:$0xff]
      %v401 = vld [vmem:[%s368 + $0x38] sm:$0xff]
      %v402 = vld [vmem:[%s368 + $0x40] sm:$0xff]
      %v403 = vld [vmem:[%s368 + $0x48] sm:$0xff]
      %v404 = vld [vmem:[%s368 + $0x50] sm:$0xff]
      %v405 = vld [vmem:[%s368 + $0x58] sm:$0xff]
      %v406 = vld [vmem:[%s368 + $0x60] sm:$0xff]
      %v407 = vld [vmem:[%s368 + $0x68] sm:$0xff]
      %v408 = vld [vmem:[%s368 + $0x70] sm:$0xff]
      %v409 = vld [vmem:[%s368 + $0x78] sm:$0xff]
      %v410 = vld [vmem:[%s368 + $0x80] sm:$0xff]
      %v411 = vld [vmem:[%s368 + $0x88] sm:$0xff]
      %v412 = vld [vmem:[%s368 + $0x90] sm:$0xff]
      %v413 = vld [vmem:[%s368 + $0x98] sm:$0xff]
      %v414 = vld [vmem:[%s368 + $0xa0] sm:$0xff]
      %v415 = vld [vmem:[%s368 + $0xa8] sm:$0xff]
      %v416 = vld [vmem:[%s368 + $0xb0] sm:$0xff]
      %v417 = vld [vmem:[%s368 + $0xb8] sm:$0xff]
      %v418 = vld [vmem:[%s368 + $0xc0] sm:$0xff]
      %v419 = vld [vmem:[%s368 + $0xc8] sm:$0xff]
      %v420 = vld [vmem:[%s368 + $0xd0] sm:$0xff]
      %v421 = vld [vmem:[%s368 + $0xd8] sm:$0xff]
      %v422 = vld [vmem:[%s368 + $0xe0] sm:$0xff]
      %v423 = vld [vmem:[%s368 + $0xe8] sm:$0xff]
      %v424 = vld [vmem:[%s368 + $0xf0] sm:$0xff]
      %v425 = vld [vmem:[%s368 + $0xf8] sm:$0xff]
      %v426 = vld [vmem:[%s2] sm:$0x1]
      %v427 = vld [vmem:[%s1] sm:$0x1]
      %429 = vset.pattern.permute.xlu0 0
      %430 = vperm.xlu0 %429, %v394
      %v431 = vpop.permute.xlu0 %430
      %434 = vset.pattern.permute.xlu0 0
      %435 = vperm.xlu0 %434, %v395
      %v436 = vpop.permute.xlu0 %435
      %439 = vset.pattern.permute.xlu0 0
      %440 = vperm.xlu0 %439, %v396
      %v441 = vpop.permute.xlu0 %440
      %444 = vset.pattern.permute.xlu0 0
      %445 = vperm.xlu0 %444, %v397
      %v446 = vpop.permute.xlu0 %445
      %449 = vset.pattern.permute.xlu0 0
      %450 = vperm.xlu0 %449, %v398
      %v451 = vpop.permute.xlu0 %450
      %454 = vset.pattern.permute.xlu0 0
      %455 = vperm.xlu0 %454, %v399
      %v456 = vpop.permute.xlu0 %455
      %459 = vset.pattern.permute.xlu0 0
      %460 = vperm.xlu0 %459, %v400
      %v461 = vpop.permute.xlu0 %460
      %464 = vset.pattern.permute.xlu0 0
      %465 = vperm.xlu0 %464, %v401
      %v466 = vpop.permute.xlu0 %465
      %469 = vset.pattern.permute.xlu0 0
      %470 = vperm.xlu0 %469, %v402
      %v471 = vpop.permute.xlu0 %470
      %474 = vset.pattern.permute.xlu0 0
      %475 = vperm.xlu0 %474, %v403
      %v476 = vpop.permute.xlu0 %475
      %479 = vset.pattern.permute.xlu0 0
      %480 = vperm.xlu0 %479, %v404
      %v481 = vpop.permute.xlu0 %480
      %484 = vset.pattern.permute.xlu0 0
      %485 = vperm.xlu0 %484, %v405
      %v486 = vpop.permute.xlu0 %485
      %489 = vset.pattern.permute.xlu0 0
      %490 = vperm.xlu0 %489, %v406
      %v491 = vpop.permute.xlu0 %490
      %494 = vset.pattern.permute.xlu0 0
      %495 = vperm.xlu0 %494, %v407
      %v496 = vpop.permute.xlu0 %495
      %499 = vset.pattern.permute.xlu0 0
      %500 = vperm.xlu0 %499, %v408
      %v501 = vpop.permute.xlu0 %500
      %504 = vset.pattern.permute.xlu0 0
      %505 = vperm.xlu0 %504, %v409
      %v506 = vpop.permute.xlu0 %505
      %509 = vset.pattern.permute.xlu0 0
      %510 = vperm.xlu0 %509, %v410
      %v511 = vpop.permute.xlu0 %510
      %514 = vset.pattern.permute.xlu0 0
      %515 = vperm.xlu0 %514, %v411
      %v516 = vpop.permute.xlu0 %515
      %519 = vset.pattern.permute.xlu0 0
      %520 = vperm.xlu0 %519, %v412
      %v521 = vpop.permute.xlu0 %520
      %524 = vset.pattern.permute.xlu0 0
      %525 = vperm.xlu0 %524, %v413
      %v526 = vpop.permute.xlu0 %525
      %529 = vset.pattern.permute.xlu0 0
      %530 = vperm.xlu0 %529, %v414
      %v531 = vpop.permute.xlu0 %530
      %534 = vset.pattern.permute.xlu0 0
      %535 = vperm.xlu0 %534, %v415
      %v536 = vpop.permute.xlu0 %535
      %539 = vset.pattern.permute.xlu0 0
      %540 = vperm.xlu0 %539, %v416
      %v541 = vpop.permute.xlu0 %540
      %544 = vset.pattern.permute.xlu0 0
      %545 = vperm.xlu0 %544, %v417
      %v546 = vpop.permute.xlu0 %545
      %549 = vset.pattern.permute.xlu0 0
      %550 = vperm.xlu0 %549, %v418
      %v551 = vpop.permute.xlu0 %550
      %554 = vset.pattern.permute.xlu0 0
      %555 = vperm.xlu0 %554, %v419
      %v556 = vpop.permute.xlu0 %555
      %559 = vset.pattern.permute.xlu0 0
      %560 = vperm.xlu0 %559, %v420
      %v561 = vpop.permute.xlu0 %560
      %564 = vset.pattern.permute.xlu0 0
      %565 = vperm.xlu0 %564, %v421
      %v566 = vpop.permute.xlu0 %565
      %569 = vset.pattern.permute.xlu0 0
      %570 = vperm.xlu0 %569, %v422
      %v571 = vpop.permute.xlu0 %570
      %574 = vset.pattern.permute.xlu0 0
      %575 = vperm.xlu0 %574, %v423
      %v576 = vpop.permute.xlu0 %575
      %579 = vset.pattern.permute.xlu0 0
      %580 = vperm.xlu0 %579, %v424
      %v581 = vpop.permute.xlu0 %580
      %584 = vset.pattern.permute.xlu0 0
      %585 = vperm.xlu0 %584, %v425
      %v586 = vpop.permute.xlu0 %585
      %v588 = vperm.slane %v427, 0
      %v589 = vmul.f32 %v431, %v588
      %v590 = vmul.f32 %v436, %v588
      %v591 = vmul.f32 %v441, %v588
      %v592 = vmul.f32 %v446, %v588
      %v593 = vmul.f32 %v451, %v588
      %v594 = vmul.f32 %v456, %v588
      %v595 = vmul.f32 %v461, %v588
      %v596 = vmul.f32 %v466, %v588
      %v597 = vmul.f32 %v471, %v588
      %v598 = vmul.f32 %v476, %v588
      %v599 = vmul.f32 %v481, %v588
      %v600 = vmul.f32 %v486, %v588
      %v601 = vmul.f32 %v491, %v588
      %v602 = vmul.f32 %v496, %v588
      %v603 = vmul.f32 %v501, %v588
      %v604 = vmul.f32 %v506, %v588
      %v605 = vmul.f32 %v511, %v588
      %v606 = vmul.f32 %v516, %v588
      %v607 = vmul.f32 %v521, %v588
      %v608 = vmul.f32 %v526, %v588
      %v609 = vmul.f32 %v531, %v588
      %v610 = vmul.f32 %v536, %v588
      %v611 = vmul.f32 %v541, %v588
      %v612 = vmul.f32 %v546, %v588
      %v613 = vmul.f32 %v551, %v588
      %v614 = vmul.f32 %v556, %v588
      %v615 = vmul.f32 %v561, %v588
      %v616 = vmul.f32 %v566, %v588
      %v617 = vmul.f32 %v571, %v588
      %v618 = vmul.f32 %v576, %v588
      %v619 = vmul.f32 %v581, %v588
      %v620 = vmul.f32 %v586, %v588
      %v622 = vperm.slane %v426, 0
      %v624 = vadd.f32 %v622, %v589
      %v625 = vadd.f32 %v622, %v590
      %v626 = vadd.f32 %v622, %v591
      %v627 = vadd.f32 %v622, %v592
      %v628 = vadd.f32 %v622, %v593
      %v629 = vadd.f32 %v622, %v594
      %v630 = vadd.f32 %v622, %v595
      %v631 = vadd.f32 %v622, %v596
      %v632 = vadd.f32 %v622, %v597
      %v633 = vadd.f32 %v622, %v598
      %v634 = vadd.f32 %v622, %v599
      %v635 = vadd.f32 %v622, %v600
      %v636 = vadd.f32 %v622, %v601
      %v637 = vadd.f32 %v622, %v602
      %v638 = vadd.f32 %v622, %v603
      %v639 = vadd.f32 %v622, %v604
      %v640 = vadd.f32 %v622, %v605
      %v641 = vadd.f32 %v622, %v606
      %v642 = vadd.f32 %v622, %v607
      %v643 = vadd.f32 %v622, %v608
      %v644 = vadd.f32 %v622, %v609
      %v645 = vadd.f32 %v622, %v610
      %v646 = vadd.f32 %v622, %v611
      %v647 = vadd.f32 %v622, %v612
      %v648 = vadd.f32 %v622, %v613
      %v649 = vadd.f32 %v622, %v614
      %v650 = vadd.f32 %v622, %v615
      %v651 = vadd.f32 %v622, %v616
      %v652 = vadd.f32 %v622, %v617
      %v653 = vadd.f32 %v622, %v618
      %v654 = vadd.f32 %v622, %v619
      %v655 = vadd.f32 %v622, %v620
      %v656 = vld [vmem:[%s1 + $0x1] sm:$0x1]
      %657 = vset.pattern.permute.xlu0 1
      %658 = vperm.xlu0 %657, %v394
      %v659 = vpop.permute.xlu0 %658
      %661 = vset.pattern.permute.xlu0 1
      %662 = vperm.xlu0 %661, %v395
      %v663 = vpop.permute.xlu0 %662
      %665 = vset.pattern.permute.xlu0 1
      %666 = vperm.xlu0 %665, %v396
      %v667 = vpop.permute.xlu0 %666
      %669 = vset.pattern.permute.xlu0 1
      %670 = vperm.xlu0 %669, %v397
      %v671 = vpop.permute.xlu0 %670
      %673 = vset.pattern.permute.xlu0 1
      %674 = vperm.xlu0 %673, %v398
      %v675 = vpop.permute.xlu0 %674
      %677 = vset.pattern.permute.xlu0 1
      %678 = vperm.xlu0 %677, %v399
      %v679 = vpop.permute.xlu0 %678
      %681 = vset.pattern.permute.xlu0 1
      %682 = vperm.xlu0 %681, %v400
      %v683 = vpop.permute.xlu0 %682
      %685 = vset.pattern.permute.xlu0 1
      %686 = vperm.xlu0 %685, %v401
      %v687 = vpop.permute.xlu0 %686
      %689 = vset.pattern.permute.xlu0 1
      %690 = vperm.xlu0 %689, %v402
      %v691 = vpop.permute.xlu0 %690
      %693 = vset.pattern.permute.xlu0 1
      %694 = vperm.xlu0 %693, %v403
      %v695 = vpop.permute.xlu0 %694
      %697 = vset.pattern.permute.xlu0 1
      %698 = vperm.xlu0 %697, %v404
      %v699 = vpop.permute.xlu0 %698
      %701 = vset.pattern.permute.xlu0 1
      %702 = vperm.xlu0 %701, %v405
      %v703 = vpop.permute.xlu0 %702
      %705 = vset.pattern.permute.xlu0 1
      %706 = vperm.xlu0 %705, %v406
      %v707 = vpop.permute.xlu0 %706
      %709 = vset.pattern.permute.xlu0 1
      %710 = vperm.xlu0 %709, %v407
      %v711 = vpop.permute.xlu0 %710
      %713 = vset.pattern.permute.xlu0 1
      %714 = vperm.xlu0 %713, %v408
      %v715 = vpop.permute.xlu0 %714
      %717 = vset.pattern.permute.xlu0 1
      %718 = vperm.xlu0 %717, %v409
      %v719 = vpop.permute.xlu0 %718
      %721 = vset.pattern.permute.xlu0 1
      %722 = vperm.xlu0 %721, %v410
      %v723 = vpop.permute.xlu0 %722
      %725 = vset.pattern.permute.xlu0 1
      %726 = vperm.xlu0 %725, %v411
      %v727 = vpop.permute.xlu0 %726
      %729 = vset.pattern.permute.xlu0 1
      %730 = vperm.xlu0 %729, %v412
      %v731 = vpop.permute.xlu0 %730
      %733 = vset.pattern.permute.xlu0 1
      %734 = vperm.xlu0 %733, %v413
      %v735 = vpop.permute.xlu0 %734
      %737 = vset.pattern.permute.xlu0 1
      %738 = vperm.xlu0 %737, %v414
      %v739 = vpop.permute.xlu0 %738
      %741 = vset.pattern.permute.xlu0 1
      %742 = vperm.xlu0 %741, %v415
      %v743 = vpop.permute.xlu0 %742
      %745 = vset.pattern.permute.xlu0 1
      %746 = vperm.xlu0 %745, %v416
      %v747 = vpop.permute.xlu0 %746
      %749 = vset.pattern.permute.xlu0 1
      %750 = vperm.xlu0 %749, %v417
      %v751 = vpop.permute.xlu0 %750
      %753 = vset.pattern.permute.xlu0 1
      %754 = vperm.xlu0 %753, %v418
      %v755 = vpop.permute.xlu0 %754
      %757 = vset.pattern.permute.xlu0 1
      %758 = vperm.xlu0 %757, %v419
      %v759 = vpop.permute.xlu0 %758
      %761 = vset.pattern.permute.xlu0 1
      %762 = vperm.xlu0 %761, %v420
      %v763 = vpop.permute.xlu0 %762
      %765 = vset.pattern.permute.xlu0 1
      %766 = vperm.xlu0 %765, %v421
      %v767 = vpop.permute.xlu0 %766
      %769 = vset.pattern.permute.xlu0 1
      %770 = vperm.xlu0 %769, %v422
      %v771 = vpop.permute.xlu0 %770
      %773 = vset.pattern.permute.xlu0 1
      %774 = vperm.xlu0 %773, %v423
      %v775 = vpop.permute.xlu0 %774
      %777 = vset.pattern.permute.xlu0 1
      %778 = vperm.xlu0 %777, %v424
      %v779 = vpop.permute.xlu0 %778
      %781 = vset.pattern.permute.xlu0 1
      %782 = vperm.xlu0 %781, %v425
      %v783 = vpop.permute.xlu0 %782
      %v785 = vperm.slane %v656, 0
      %v786 = vmul.f32 %v659, %v785
      %v787 = vmul.f32 %v663, %v785
      %v788 = vmul.f32 %v667, %v785
      %v789 = vmul.f32 %v671, %v785
      %v790 = vmul.f32 %v675, %v785
      %v791 = vmul.f32 %v679, %v785
      %v792 = vmul.f32 %v683, %v785
      %v793 = vmul.f32 %v687, %v785
      %v794 = vmul.f32 %v691, %v785
      %v795 = vmul.f32 %v695, %v785
      %v796 = vmul.f32 %v699, %v785
      %v797 = vmul.f32 %v703, %v785
      %v798 = vmul.f32 %v707, %v785
      %v799 = vmul.f32 %v711, %v785
      %v800 = vmul.f32 %v715, %v785
      %v801 = vmul.f32 %v719, %v785
      %v802 = vmul.f32 %v723, %v785
      %v803 = vmul.f32 %v727, %v785
      %v804 = vmul.f32 %v731, %v785
      %v805 = vmul.f32 %v735, %v785
      %v806 = vmul.f32 %v739, %v785
      %v807 = vmul.f32 %v743, %v785
      %v808 = vmul.f32 %v747, %v785
      %v809 = vmul.f32 %v751, %v785
      %v810 = vmul.f32 %v755, %v785
      %v811 = vmul.f32 %v759, %v785
      %v812 = vmul.f32 %v763, %v785
      %v813 = vmul.f32 %v767, %v785
      %v814 = vmul.f32 %v771, %v785
      %v815 = vmul.f32 %v775, %v785
      %v816 = vmul.f32 %v779, %v785
      %v817 = vmul.f32 %v783, %v785
      %v818 = vadd.f32 %v624, %v786
      %v819 = vadd.f32 %v625, %v787
      %v820 = vadd.f32 %v626, %v788
      %v821 = vadd.f32 %v627, %v789
      %v822 = vadd.f32 %v628, %v790
      %v823 = vadd.f32 %v629, %v791
      %v824 = vadd.f32 %v630, %v792
      %v825 = vadd.f32 %v631, %v793
      %v826 = vadd.f32 %v632, %v794
      %v827 = vadd.f32 %v633, %v795
      %v828 = vadd.f32 %v634, %v796
      %v829 = vadd.f32 %v635, %v797
      %v830 = vadd.f32 %v636, %v798
      %v831 = vadd.f32 %v637, %v799
      %v832 = vadd.f32 %v638, %v800
      %v833 = vadd.f32 %v639, %v801
      %v834 = vadd.f32 %v640, %v802
      %v835 = vadd.f32 %v641, %v803
      %v836 = vadd.f32 %v642, %v804
      %v837 = vadd.f32 %v643, %v805
      %v838 = vadd.f32 %v644, %v806
      %v839 = vadd.f32 %v645, %v807
      %v840 = vadd.f32 %v646, %v808
      %v841 = vadd.f32 %v647, %v809
      %v842 = vadd.f32 %v648, %v810
      %v843 = vadd.f32 %v649, %v811
      %v844 = vadd.f32 %v650, %v812
      %v845 = vadd.f32 %v651, %v813
      %v846 = vadd.f32 %v652, %v814
      %v847 = vadd.f32 %v653, %v815
      %v848 = vadd.f32 %v654, %v816
      %v849 = vadd.f32 %v655, %v817
      %v850 = vld [vmem:[%s1 + $0x2] sm:$0x1]
      %851 = vset.pattern.permute.xlu0 2
      %852 = vperm.xlu0 %851, %v394
      %v853 = vpop.permute.xlu0 %852
      %855 = vset.pattern.permute.xlu0 2
      %856 = vperm.xlu0 %855, %v395
      %v857 = vpop.permute.xlu0 %856
      %859 = vset.pattern.permute.xlu0 2
      %860 = vperm.xlu0 %859, %v396
      %v861 = vpop.permute.xlu0 %860
      %863 = vset.pattern.permute.xlu0 2
      %864 = vperm.xlu0 %863, %v397
      %v865 = vpop.permute.xlu0 %864
      %867 = vset.pattern.permute.xlu0 2
      %868 = vperm.xlu0 %867, %v398
      %v869 = vpop.permute.xlu0 %868
      %871 = vset.pattern.permute.xlu0 2
      %872 = vperm.xlu0 %871, %v399
      %v873 = vpop.permute.xlu0 %872
      %875 = vset.pattern.permute.xlu0 2
      %876 = vperm.xlu0 %875, %v400
      %v877 = vpop.permute.xlu0 %876
      %879 = vset.pattern.permute.xlu0 2
      %880 = vperm.xlu0 %879, %v401
      %v881 = vpop.permute.xlu0 %880
      %883 = vset.pattern.permute.xlu0 2
      %884 = vperm.xlu0 %883, %v402
      %v885 = vpop.permute.xlu0 %884
      %887 = vset.pattern.permute.xlu0 2
      %888 = vperm.xlu0 %887, %v403
      %v889 = vpop.permute.xlu0 %888
      %891 = vset.pattern.permute.xlu0 2
      %892 = vperm.xlu0 %891, %v404
      %v893 = vpop.permute.xlu0 %892
      %895 = vset.pattern.permute.xlu0 2
      %896 = vperm.xlu0 %895, %v405
      %v897 = vpop.permute.xlu0 %896
      %899 = vset.pattern.permute.xlu0 2
      %900 = vperm.xlu0 %899, %v406
      %v901 = vpop.permute.xlu0 %900
      %903 = vset.pattern.permute.xlu0 2
      %904 = vperm.xlu0 %903, %v407
      %v905 = vpop.permute.xlu0 %904
      %907 = vset.pattern.permute.xlu0 2
      %908 = vperm.xlu0 %907, %v408
      %v909 = vpop.permute.xlu0 %908
      %911 = vset.pattern.permute.xlu0 2
      %912 = vperm.xlu0 %911, %v409
      %v913 = vpop.permute.xlu0 %912
      %915 = vset.pattern.permute.xlu0 2
      %916 = vperm.xlu0 %915, %v410
      %v917 = vpop.permute.xlu0 %916
      %919 = vset.pattern.permute.xlu0 2
      %920 = vperm.xlu0 %919, %v411
      %v921 = vpop.permute.xlu0 %920
      %923 = vset.pattern.permute.xlu0 2
      %924 = vperm.xlu0 %923, %v412
      %v925 = vpop.permute.xlu0 %924
      %927 = vset.pattern.permute.xlu0 2
      %928 = vperm.xlu0 %927, %v413
      %v929 = vpop.permute.xlu0 %928
      %931 = vset.pattern.permute.xlu0 2
      %932 = vperm.xlu0 %931, %v414
      %v933 = vpop.permute.xlu0 %932
      %935 = vset.pattern.permute.xlu0 2
      %936 = vperm.xlu0 %935, %v415
      %v937 = vpop.permute.xlu0 %936
      %939 = vset.pattern.permute.xlu0 2
      %940 = vperm.xlu0 %939, %v416
      %v941 = vpop.permute.xlu0 %940
      %943 = vset.pattern.permute.xlu0 2
      %944 = vperm.xlu0 %943, %v417
      %v945 = vpop.permute.xlu0 %944
      %947 = vset.pattern.permute.xlu0 2
      %948 = vperm.xlu0 %947, %v418
      %v949 = vpop.permute.xlu0 %948
      %951 = vset.pattern.permute.xlu0 2
      %952 = vperm.xlu0 %951, %v419
      %v953 = vpop.permute.xlu0 %952
      %955 = vset.pattern.permute.xlu0 2
      %956 = vperm.xlu0 %955, %v420
      %v957 = vpop.permute.xlu0 %956
      %959 = vset.pattern.permute.xlu0 2
      %960 = vperm.xlu0 %959, %v421
      %v961 = vpop.permute.xlu0 %960
      %963 = vset.pattern.permute.xlu0 2
      %964 = vperm.xlu0 %963, %v422
      %v965 = vpop.permute.xlu0 %964
      %967 = vset.pattern.permute.xlu0 2
      %968 = vperm.xlu0 %967, %v423
      %v969 = vpop.permute.xlu0 %968
      %971 = vset.pattern.permute.xlu0 2
      %972 = vperm.xlu0 %971, %v424
      %v973 = vpop.permute.xlu0 %972
      %975 = vset.pattern.permute.xlu0 2
      %976 = vperm.xlu0 %975, %v425
      %v977 = vpop.permute.xlu0 %976
      %v979 = vperm.slane %v850, 0
      %v980 = vmul.f32 %v853, %v979
      %v981 = vmul.f32 %v857, %v979
      %v982 = vmul.f32 %v861, %v979
      %v983 = vmul.f32 %v865, %v979
      %v984 = vmul.f32 %v869, %v979
      %v985 = vmul.f32 %v873, %v979
      %v986 = vmul.f32 %v877, %v979
      %v987 = vmul.f32 %v881, %v979
      %v988 = vmul.f32 %v885, %v979
      %v989 = vmul.f32 %v889, %v979
      %v990 = vmul.f32 %v893, %v979
      %v991 = vmul.f32 %v897, %v979
      %v992 = vmul.f32 %v901, %v979
      %v993 = vmul.f32 %v905, %v979
      %v994 = vmul.f32 %v909, %v979
      %v995 = vmul.f32 %v913, %v979
      %v996 = vmul.f32 %v917, %v979
      %v997 = vmul.f32 %v921, %v979
      %v998 = vmul.f32 %v925, %v979
      %v999 = vmul.f32 %v929, %v979
      %v1000 = vmul.f32 %v933, %v979
      %v1001 = vmul.f32 %v937, %v979
      %v1002 = vmul.f32 %v941, %v979
      %v1003 = vmul.f32 %v945, %v979
      %v1004 = vmul.f32 %v949, %v979
      %v1005 = vmul.f32 %v953, %v979
      %v1006 = vmul.f32 %v957, %v979
      %v1007 = vmul.f32 %v961, %v979
      %v1008 = vmul.f32 %v965, %v979
      %v1009 = vmul.f32 %v969, %v979
      %v1010 = vmul.f32 %v973, %v979
      %v1011 = vmul.f32 %v977, %v979
      %v1012 = vadd.f32 %v818, %v980
      %v1013 = vadd.f32 %v819, %v981
      %v1014 = vadd.f32 %v820, %v982
      %v1015 = vadd.f32 %v821, %v983
      %v1016 = vadd.f32 %v822, %v984
      %v1017 = vadd.f32 %v823, %v985
      %v1018 = vadd.f32 %v824, %v986
      %v1019 = vadd.f32 %v825, %v987
      %v1020 = vadd.f32 %v826, %v988
      %v1021 = vadd.f32 %v827, %v989
      %v1022 = vadd.f32 %v828, %v990
      %v1023 = vadd.f32 %v829, %v991
      %v1024 = vadd.f32 %v830, %v992
      %v1025 = vadd.f32 %v831, %v993
      %v1026 = vadd.f32 %v832, %v994
      %v1027 = vadd.f32 %v833, %v995
      %v1028 = vadd.f32 %v834, %v996
      %v1029 = vadd.f32 %v835, %v997
      %v1030 = vadd.f32 %v836, %v998
      %v1031 = vadd.f32 %v837, %v999
      %v1032 = vadd.f32 %v838, %v1000
      %v1033 = vadd.f32 %v839, %v1001
      %v1034 = vadd.f32 %v840, %v1002
      %v1035 = vadd.f32 %v841, %v1003
      %v1036 = vadd.f32 %v842, %v1004
      %v1037 = vadd.f32 %v843, %v1005
      %v1038 = vadd.f32 %v844, %v1006
      %v1039 = vadd.f32 %v845, %v1007
      %v1040 = vadd.f32 %v846, %v1008
      %v1041 = vadd.f32 %v847, %v1009
      %v1042 = vadd.f32 %v848, %v1010
      %v1043 = vadd.f32 %v849, %v1011
      %v1044 = vmax.f32 %v1012, 0.0
      %v1045 = vmax.f32 %v1013, 0.0
      %v1046 = vmax.f32 %v1014, 0.0
      %v1047 = vmax.f32 %v1015, 0.0
      %v1048 = vmax.f32 %v1016, 0.0
      %v1049 = vmax.f32 %v1017, 0.0
      %v1050 = vmax.f32 %v1018, 0.0
      %v1051 = vmax.f32 %v1019, 0.0
      %v1052 = vmax.f32 %v1020, 0.0
      %v1053 = vmax.f32 %v1021, 0.0
      %v1054 = vmax.f32 %v1022, 0.0
      %v1055 = vmax.f32 %v1023, 0.0
      %v1056 = vmax.f32 %v1024, 0.0
      %v1057 = vmax.f32 %v1025, 0.0
      %v1058 = vmax.f32 %v1026, 0.0
      %v1059 = vmax.f32 %v1027, 0.0
      %v1060 = vmax.f32 %v1028, 0.0
      %v1061 = vmax.f32 %v1029, 0.0
      %v1062 = vmax.f32 %v1030, 0.0
      %v1063 = vmax.f32 %v1031, 0.0
      %v1064 = vmax.f32 %v1032, 0.0
      %v1065 = vmax.f32 %v1033, 0.0
      %v1066 = vmax.f32 %v1034, 0.0
      %v1067 = vmax.f32 %v1035, 0.0
      %v1068 = vmax.f32 %v1036, 0.0
      %v1069 = vmax.f32 %v1037, 0.0
      %v1070 = vmax.f32 %v1038, 0.0
      %v1071 = vmax.f32 %v1039, 0.0
      %v1072 = vmax.f32 %v1040, 0.0
      %v1073 = vmax.f32 %v1041, 0.0
      %v1074 = vmax.f32 %v1042, 0.0
      %v1075 = vmax.f32 %v1043, 0.0
      %v1076 = vld [vmem:[%s3] sm:$0xff]
      %v1077 = vld [vmem:[%s3 + $0x8] sm:$0xff]
      %v1078 = vld [vmem:[%s3 + $0x10] sm:$0xff]
      %v1079 = vld [vmem:[%s3 + $0x18] sm:$0xff]
      %v1080 = vld [vmem:[%s4] sm:$0x1]
      %v1082 = vperm.slane %v1080, 0
      %vm1084 = vcmask 261120
      %v1086 = vsel %vm1084, %v1044, 0
      %v1089 = vsel %vm1084, %v1045, 0
      %v1092 = vsel %vm1084, %v1046, 0
      %v1095 = vsel %vm1084, %v1047, 0
      %v1098 = vsel %vm1084, %v1048, 0
      %v1101 = vsel %vm1084, %v1049, 0
      %v1104 = vsel %vm1084, %v1050, 0
      %v1107 = vsel %vm1084, %v1051, 0
      %v1110 = vsel %vm1084, %v1052, 0
      %v1113 = vsel %vm1084, %v1053, 0
      %v1116 = vsel %vm1084, %v1054, 0
      %v1119 = vsel %vm1084, %v1055, 0
      %v1122 = vsel %vm1084, %v1056, 0
      %v1125 = vsel %vm1084, %v1057, 0
      %v1128 = vsel %vm1084, %v1058, 0
      %v1131 = vsel %vm1084, %v1059, 0
      %v1134 = vsel %vm1084, %v1060, 0
      %v1137 = vsel %vm1084, %v1061, 0
      %v1140 = vsel %vm1084, %v1062, 0
      %v1143 = vsel %vm1084, %v1063, 0
      %v1146 = vsel %vm1084, %v1064, 0
      %v1149 = vsel %vm1084, %v1065, 0
      %v1152 = vsel %vm1084, %v1066, 0
      %v1155 = vsel %vm1084, %v1067, 0
      %v1158 = vsel %vm1084, %v1068, 0
      %v1161 = vsel %vm1084, %v1069, 0
      %v1164 = vsel %vm1084, %v1070, 0
      %v1167 = vsel %vm1084, %v1071, 0
      %v1170 = vsel %vm1084, %v1072, 0
      %v1173 = vsel %vm1084, %v1073, 0
      %v1176 = vsel %vm1084, %v1074, 0
      %v1179 = vsel %vm1084, %v1075, 0
      %1181 = vmatpush.msra.mxu0 0.0
      %1182 = vmatpush.msra.mxu0 0.0
      %1183 = vmatpush.msra.mxu0 0.0
      %1184 = vmatpush.msra.mxu0 0.0
      %1185 = vmatpush.msra.mxu0 0.0
      %1186 = vmatpush.msra.mxu0 0.0
      %1187 = vmatpush.msra.mxu0 0.0
      %1188 = vmatpush.msra.mxu0 0.0
      %1189 = vmatpush.msra.mxu0 0.0
      %1190 = vmatpush.msra.mxu0 0.0
      %1191 = vmatpush.msra.mxu0 0.0
      %1192 = vmatpush.msra.mxu0 0.0
      %1193 = vmatpush.msra.mxu0 %v1079
      %1194 = vmatpush.msra.mxu0 %v1078
      %1195 = vmatpush.msra.mxu0 %v1077
      %1196 = vmatpush.msra.mxu0 %v1076
      %1197 = vmatmul.f32.gmra.mxu0 %v1086
      %v1198 = vpop.f32.mrf.mxu0
      %v1199 = vadd.f32 %v1082, %v1198
      %1200 = vmatmul.f32.gmra.mxu0 %v1089
      %v1201 = vpop.f32.mrf.mxu0
      %v1202 = vadd.f32 %v1082, %v1201
      %1203 = vmatmul.f32.gmra.mxu0 %v1092
      %v1204 = vpop.f32.mrf.mxu0
      %v1205 = vadd.f32 %v1082, %v1204
      %1206 = vmatmul.f32.gmra.mxu0 %v1095
      %v1207 = vpop.f32.mrf.mxu0
      %v1208 = vadd.f32 %v1082, %v1207
      %1209 = vmatmul.f32.gmra.mxu0 %v1098
      %v1210 = vpop.f32.mrf.mxu0
      %v1211 = vadd.f32 %v1082, %v1210
      %1212 = vmatmul.f32.gmra.mxu0 %v1101
      %v1213 = vpop.f32.mrf.mxu0
      %v1214 = vadd.f32 %v1082, %v1213
      %1215 = vmatmul.f32.gmra.mxu0 %v1104
      %v1216 = vpop.f32.mrf.mxu0
      %v1217 = vadd.f32 %v1082, %v1216
      %1218 = vmatmul.f32.gmra.mxu0 %v1107
      %v1219 = vpop.f32.mrf.mxu0
      %v1220 = vadd.f32 %v1082, %v1219
      %1221 = vmatmul.f32.gmra.mxu0 %v1110
      %v1222 = vpop.f32.mrf.mxu0
      %v1223 = vadd.f32 %v1082, %v1222
      %1224 = vmatmul.f32.gmra.mxu0 %v1113
      %v1225 = vpop.f32.mrf.mxu0
      %v1226 = vadd.f32 %v1082, %v1225
      %1227 = vmatmul.f32.gmra.mxu0 %v1116
      %v1228 = vpop.f32.mrf.mxu0
      %v1229 = vadd.f32 %v1082, %v1228
      %1230 = vmatmul.f32.gmra.mxu0 %v1119
      %v1231 = vpop.f32.mrf.mxu0
      %v1232 = vadd.f32 %v1082, %v1231
      %1233 = vmatmul.f32.gmra.mxu0 %v1122
      %v1234 = vpop.f32.mrf.mxu0
      %v1235 = vadd.f32 %v1082, %v1234
      %1236 = vmatmul.f32.gmra.mxu0 %v1125
      %v1237 = vpop.f32.mrf.mxu0
      %v1238 = vadd.f32 %v1082, %v1237
      %1239 = vmatmul.f32.gmra.mxu0 %v1128
      %v1240 = vpop.f32.mrf.mxu0
      %v1241 = vadd.f32 %v1082, %v1240
      %1242 = vmatmul.f32.gmra.mxu0 %v1131
      %v1243 = vpop.f32.mrf.mxu0
      %v1244 = vadd.f32 %v1082, %v1243
      %1245 = vmatmul.f32.gmra.mxu0 %v1134
      %v1246 = vpop.f32.mrf.mxu0
      %v1247 = vadd.f32 %v1082, %v1246
      %1248 = vmatmul.f32.gmra.mxu0 %v1137
      %v1249 = vpop.f32.mrf.mxu0
      %v1250 = vadd.f32 %v1082, %v1249
      %1251 = vmatmul.f32.gmra.mxu0 %v1140
      %v1252 = vpop.f32.mrf.mxu0
      %v1253 = vadd.f32 %v1082, %v1252
      %1254 = vmatmul.f32.gmra.mxu0 %v1143
      %v1255 = vpop.f32.mrf.mxu0
      %v1256 = vadd.f32 %v1082, %v1255
      %1257 = vmatmul.f32.gmra.mxu0 %v1146
      %v1258 = vpop.f32.mrf.mxu0
      %v1259 = vadd.f32 %v1082, %v1258
      %1260 = vmatmul.f32.gmra.mxu0 %v1149
      %v1261 = vpop.f32.mrf.mxu0
      %v1262 = vadd.f32 %v1082, %v1261
      %1263 = vmatmul.f32.gmra.mxu0 %v1152
      %v1264 = vpop.f32.mrf.mxu0
      %v1265 = vadd.f32 %v1082, %v1264
      %1266 = vmatmul.f32.gmra.mxu0 %v1155
      %v1267 = vpop.f32.mrf.mxu0
      %v1268 = vadd.f32 %v1082, %v1267
      %1269 = vmatmul.f32.gmra.mxu0 %v1158
      %v1270 = vpop.f32.mrf.mxu0
      %v1271 = vadd.f32 %v1082, %v1270
      %1272 = vmatmul.f32.gmra.mxu0 %v1161
      %v1273 = vpop.f32.mrf.mxu0
      %v1274 = vadd.f32 %v1082, %v1273
      %1275 = vmatmul.f32.gmra.mxu0 %v1164
      %v1276 = vpop.f32.mrf.mxu0
      %v1277 = vadd.f32 %v1082, %v1276
      %1278 = vmatmul.f32.gmra.mxu0 %v1167
      %v1279 = vpop.f32.mrf.mxu0
      %v1280 = vadd.f32 %v1082, %v1279
      %1281 = vmatmul.f32.gmra.mxu0 %v1170
      %v1282 = vpop.f32.mrf.mxu0
      %v1283 = vadd.f32 %v1082, %v1282
      %1284 = vmatmul.f32.gmra.mxu0 %v1173
      %v1285 = vpop.f32.mrf.mxu0
      %v1286 = vadd.f32 %v1082, %v1285
      %1287 = vmatmul.f32.gmra.mxu0 %v1176
      %v1288 = vpop.f32.mrf.mxu0
      %v1289 = vadd.f32 %v1082, %v1288
      %1290 = vmatmul.f32.gmra.mxu0 %v1179
      %v1291 = vpop.f32.mrf.mxu0
      %v1292 = vadd.f32 %v1082, %v1291
      %1293 = vdwg.mxu0
      %1294 = vst [vmem:[%s386] sm:$0xff] %v1199
      %1295 = vst [vmem:[%s386 + $0x8] sm:$0xff] %v1202
      %1296 = vst [vmem:[%s386 + $0x10] sm:$0xff] %v1205
      %1297 = vst [vmem:[%s386 + $0x18] sm:$0xff] %v1208
      %1298 = vst [vmem:[%s386 + $0x20] sm:$0xff] %v1211
      %1299 = vst [vmem:[%s386 + $0x28] sm:$0xff] %v1214
      %1300 = vst [vmem:[%s386 + $0x30] sm:$0xff] %v1217
      %1301 = vst [vmem:[%s386 + $0x38] sm:$0xff] %v1220
      %1302 = vst [vmem:[%s386 + $0x40] sm:$0xff] %v1223
      %1303 = vst [vmem:[%s386 + $0x48] sm:$0xff] %v1226
      %1304 = vst [vmem:[%s386 + $0x50] sm:$0xff] %v1229
      %1305 = vst [vmem:[%s386 + $0x58] sm:$0xff] %v1232
      %1306 = vst [vmem:[%s386 + $0x60] sm:$0xff] %v1235
      %1307 = vst [vmem:[%s386 + $0x68] sm:$0xff] %v1238
      %1308 = vst [vmem:[%s386 + $0x70] sm:$0xff] %v1241
      %1309 = vst [vmem:[%s386 + $0x78] sm:$0xff] %v1244
      %1310 = vst [vmem:[%s386 + $0x80] sm:$0xff] %v1247
      %1311 = vst [vmem:[%s386 + $0x88] sm:$0xff] %v1250
      %1312 = vst [vmem:[%s386 + $0x90] sm:$0xff] %v1253
      %1313 = vst [vmem:[%s386 + $0x98] sm:$0xff] %v1256
      %1314 = vst [vmem:[%s386 + $0xa0] sm:$0xff] %v1259
      %1315 = vst [vmem:[%s386 + $0xa8] sm:$0xff] %v1262
      %1316 = vst [vmem:[%s386 + $0xb0] sm:$0xff] %v1265
      %1317 = vst [vmem:[%s386 + $0xb8] sm:$0xff] %v1268
      %1318 = vst [vmem:[%s386 + $0xc0] sm:$0xff] %v1271
      %1319 = vst [vmem:[%s386 + $0xc8] sm:$0xff] %v1274
      %1320 = vst [vmem:[%s386 + $0xd0] sm:$0xff] %v1277
      %1321 = vst [vmem:[%s386 + $0xd8] sm:$0xff] %v1280
      %1322 = vst [vmem:[%s386 + $0xe0] sm:$0xff] %v1283
      %1323 = vst [vmem:[%s386 + $0xe8] sm:$0xff] %v1286
      %1324 = vst [vmem:[%s386 + $0xf0] sm:$0xff] %v1289
      %1325 = vst [vmem:[%s386 + $0xf8] sm:$0xff] %v1292
      %v1326 = vld [vmem:[%s374] sm:$0xff]
      %v1327 = vld [vmem:[%s374 + $0x8] sm:$0xff]
      %v1328 = vld [vmem:[%s374 + $0x10] sm:$0xff]
      %v1329 = vld [vmem:[%s374 + $0x18] sm:$0xff]
      %v1330 = vld [vmem:[%s374 + $0x20] sm:$0xff]
      %v1331 = vld [vmem:[%s374 + $0x28] sm:$0xff]
      %v1332 = vld [vmem:[%s374 + $0x30] sm:$0xff]
      %v1333 = vld [vmem:[%s374 + $0x38] sm:$0xff]
      %v1334 = vld [vmem:[%s374 + $0x40] sm:$0xff]
      %v1335 = vld [vmem:[%s374 + $0x48] sm:$0xff]
      %v1336 = vld [vmem:[%s374 + $0x50] sm:$0xff]
      %v1337 = vld [vmem:[%s374 + $0x58] sm:$0xff]
      %v1338 = vld [vmem:[%s374 + $0x60] sm:$0xff]
      %v1339 = vld [vmem:[%s374 + $0x68] sm:$0xff]
      %v1340 = vld [vmem:[%s374 + $0x70] sm:$0xff]
      %v1341 = vld [vmem:[%s374 + $0x78] sm:$0xff]
      %v1342 = vld [vmem:[%s374 + $0x80] sm:$0xff]
      %v1343 = vld [vmem:[%s374 + $0x88] sm:$0xff]
      %v1344 = vld [vmem:[%s374 + $0x90] sm:$0xff]
      %v1345 = vld [vmem:[%s374 + $0x98] sm:$0xff]
      %v1346 = vld [vmem:[%s374 + $0xa0] sm:$0xff]
      %v1347 = vld [vmem:[%s374 + $0xa8] sm:$0xff]
      %v1348 = vld [vmem:[%s374 + $0xb0] sm:$0xff]
      %v1349 = vld [vmem:[%s374 + $0xb8] sm:$0xff]
      %v1350 = vld [vmem:[%s374 + $0xc0] sm:$0xff]
      %v1351 = vld [vmem:[%s374 + $0xc8] sm:$0xff]
      %v1352 = vld [vmem:[%s374 + $0xd0] sm:$0xff]
      %v1353 = vld [vmem:[%s374 + $0xd8] sm:$0xff]
      %v1354 = vld [vmem:[%s374 + $0xe0] sm:$0xff]
      %v1355 = vld [vmem:[%s374 + $0xe8] sm:$0xff]
      %v1356 = vld [vmem:[%s374 + $0xf0] sm:$0xff]
      %v1357 = vld [vmem:[%s374 + $0xf8] sm:$0xff]
      %v1358 = vld [vmem:[%s380] sm:$0xff]
      %v1359 = vld [vmem:[%s380 + $0x8] sm:$0xff]
      %v1360 = vld [vmem:[%s380 + $0x10] sm:$0xff]
      %v1361 = vld [vmem:[%s380 + $0x18] sm:$0xff]
      %v1362 = vld [vmem:[%s380 + $0x20] sm:$0xff]
      %v1363 = vld [vmem:[%s380 + $0x28] sm:$0xff]
      %v1364 = vld [vmem:[%s380 + $0x30] sm:$0xff]
      %v1365 = vld [vmem:[%s380 + $0x38] sm:$0xff]
      %v1366 = vld [vmem:[%s380 + $0x40] sm:$0xff]
      %v1367 = vld [vmem:[%s380 + $0x48] sm:$0xff]
      %v1368 = vld [vmem:[%s380 + $0x50] sm:$0xff]
      %v1369 = vld [vmem:[%s380 + $0x58] sm:$0xff]
      %v1370 = vld [vmem:[%s380 + $0x60] sm:$0xff]
      %v1371 = vld [vmem:[%s380 + $0x68] sm:$0xff]
      %v1372 = vld [vmem:[%s380 + $0x70] sm:$0xff]
      %v1373 = vld [vmem:[%s380 + $0x78] sm:$0xff]
      %v1374 = vld [vmem:[%s380 + $0x80] sm:$0xff]
      %v1375 = vld [vmem:[%s380 + $0x88] sm:$0xff]
      %v1376 = vld [vmem:[%s380 + $0x90] sm:$0xff]
      %v1377 = vld [vmem:[%s380 + $0x98] sm:$0xff]
      %v1378 = vld [vmem:[%s380 + $0xa0] sm:$0xff]
      %v1379 = vld [vmem:[%s380 + $0xa8] sm:$0xff]
      %v1380 = vld [vmem:[%s380 + $0xb0] sm:$0xff]
      %v1381 = vld [vmem:[%s380 + $0xb8] sm:$0xff]
      %v1382 = vld [vmem:[%s380 + $0xc0] sm:$0xff]
      %v1383 = vld [vmem:[%s380 + $0xc8] sm:$0xff]
      %v1384 = vld [vmem:[%s380 + $0xd0] sm:$0xff]
      %v1385 = vld [vmem:[%s380 + $0xd8] sm:$0xff]
      %v1386 = vld [vmem:[%s380 + $0xe0] sm:$0xff]
      %v1387 = vld [vmem:[%s380 + $0xe8] sm:$0xff]
      %v1388 = vld [vmem:[%s380 + $0xf0] sm:$0xff]
      %v1389 = vld [vmem:[%s380 + $0xf8] sm:$0xff]
      %v1390 = vld [vmem:[%s7] sm:$0x1]
      %v1392 = vperm.slane %v1390, 0
      %v1394 = vmul.f32 %v1199, 0.1
      %v1395 = vmul.f32 %v1202, 0.1
      %v1396 = vmul.f32 %v1205, 0.1
      %v1397 = vmul.f32 %v1208, 0.1
      %v1398 = vmul.f32 %v1211, 0.1
      %v1399 = vmul.f32 %v1214, 0.1
      %v1400 = vmul.f32 %v1217, 0.1
      %v1401 = vmul.f32 %v1220, 0.1
      %v1402 = vmul.f32 %v1223, 0.1
      %v1403 = vmul.f32 %v1226, 0.1
      %v1404 = vmul.f32 %v1229, 0.1
      %v1405 = vmul.f32 %v1232, 0.1
      %v1406 = vmul.f32 %v1235, 0.1
      %v1407 = vmul.f32 %v1238, 0.1
      %v1408 = vmul.f32 %v1241, 0.1
      %v1409 = vmul.f32 %v1244, 0.1
      %v1410 = vmul.f32 %v1247, 0.1
      %v1411 = vmul.f32 %v1250, 0.1
      %v1412 = vmul.f32 %v1253, 0.1
      %v1413 = vmul.f32 %v1256, 0.1
      %v1414 = vmul.f32 %v1259, 0.1
      %v1415 = vmul.f32 %v1262, 0.1
      %v1416 = vmul.f32 %v1265, 0.1
      %v1417 = vmul.f32 %v1268, 0.1
      %v1418 = vmul.f32 %v1271, 0.1
      %v1419 = vmul.f32 %v1274, 0.1
      %v1420 = vmul.f32 %v1277, 0.1
      %v1421 = vmul.f32 %v1280, 0.1
      %v1422 = vmul.f32 %v1283, 0.1
      %v1423 = vmul.f32 %v1286, 0.1
      %v1424 = vmul.f32 %v1289, 0.1
      %v1425 = vmul.f32 %v1292, 0.1
      %v1426 = vmul.f32 %v1394, %v1326
      %v1427 = vmul.f32 %v1395, %v1327
      %v1428 = vmul.f32 %v1396, %v1328
      %v1429 = vmul.f32 %v1397, %v1329
      %v1430 = vmul.f32 %v1398, %v1330
      %v1431 = vmul.f32 %v1399, %v1331
      %v1432 = vmul.f32 %v1400, %v1332
      %v1433 = vmul.f32 %v1401, %v1333
      %v1434 = vmul.f32 %v1402, %v1334
      %v1435 = vmul.f32 %v1403, %v1335
      %v1436 = vmul.f32 %v1404, %v1336
      %v1437 = vmul.f32 %v1405, %v1337
      %v1438 = vmul.f32 %v1406, %v1338
      %v1439 = vmul.f32 %v1407, %v1339
      %v1440 = vmul.f32 %v1408, %v1340
      %v1441 = vmul.f32 %v1409, %v1341
      %v1442 = vmul.f32 %v1410, %v1342
      %v1443 = vmul.f32 %v1411, %v1343
      %v1444 = vmul.f32 %v1412, %v1344
      %v1445 = vmul.f32 %v1413, %v1345
      %v1446 = vmul.f32 %v1414, %v1346
      %v1447 = vmul.f32 %v1415, %v1347
      %v1448 = vmul.f32 %v1416, %v1348
      %v1449 = vmul.f32 %v1417, %v1349
      %v1450 = vmul.f32 %v1418, %v1350
      %v1451 = vmul.f32 %v1419, %v1351
      %v1452 = vmul.f32 %v1420, %v1352
      %v1453 = vmul.f32 %v1421, %v1353
      %v1454 = vmul.f32 %v1422, %v1354
      %v1455 = vmul.f32 %v1423, %v1355
      %v1456 = vmul.f32 %v1424, %v1356
      %v1457 = vmul.f32 %v1425, %v1357
      %v1458 = vadd.f32 %v1426, %v1358
      %v1459 = vadd.f32 %v1427, %v1359
      %v1460 = vadd.f32 %v1428, %v1360
      %v1461 = vadd.f32 %v1429, %v1361
      %v1462 = vadd.f32 %v1430, %v1362
      %v1463 = vadd.f32 %v1431, %v1363
      %v1464 = vadd.f32 %v1432, %v1364
      %v1465 = vadd.f32 %v1433, %v1365
      %v1466 = vadd.f32 %v1434, %v1366
      %v1467 = vadd.f32 %v1435, %v1367
      %v1468 = vadd.f32 %v1436, %v1368
      %v1469 = vadd.f32 %v1437, %v1369
      %v1470 = vadd.f32 %v1438, %v1370
      %v1471 = vadd.f32 %v1439, %v1371
      %v1472 = vadd.f32 %v1440, %v1372
      %v1473 = vadd.f32 %v1441, %v1373
      %v1474 = vadd.f32 %v1442, %v1374
      %v1475 = vadd.f32 %v1443, %v1375
      %v1476 = vadd.f32 %v1444, %v1376
      %v1477 = vadd.f32 %v1445, %v1377
      %v1478 = vadd.f32 %v1446, %v1378
      %v1479 = vadd.f32 %v1447, %v1379
      %v1480 = vadd.f32 %v1448, %v1380
      %v1481 = vadd.f32 %v1449, %v1381
      %v1482 = vadd.f32 %v1450, %v1382
      %v1483 = vadd.f32 %v1451, %v1383
      %v1484 = vadd.f32 %v1452, %v1384
      %v1485 = vadd.f32 %v1453, %v1385
      %v1486 = vadd.f32 %v1454, %v1386
      %v1487 = vadd.f32 %v1455, %v1387
      %v1488 = vadd.f32 %v1456, %v1388
      %v1489 = vadd.f32 %v1457, %v1389
      %v1490 = vmul.f32 %v1199, 0.2
      %v1491 = vmul.f32 %v1202, 0.2
      %v1492 = vmul.f32 %v1205, 0.2
      %v1493 = vmul.f32 %v1208, 0.2
      %v1494 = vmul.f32 %v1211, 0.2
      %v1495 = vmul.f32 %v1214, 0.2
      %v1496 = vmul.f32 %v1217, 0.2
      %v1497 = vmul.f32 %v1220, 0.2
      %v1498 = vmul.f32 %v1223, 0.2
      %v1499 = vmul.f32 %v1226, 0.2
      %v1500 = vmul.f32 %v1229, 0.2
      %v1501 = vmul.f32 %v1232, 0.2
      %v1502 = vmul.f32 %v1235, 0.2
      %v1503 = vmul.f32 %v1238, 0.2
      %v1504 = vmul.f32 %v1241, 0.2
      %v1505 = vmul.f32 %v1244, 0.2
      %v1506 = vmul.f32 %v1247, 0.2
      %v1507 = vmul.f32 %v1250, 0.2
      %v1508 = vmul.f32 %v1253, 0.2
      %v1509 = vmul.f32 %v1256, 0.2
      %v1510 = vmul.f32 %v1259, 0.2
      %v1511 = vmul.f32 %v1262, 0.2
      %v1512 = vmul.f32 %v1265, 0.2
      %v1513 = vmul.f32 %v1268, 0.2
      %v1514 = vmul.f32 %v1271, 0.2
      %v1515 = vmul.f32 %v1274, 0.2
      %v1516 = vmul.f32 %v1277, 0.2
      %v1517 = vmul.f32 %v1280, 0.2
      %v1518 = vmul.f32 %v1283, 0.2
      %v1519 = vmul.f32 %v1286, 0.2
      %v1520 = vmul.f32 %v1289, 0.2
      %v1521 = vmul.f32 %v1292, 0.2
      %v1522 = vmul.f32 %v1490, 1.442695
      %v1523 = vpow.pop %v1522
      %v1524 = vmul.f32 %v1491, 1.442695
      %v1525 = vpow.pop %v1524
      %v1526 = vmul.f32 %v1492, 1.442695
      %v1527 = vpow.pop %v1526
      %v1528 = vmul.f32 %v1493, 1.442695
      %v1529 = vpow.pop %v1528
      %v1530 = vmul.f32 %v1494, 1.442695
      %v1531 = vpow.pop %v1530
      %v1532 = vmul.f32 %v1495, 1.442695
      %v1533 = vpow.pop %v1532
      %v1534 = vmul.f32 %v1496, 1.442695
      %v1535 = vpow.pop %v1534
      %v1536 = vmul.f32 %v1497, 1.442695
      %v1537 = vpow.pop %v1536
      %v1538 = vmul.f32 %v1498, 1.442695
      %v1539 = vpow.pop %v1538
      %v1540 = vmul.f32 %v1499, 1.442695
      %v1541 = vpow.pop %v1540
      %v1542 = vmul.f32 %v1500, 1.442695
      %v1543 = vpow.pop %v1542
      %v1544 = vmul.f32 %v1501, 1.442695
      %v1545 = vpow.pop %v1544
      %v1546 = vmul.f32 %v1502, 1.442695
      %v1547 = vpow.pop %v1546
      %v1548 = vmul.f32 %v1503, 1.442695
      %v1549 = vpow.pop %v1548
      %v1550 = vmul.f32 %v1504, 1.442695
      %v1551 = vpow.pop %v1550
      %v1552 = vmul.f32 %v1505, 1.442695
      %v1553 = vpow.pop %v1552
      %v1554 = vmul.f32 %v1506, 1.442695
      %v1555 = vpow.pop %v1554
      %v1556 = vmul.f32 %v1507, 1.442695
      %v1557 = vpow.pop %v1556
      %v1558 = vmul.f32 %v1508, 1.442695
      %v1559 = vpow.pop %v1558
      %v1560 = vmul.f32 %v1509, 1.442695
      %v1561 = vpow.pop %v1560
      %v1562 = vmul.f32 %v1510, 1.442695
      %v1563 = vpow.pop %v1562
      %v1564 = vmul.f32 %v1511, 1.442695
      %v1565 = vpow.pop %v1564
      %v1566 = vmul.f32 %v1512, 1.442695
      %v1567 = vpow.pop %v1566
      %v1568 = vmul.f32 %v1513, 1.442695
      %v1569 = vpow.pop %v1568
      %v1570 = vmul.f32 %v1514, 1.442695
      %v1571 = vpow.pop %v1570
      %v1572 = vmul.f32 %v1515, 1.442695
      %v1573 = vpow.pop %v1572
      %v1574 = vmul.f32 %v1516, 1.442695
      %v1575 = vpow.pop %v1574
      %v1576 = vmul.f32 %v1517, 1.442695
      %v1577 = vpow.pop %v1576
      %v1578 = vmul.f32 %v1518, 1.442695
      %v1579 = vpow.pop %v1578
      %v1580 = vmul.f32 %v1519, 1.442695
      %v1581 = vpow.pop %v1580
      %v1582 = vmul.f32 %v1520, 1.442695
      %v1583 = vpow.pop %v1582
      %v1584 = vmul.f32 %v1521, 1.442695
      %v1585 = vpow.pop %v1584
      %v1586 = vmul.f32 %v1523, %v1326
      %v1587 = vmul.f32 %v1525, %v1327
      %v1588 = vmul.f32 %v1527, %v1328
      %v1589 = vmul.f32 %v1529, %v1329
      %v1590 = vmul.f32 %v1531, %v1330
      %v1591 = vmul.f32 %v1533, %v1331
      %v1592 = vmul.f32 %v1535, %v1332
      %v1593 = vmul.f32 %v1537, %v1333
      %v1594 = vmul.f32 %v1539, %v1334
      %v1595 = vmul.f32 %v1541, %v1335
      %v1596 = vmul.f32 %v1543, %v1336
      %v1597 = vmul.f32 %v1545, %v1337
      %v1598 = vmul.f32 %v1547, %v1338
      %v1599 = vmul.f32 %v1549, %v1339
      %v1600 = vmul.f32 %v1551, %v1340
      %v1601 = vmul.f32 %v1553, %v1341
      %v1602 = vmul.f32 %v1555, %v1342
      %v1603 = vmul.f32 %v1557, %v1343
      %v1604 = vmul.f32 %v1559, %v1344
      %v1605 = vmul.f32 %v1561, %v1345
      %v1606 = vmul.f32 %v1563, %v1346
      %v1607 = vmul.f32 %v1565, %v1347
      %v1608 = vmul.f32 %v1567, %v1348
      %v1609 = vmul.f32 %v1569, %v1349
      %v1610 = vmul.f32 %v1571, %v1350
      %v1611 = vmul.f32 %v1573, %v1351
      %v1612 = vmul.f32 %v1575, %v1352
      %v1613 = vmul.f32 %v1577, %v1353
      %v1614 = vmul.f32 %v1579, %v1354
      %v1615 = vmul.f32 %v1581, %v1355
      %v1616 = vmul.f32 %v1583, %v1356
      %v1617 = vmul.f32 %v1585, %v1357
      %v1618 = vxor.u32 %v1199, 2147483648
      %v1619 = vxor.u32 %v1202, 2147483648
      %v1620 = vxor.u32 %v1205, 2147483648
      %v1621 = vxor.u32 %v1208, 2147483648
      %v1622 = vxor.u32 %v1211, 2147483648
      %v1623 = vxor.u32 %v1214, 2147483648
      %v1624 = vxor.u32 %v1217, 2147483648
      %v1625 = vxor.u32 %v1220, 2147483648
      %v1626 = vxor.u32 %v1223, 2147483648
      %v1627 = vxor.u32 %v1226, 2147483648
      %v1628 = vxor.u32 %v1229, 2147483648
      %v1629 = vxor.u32 %v1232, 2147483648
      %v1630 = vxor.u32 %v1235, 2147483648
      %v1631 = vxor.u32 %v1238, 2147483648
      %v1632 = vxor.u32 %v1241, 2147483648
      %v1633 = vxor.u32 %v1244, 2147483648
      %v1634 = vxor.u32 %v1247, 2147483648
      %v1635 = vxor.u32 %v1250, 2147483648
      %v1636 = vxor.u32 %v1253, 2147483648
      %v1637 = vxor.u32 %v1256, 2147483648
      %v1638 = vxor.u32 %v1259, 2147483648
      %v1639 = vxor.u32 %v1262, 2147483648
      %v1640 = vxor.u32 %v1265, 2147483648
      %v1641 = vxor.u32 %v1268, 2147483648
      %v1642 = vxor.u32 %v1271, 2147483648
      %v1643 = vxor.u32 %v1274, 2147483648
      %v1644 = vxor.u32 %v1277, 2147483648
      %v1645 = vxor.u32 %v1280, 2147483648
      %v1646 = vxor.u32 %v1283, 2147483648
      %v1647 = vxor.u32 %v1286, 2147483648
      %v1648 = vxor.u32 %v1289, 2147483648
      %v1649 = vxor.u32 %v1292, 2147483648
      %v1650 = vmul.f32 %v1618, 1.442695
      %v1651 = vpow.pop %v1650
      %v1652 = vmul.f32 %v1619, 1.442695
      %v1653 = vpow.pop %v1652
      %v1654 = vmul.f32 %v1620, 1.442695
      %v1655 = vpow.pop %v1654
      %v1656 = vmul.f32 %v1621, 1.442695
      %v1657 = vpow.pop %v1656
      %v1658 = vmul.f32 %v1622, 1.442695
      %v1659 = vpow.pop %v1658
      %v1660 = vmul.f32 %v1623, 1.442695
      %v1661 = vpow.pop %v1660
      %v1662 = vmul.f32 %v1624, 1.442695
      %v1663 = vpow.pop %v1662
      %v1664 = vmul.f32 %v1625, 1.442695
      %v1665 = vpow.pop %v1664
      %v1666 = vmul.f32 %v1626, 1.442695
      %v1667 = vpow.pop %v1666
      %v1668 = vmul.f32 %v1627, 1.442695
      %v1669 = vpow.pop %v1668
      %v1670 = vmul.f32 %v1628, 1.442695
      %v1671 = vpow.pop %v1670
      %v1672 = vmul.f32 %v1629, 1.442695
      %v1673 = vpow.pop %v1672
      %v1674 = vmul.f32 %v1630, 1.442695
      %v1675 = vpow.pop %v1674
      %v1676 = vmul.f32 %v1631, 1.442695
      %v1677 = vpow.pop %v1676
      %v1678 = vmul.f32 %v1632, 1.442695
      %v1679 = vpow.pop %v1678
      %v1680 = vmul.f32 %v1633, 1.442695
      %v1681 = vpow.pop %v1680
      %v1682 = vmul.f32 %v1634, 1.442695
      %v1683 = vpow.pop %v1682
      %v1684 = vmul.f32 %v1635, 1.442695
      %v1685 = vpow.pop %v1684
      %v1686 = vmul.f32 %v1636, 1.442695
      %v1687 = vpow.pop %v1686
      %v1688 = vmul.f32 %v1637, 1.442695
      %v1689 = vpow.pop %v1688
      %v1690 = vmul.f32 %v1638, 1.442695
      %v1691 = vpow.pop %v1690
      %v1692 = vmul.f32 %v1639, 1.442695
      %v1693 = vpow.pop %v1692
      %v1694 = vmul.f32 %v1640, 1.442695
      %v1695 = vpow.pop %v1694
      %v1696 = vmul.f32 %v1641, 1.442695
      %v1697 = vpow.pop %v1696
      %v1698 = vmul.f32 %v1642, 1.442695
      %v1699 = vpow.pop %v1698
      %v1700 = vmul.f32 %v1643, 1.442695
      %v1701 = vpow.pop %v1700
      %v1702 = vmul.f32 %v1644, 1.442695
      %v1703 = vpow.pop %v1702
      %v1704 = vmul.f32 %v1645, 1.442695
      %v1705 = vpow.pop %v1704
      %v1706 = vmul.f32 %v1646, 1.442695
      %v1707 = vpow.pop %v1706
      %v1708 = vmul.f32 %v1647, 1.442695
      %v1709 = vpow.pop %v1708
      %v1710 = vmul.f32 %v1648, 1.442695
      %v1711 = vpow.pop %v1710
      %v1712 = vmul.f32 %v1649, 1.442695
      %v1713 = vpow.pop %v1712
      %v1714 = vadd.f32 %v1651, 1.0
      %v1715 = vadd.f32 %v1653, 1.0
      %v1716 = vadd.f32 %v1655, 1.0
      %v1717 = vadd.f32 %v1657, 1.0
      %v1718 = vadd.f32 %v1659, 1.0
      %v1719 = vadd.f32 %v1661, 1.0
      %v1720 = vadd.f32 %v1663, 1.0
      %v1721 = vadd.f32 %v1665, 1.0
      %v1722 = vadd.f32 %v1667, 1.0
      %v1723 = vadd.f32 %v1669, 1.0
      %v1724 = vadd.f32 %v1671, 1.0
      %v1725 = vadd.f32 %v1673, 1.0
      %v1726 = vadd.f32 %v1675, 1.0
      %v1727 = vadd.f32 %v1677, 1.0
      %v1728 = vadd.f32 %v1679, 1.0
      %v1729 = vadd.f32 %v1681, 1.0
      %v1730 = vadd.f32 %v1683, 1.0
      %v1731 = vadd.f32 %v1685, 1.0
      %v1732 = vadd.f32 %v1687, 1.0
      %v1733 = vadd.f32 %v1689, 1.0
      %v1734 = vadd.f32 %v1691, 1.0
      %v1735 = vadd.f32 %v1693, 1.0
      %v1736 = vadd.f32 %v1695, 1.0
      %v1737 = vadd.f32 %v1697, 1.0
      %v1738 = vadd.f32 %v1699, 1.0
      %v1739 = vadd.f32 %v1701, 1.0
      %v1740 = vadd.f32 %v1703, 1.0
      %v1741 = vadd.f32 %v1705, 1.0
      %v1742 = vadd.f32 %v1707, 1.0
      %v1743 = vadd.f32 %v1709, 1.0
      %v1744 = vadd.f32 %v1711, 1.0
      %v1745 = vadd.f32 %v1713, 1.0
      %v1746 = vrcp.pop %v1714
      %v1747 = vmul.f32 %v1714, %v1746
      %v1748 = vsub.f32 1.0, %v1747
      %v1749 = vmul.f32 %v1746, %v1748
      %v1750 = vadd.f32 %v1746, %v1749
      %vm1751 = vweird.f32 %v1714
      %vm1752 = vweird.f32 %v1746
      %vm1753 = vmor %vm1751, %vm1752
      %v1754 = vsel %vm1753, %v1746, %v1750
      %v1755 = vand.u32 2147483647, %v1714
      %vm1756 = vcmp.eq.f32.partialorder %v1755, 8.507059e+37
      %v1757 = vand.u32 %v1714, 2147483648
      %v1758 = vor.u32 1.1754944e-38, %v1757
      %v1759 = vsel %vm1756, %v1758, %v1754
      %v1760 = vmul.f32 1.0, %v1759
      %v1761 = vrcp.pop %v1715
      %v1762 = vmul.f32 %v1715, %v1761
      %v1763 = vsub.f32 1.0, %v1762
      %v1764 = vmul.f32 %v1761, %v1763
      %v1765 = vadd.f32 %v1761, %v1764
      %vm1766 = vweird.f32 %v1715
      %vm1767 = vweird.f32 %v1761
      %vm1768 = vmor %vm1766, %vm1767
      %v1769 = vsel %vm1768, %v1761, %v1765
      %v1770 = vand.u32 2147483647, %v1715
      %vm1771 = vcmp.eq.f32.partialorder %v1770, 8.507059e+37
      %v1772 = vand.u32 %v1715, 2147483648
      %v1773 = vor.u32 1.1754944e-38, %v1772
      %v1774 = vsel %vm1771, %v1773, %v1769
      %v1775 = vmul.f32 1.0, %v1774
      %v1776 = vrcp.pop %v1716
      %v1777 = vmul.f32 %v1716, %v1776
      %v1778 = vsub.f32 1.0, %v1777
      %v1779 = vmul.f32 %v1776, %v1778
      %v1780 = vadd.f32 %v1776, %v1779
      %vm1781 = vweird.f32 %v1716
      %vm1782 = vweird.f32 %v1776
      %vm1783 = vmor %vm1781, %vm1782
      %v1784 = vsel %vm1783, %v1776, %v1780
      %v1785 = vand.u32 2147483647, %v1716
      %vm1786 = vcmp.eq.f32.partialorder %v1785, 8.507059e+37
      %v1787 = vand.u32 %v1716, 2147483648
      %v1788 = vor.u32 1.1754944e-38, %v1787
      %v1789 = vsel %vm1786, %v1788, %v1784
      %v1790 = vmul.f32 1.0, %v1789
      %v1791 = vrcp.pop %v1717
      %v1792 = vmul.f32 %v1717, %v1791
      %v1793 = vsub.f32 1.0, %v1792
      %v1794 = vmul.f32 %v1791, %v1793
      %v1795 = vadd.f32 %v1791, %v1794
      %vm1796 = vweird.f32 %v1717
      %vm1797 = vweird.f32 %v1791
      %vm1798 = vmor %vm1796, %vm1797
      %v1799 = vsel %vm1798, %v1791, %v1795
      %v1800 = vand.u32 2147483647, %v1717
      %vm1801 = vcmp.eq.f32.partialorder %v1800, 8.507059e+37
      %v1802 = vand.u32 %v1717, 2147483648
      %v1803 = vor.u32 1.1754944e-38, %v1802
      %v1804 = vsel %vm1801, %v1803, %v1799
      %v1805 = vmul.f32 1.0, %v1804
      %v1806 = vrcp.pop %v1718
      %v1807 = vmul.f32 %v1718, %v1806
      %v1808 = vsub.f32 1.0, %v1807
      %v1809 = vmul.f32 %v1806, %v1808
      %v1810 = vadd.f32 %v1806, %v1809
      %vm1811 = vweird.f32 %v1718
      %vm1812 = vweird.f32 %v1806
      %vm1813 = vmor %vm1811, %vm1812
      %v1814 = vsel %vm1813, %v1806, %v1810
      %v1815 = vand.u32 2147483647, %v1718
      %vm1816 = vcmp.eq.f32.partialorder %v1815, 8.507059e+37
      %v1817 = vand.u32 %v1718, 2147483648
      %v1818 = vor.u32 1.1754944e-38, %v1817
      %v1819 = vsel %vm1816, %v1818, %v1814
      %v1820 = vmul.f32 1.0, %v1819
      %v1821 = vrcp.pop %v1719
      %v1822 = vmul.f32 %v1719, %v1821
      %v1823 = vsub.f32 1.0, %v1822
      %v1824 = vmul.f32 %v1821, %v1823
      %v1825 = vadd.f32 %v1821, %v1824
      %vm1826 = vweird.f32 %v1719
      %vm1827 = vweird.f32 %v1821
      %vm1828 = vmor %vm1826, %vm1827
      %v1829 = vsel %vm1828, %v1821, %v1825
      %v1830 = vand.u32 2147483647, %v1719
      %vm1831 = vcmp.eq.f32.partialorder %v1830, 8.507059e+37
      %v1832 = vand.u32 %v1719, 2147483648
      %v1833 = vor.u32 1.1754944e-38, %v1832
      %v1834 = vsel %vm1831, %v1833, %v1829
      %v1835 = vmul.f32 1.0, %v1834
      %v1836 = vrcp.pop %v1720
      %v1837 = vmul.f32 %v1720, %v1836
      %v1838 = vsub.f32 1.0, %v1837
      %v1839 = vmul.f32 %v1836, %v1838
      %v1840 = vadd.f32 %v1836, %v1839
      %vm1841 = vweird.f32 %v1720
      %vm1842 = vweird.f32 %v1836
      %vm1843 = vmor %vm1841, %vm1842
      %v1844 = vsel %vm1843, %v1836, %v1840
      %v1845 = vand.u32 2147483647, %v1720
      %vm1846 = vcmp.eq.f32.partialorder %v1845, 8.507059e+37
      %v1847 = vand.u32 %v1720, 2147483648
      %v1848 = vor.u32 1.1754944e-38, %v1847
      %v1849 = vsel %vm1846, %v1848, %v1844
      %v1850 = vmul.f32 1.0, %v1849
      %v1851 = vrcp.pop %v1721
      %v1852 = vmul.f32 %v1721, %v1851
      %v1853 = vsub.f32 1.0, %v1852
      %v1854 = vmul.f32 %v1851, %v1853
      %v1855 = vadd.f32 %v1851, %v1854
      %vm1856 = vweird.f32 %v1721
      %vm1857 = vweird.f32 %v1851
      %vm1858 = vmor %vm1856, %vm1857
      %v1859 = vsel %vm1858, %v1851, %v1855
      %v1860 = vand.u32 2147483647, %v1721
      %vm1861 = vcmp.eq.f32.partialorder %v1860, 8.507059e+37
      %v1862 = vand.u32 %v1721, 2147483648
      %v1863 = vor.u32 1.1754944e-38, %v1862
      %v1864 = vsel %vm1861, %v1863, %v1859
      %v1865 = vmul.f32 1.0, %v1864
      %v1866 = vrcp.pop %v1722
      %v1867 = vmul.f32 %v1722, %v1866
      %v1868 = vsub.f32 1.0, %v1867
      %v1869 = vmul.f32 %v1866, %v1868
      %v1870 = vadd.f32 %v1866, %v1869
      %vm1871 = vweird.f32 %v1722
      %vm1872 = vweird.f32 %v1866
      %vm1873 = vmor %vm1871, %vm1872
      %v1874 = vsel %vm1873, %v1866, %v1870
      %v1875 = vand.u32 2147483647, %v1722
      %vm1876 = vcmp.eq.f32.partialorder %v1875, 8.507059e+37
      %v1877 = vand.u32 %v1722, 2147483648
      %v1878 = vor.u32 1.1754944e-38, %v1877
      %v1879 = vsel %vm1876, %v1878, %v1874
      %v1880 = vmul.f32 1.0, %v1879
      %v1881 = vrcp.pop %v1723
      %v1882 = vmul.f32 %v1723, %v1881
      %v1883 = vsub.f32 1.0, %v1882
      %v1884 = vmul.f32 %v1881, %v1883
      %v1885 = vadd.f32 %v1881, %v1884
      %vm1886 = vweird.f32 %v1723
      %vm1887 = vweird.f32 %v1881
      %vm1888 = vmor %vm1886, %vm1887
      %v1889 = vsel %vm1888, %v1881, %v1885
      %v1890 = vand.u32 2147483647, %v1723
      %vm1891 = vcmp.eq.f32.partialorder %v1890, 8.507059e+37
      %v1892 = vand.u32 %v1723, 2147483648
      %v1893 = vor.u32 1.1754944e-38, %v1892
      %v1894 = vsel %vm1891, %v1893, %v1889
      %v1895 = vmul.f32 1.0, %v1894
      %v1896 = vrcp.pop %v1724
      %v1897 = vmul.f32 %v1724, %v1896
      %v1898 = vsub.f32 1.0, %v1897
      %v1899 = vmul.f32 %v1896, %v1898
      %v1900 = vadd.f32 %v1896, %v1899
      %vm1901 = vweird.f32 %v1724
      %vm1902 = vweird.f32 %v1896
      %vm1903 = vmor %vm1901, %vm1902
      %v1904 = vsel %vm1903, %v1896, %v1900
      %v1905 = vand.u32 2147483647, %v1724
      %vm1906 = vcmp.eq.f32.partialorder %v1905, 8.507059e+37
      %v1907 = vand.u32 %v1724, 2147483648
      %v1908 = vor.u32 1.1754944e-38, %v1907
      %v1909 = vsel %vm1906, %v1908, %v1904
      %v1910 = vmul.f32 1.0, %v1909
      %v1911 = vrcp.pop %v1725
      %v1912 = vmul.f32 %v1725, %v1911
      %v1913 = vsub.f32 1.0, %v1912
      %v1914 = vmul.f32 %v1911, %v1913
      %v1915 = vadd.f32 %v1911, %v1914
      %vm1916 = vweird.f32 %v1725
      %vm1917 = vweird.f32 %v1911
      %vm1918 = vmor %vm1916, %vm1917
      %v1919 = vsel %vm1918, %v1911, %v1915
      %v1920 = vand.u32 2147483647, %v1725
      %vm1921 = vcmp.eq.f32.partialorder %v1920, 8.507059e+37
      %v1922 = vand.u32 %v1725, 2147483648
      %v1923 = vor.u32 1.1754944e-38, %v1922
      %v1924 = vsel %vm1921, %v1923, %v1919
      %v1925 = vmul.f32 1.0, %v1924
      %v1926 = vrcp.pop %v1726
      %v1927 = vmul.f32 %v1726, %v1926
      %v1928 = vsub.f32 1.0, %v1927
      %v1929 = vmul.f32 %v1926, %v1928
      %v1930 = vadd.f32 %v1926, %v1929
      %vm1931 = vweird.f32 %v1726
      %vm1932 = vweird.f32 %v1926
      %vm1933 = vmor %vm1931, %vm1932
      %v1934 = vsel %vm1933, %v1926, %v1930
      %v1935 = vand.u32 2147483647, %v1726
      %vm1936 = vcmp.eq.f32.partialorder %v1935, 8.507059e+37
      %v1937 = vand.u32 %v1726, 2147483648
      %v1938 = vor.u32 1.1754944e-38, %v1937
      %v1939 = vsel %vm1936, %v1938, %v1934
      %v1940 = vmul.f32 1.0, %v1939
      %v1941 = vrcp.pop %v1727
      %v1942 = vmul.f32 %v1727, %v1941
      %v1943 = vsub.f32 1.0, %v1942
      %v1944 = vmul.f32 %v1941, %v1943
      %v1945 = vadd.f32 %v1941, %v1944
      %vm1946 = vweird.f32 %v1727
      %vm1947 = vweird.f32 %v1941
      %vm1948 = vmor %vm1946, %vm1947
      %v1949 = vsel %vm1948, %v1941, %v1945
      %v1950 = vand.u32 2147483647, %v1727
      %vm1951 = vcmp.eq.f32.partialorder %v1950, 8.507059e+37
      %v1952 = vand.u32 %v1727, 2147483648
      %v1953 = vor.u32 1.1754944e-38, %v1952
      %v1954 = vsel %vm1951, %v1953, %v1949
      %v1955 = vmul.f32 1.0, %v1954
      %v1956 = vrcp.pop %v1728
      %v1957 = vmul.f32 %v1728, %v1956
      %v1958 = vsub.f32 1.0, %v1957
      %v1959 = vmul.f32 %v1956, %v1958
      %v1960 = vadd.f32 %v1956, %v1959
      %vm1961 = vweird.f32 %v1728
      %vm1962 = vweird.f32 %v1956
      %vm1963 = vmor %vm1961, %vm1962
      %v1964 = vsel %vm1963, %v1956, %v1960
      %v1965 = vand.u32 2147483647, %v1728
      %vm1966 = vcmp.eq.f32.partialorder %v1965, 8.507059e+37
      %v1967 = vand.u32 %v1728, 2147483648
      %v1968 = vor.u32 1.1754944e-38, %v1967
      %v1969 = vsel %vm1966, %v1968, %v1964
      %v1970 = vmul.f32 1.0, %v1969
      %v1971 = vrcp.pop %v1729
      %v1972 = vmul.f32 %v1729, %v1971
      %v1973 = vsub.f32 1.0, %v1972
      %v1974 = vmul.f32 %v1971, %v1973
      %v1975 = vadd.f32 %v1971, %v1974
      %vm1976 = vweird.f32 %v1729
      %vm1977 = vweird.f32 %v1971
      %vm1978 = vmor %vm1976, %vm1977
      %v1979 = vsel %vm1978, %v1971, %v1975
      %v1980 = vand.u32 2147483647, %v1729
      %vm1981 = vcmp.eq.f32.partialorder %v1980, 8.507059e+37
      %v1982 = vand.u32 %v1729, 2147483648
      %v1983 = vor.u32 1.1754944e-38, %v1982
      %v1984 = vsel %vm1981, %v1983, %v1979
      %v1985 = vmul.f32 1.0, %v1984
      %v1986 = vrcp.pop %v1730
      %v1987 = vmul.f32 %v1730, %v1986
      %v1988 = vsub.f32 1.0, %v1987
      %v1989 = vmul.f32 %v1986, %v1988
      %v1990 = vadd.f32 %v1986, %v1989
      %vm1991 = vweird.f32 %v1730
      %vm1992 = vweird.f32 %v1986
      %vm1993 = vmor %vm1991, %vm1992
      %v1994 = vsel %vm1993, %v1986, %v1990
      %v1995 = vand.u32 2147483647, %v1730
      %vm1996 = vcmp.eq.f32.partialorder %v1995, 8.507059e+37
      %v1997 = vand.u32 %v1730, 2147483648
      %v1998 = vor.u32 1.1754944e-38, %v1997
      %v1999 = vsel %vm1996, %v1998, %v1994
      %v2000 = vmul.f32 1.0, %v1999
      %v2001 = vrcp.pop %v1731
      %v2002 = vmul.f32 %v1731, %v2001
      %v2003 = vsub.f32 1.0, %v2002
      %v2004 = vmul.f32 %v2001, %v2003
      %v2005 = vadd.f32 %v2001, %v2004
      %vm2006 = vweird.f32 %v1731
      %vm2007 = vweird.f32 %v2001
      %vm2008 = vmor %vm2006, %vm2007
      %v2009 = vsel %vm2008, %v2001, %v2005
      %v2010 = vand.u32 2147483647, %v1731
      %vm2011 = vcmp.eq.f32.partialorder %v2010, 8.507059e+37
      %v2012 = vand.u32 %v1731, 2147483648
      %v2013 = vor.u32 1.1754944e-38, %v2012
      %v2014 = vsel %vm2011, %v2013, %v2009
      %v2015 = vmul.f32 1.0, %v2014
      %v2016 = vrcp.pop %v1732
      %v2017 = vmul.f32 %v1732, %v2016
      %v2018 = vsub.f32 1.0, %v2017
      %v2019 = vmul.f32 %v2016, %v2018
      %v2020 = vadd.f32 %v2016, %v2019
      %vm2021 = vweird.f32 %v1732
      %vm2022 = vweird.f32 %v2016
      %vm2023 = vmor %vm2021, %vm2022
      %v2024 = vsel %vm2023, %v2016, %v2020
      %v2025 = vand.u32 2147483647, %v1732
      %vm2026 = vcmp.eq.f32.partialorder %v2025, 8.507059e+37
      %v2027 = vand.u32 %v1732, 2147483648
      %v2028 = vor.u32 1.1754944e-38, %v2027
      %v2029 = vsel %vm2026, %v2028, %v2024
      %v2030 = vmul.f32 1.0, %v2029
      %v2031 = vrcp.pop %v1733
      %v2032 = vmul.f32 %v1733, %v2031
      %v2033 = vsub.f32 1.0, %v2032
      %v2034 = vmul.f32 %v2031, %v2033
      %v2035 = vadd.f32 %v2031, %v2034
      %vm2036 = vweird.f32 %v1733
      %vm2037 = vweird.f32 %v2031
      %vm2038 = vmor %vm2036, %vm2037
      %v2039 = vsel %vm2038, %v2031, %v2035
      %v2040 = vand.u32 2147483647, %v1733
      %vm2041 = vcmp.eq.f32.partialorder %v2040, 8.507059e+37
      %v2042 = vand.u32 %v1733, 2147483648
      %v2043 = vor.u32 1.1754944e-38, %v2042
      %v2044 = vsel %vm2041, %v2043, %v2039
      %v2045 = vmul.f32 1.0, %v2044
      %v2046 = vrcp.pop %v1734
      %v2047 = vmul.f32 %v1734, %v2046
      %v2048 = vsub.f32 1.0, %v2047
      %v2049 = vmul.f32 %v2046, %v2048
      %v2050 = vadd.f32 %v2046, %v2049
      %vm2051 = vweird.f32 %v1734
      %vm2052 = vweird.f32 %v2046
      %vm2053 = vmor %vm2051, %vm2052
      %v2054 = vsel %vm2053, %v2046, %v2050
      %v2055 = vand.u32 2147483647, %v1734
      %vm2056 = vcmp.eq.f32.partialorder %v2055, 8.507059e+37
      %v2057 = vand.u32 %v1734, 2147483648
      %v2058 = vor.u32 1.1754944e-38, %v2057
      %v2059 = vsel %vm2056, %v2058, %v2054
      %v2060 = vmul.f32 1.0, %v2059
      %v2061 = vrcp.pop %v1735
      %v2062 = vmul.f32 %v1735, %v2061
      %v2063 = vsub.f32 1.0, %v2062
      %v2064 = vmul.f32 %v2061, %v2063
      %v2065 = vadd.f32 %v2061, %v2064
      %vm2066 = vweird.f32 %v1735
      %vm2067 = vweird.f32 %v2061
      %vm2068 = vmor %vm2066, %vm2067
      %v2069 = vsel %vm2068, %v2061, %v2065
      %v2070 = vand.u32 2147483647, %v1735
      %vm2071 = vcmp.eq.f32.partialorder %v2070, 8.507059e+37
      %v2072 = vand.u32 %v1735, 2147483648
      %v2073 = vor.u32 1.1754944e-38, %v2072
      %v2074 = vsel %vm2071, %v2073, %v2069
      %v2075 = vmul.f32 1.0, %v2074
      %v2076 = vrcp.pop %v1736
      %v2077 = vmul.f32 %v1736, %v2076
      %v2078 = vsub.f32 1.0, %v2077
      %v2079 = vmul.f32 %v2076, %v2078
      %v2080 = vadd.f32 %v2076, %v2079
      %vm2081 = vweird.f32 %v1736
      %vm2082 = vweird.f32 %v2076
      %vm2083 = vmor %vm2081, %vm2082
      %v2084 = vsel %vm2083, %v2076, %v2080
      %v2085 = vand.u32 2147483647, %v1736
      %vm2086 = vcmp.eq.f32.partialorder %v2085, 8.507059e+37
      %v2087 = vand.u32 %v1736, 2147483648
      %v2088 = vor.u32 1.1754944e-38, %v2087
      %v2089 = vsel %vm2086, %v2088, %v2084
      %v2090 = vmul.f32 1.0, %v2089
      %v2091 = vrcp.pop %v1737
      %v2092 = vmul.f32 %v1737, %v2091
      %v2093 = vsub.f32 1.0, %v2092
      %v2094 = vmul.f32 %v2091, %v2093
      %v2095 = vadd.f32 %v2091, %v2094
      %vm2096 = vweird.f32 %v1737
      %vm2097 = vweird.f32 %v2091
      %vm2098 = vmor %vm2096, %vm2097
      %v2099 = vsel %vm2098, %v2091, %v2095
      %v2100 = vand.u32 2147483647, %v1737
      %vm2101 = vcmp.eq.f32.partialorder %v2100, 8.507059e+37
      %v2102 = vand.u32 %v1737, 2147483648
      %v2103 = vor.u32 1.1754944e-38, %v2102
      %v2104 = vsel %vm2101, %v2103, %v2099
      %v2105 = vmul.f32 1.0, %v2104
      %v2106 = vrcp.pop %v1738
      %v2107 = vmul.f32 %v1738, %v2106
      %v2108 = vsub.f32 1.0, %v2107
      %v2109 = vmul.f32 %v2106, %v2108
      %v2110 = vadd.f32 %v2106, %v2109
      %vm2111 = vweird.f32 %v1738
      %vm2112 = vweird.f32 %v2106
      %vm2113 = vmor %vm2111, %vm2112
      %v2114 = vsel %vm2113, %v2106, %v2110
      %v2115 = vand.u32 2147483647, %v1738
      %vm2116 = vcmp.eq.f32.partialorder %v2115, 8.507059e+37
      %v2117 = vand.u32 %v1738, 2147483648
      %v2118 = vor.u32 1.1754944e-38, %v2117
      %v2119 = vsel %vm2116, %v2118, %v2114
      %v2120 = vmul.f32 1.0, %v2119
      %v2121 = vrcp.pop %v1739
      %v2122 = vmul.f32 %v1739, %v2121
      %v2123 = vsub.f32 1.0, %v2122
      %v2124 = vmul.f32 %v2121, %v2123
      %v2125 = vadd.f32 %v2121, %v2124
      %vm2126 = vweird.f32 %v1739
      %vm2127 = vweird.f32 %v2121
      %vm2128 = vmor %vm2126, %vm2127
      %v2129 = vsel %vm2128, %v2121, %v2125
      %v2130 = vand.u32 2147483647, %v1739
      %vm2131 = vcmp.eq.f32.partialorder %v2130, 8.507059e+37
      %v2132 = vand.u32 %v1739, 2147483648
      %v2133 = vor.u32 1.1754944e-38, %v2132
      %v2134 = vsel %vm2131, %v2133, %v2129
      %v2135 = vmul.f32 1.0, %v2134
      %v2136 = vrcp.pop %v1740
      %v2137 = vmul.f32 %v1740, %v2136
      %v2138 = vsub.f32 1.0, %v2137
      %v2139 = vmul.f32 %v2136, %v2138
      %v2140 = vadd.f32 %v2136, %v2139
      %vm2141 = vweird.f32 %v1740
      %vm2142 = vweird.f32 %v2136
      %vm2143 = vmor %vm2141, %vm2142
      %v2144 = vsel %vm2143, %v2136, %v2140
      %v2145 = vand.u32 2147483647, %v1740
      %vm2146 = vcmp.eq.f32.partialorder %v2145, 8.507059e+37
      %v2147 = vand.u32 %v1740, 2147483648
      %v2148 = vor.u32 1.1754944e-38, %v2147
      %v2149 = vsel %vm2146, %v2148, %v2144
      %v2150 = vmul.f32 1.0, %v2149
      %v2151 = vrcp.pop %v1741
      %v2152 = vmul.f32 %v1741, %v2151
      %v2153 = vsub.f32 1.0, %v2152
      %v2154 = vmul.f32 %v2151, %v2153
      %v2155 = vadd.f32 %v2151, %v2154
      %vm2156 = vweird.f32 %v1741
      %vm2157 = vweird.f32 %v2151
      %vm2158 = vmor %vm2156, %vm2157
      %v2159 = vsel %vm2158, %v2151, %v2155
      %v2160 = vand.u32 2147483647, %v1741
      %vm2161 = vcmp.eq.f32.partialorder %v2160, 8.507059e+37
      %v2162 = vand.u32 %v1741, 2147483648
      %v2163 = vor.u32 1.1754944e-38, %v2162
      %v2164 = vsel %vm2161, %v2163, %v2159
      %v2165 = vmul.f32 1.0, %v2164
      %v2166 = vrcp.pop %v1742
      %v2167 = vmul.f32 %v1742, %v2166
      %v2168 = vsub.f32 1.0, %v2167
      %v2169 = vmul.f32 %v2166, %v2168
      %v2170 = vadd.f32 %v2166, %v2169
      %vm2171 = vweird.f32 %v1742
      %vm2172 = vweird.f32 %v2166
      %vm2173 = vmor %vm2171, %vm2172
      %v2174 = vsel %vm2173, %v2166, %v2170
      %v2175 = vand.u32 2147483647, %v1742
      %vm2176 = vcmp.eq.f32.partialorder %v2175, 8.507059e+37
      %v2177 = vand.u32 %v1742, 2147483648
      %v2178 = vor.u32 1.1754944e-38, %v2177
      %v2179 = vsel %vm2176, %v2178, %v2174
      %v2180 = vmul.f32 1.0, %v2179
      %v2181 = vrcp.pop %v1743
      %v2182 = vmul.f32 %v1743, %v2181
      %v2183 = vsub.f32 1.0, %v2182
      %v2184 = vmul.f32 %v2181, %v2183
      %v2185 = vadd.f32 %v2181, %v2184
      %vm2186 = vweird.f32 %v1743
      %vm2187 = vweird.f32 %v2181
      %vm2188 = vmor %vm2186, %vm2187
      %v2189 = vsel %vm2188, %v2181, %v2185
      %v2190 = vand.u32 2147483647, %v1743
      %vm2191 = vcmp.eq.f32.partialorder %v2190, 8.507059e+37
      %v2192 = vand.u32 %v1743, 2147483648
      %v2193 = vor.u32 1.1754944e-38, %v2192
      %v2194 = vsel %vm2191, %v2193, %v2189
      %v2195 = vmul.f32 1.0, %v2194
      %v2196 = vrcp.pop %v1744
      %v2197 = vmul.f32 %v1744, %v2196
      %v2198 = vsub.f32 1.0, %v2197
      %v2199 = vmul.f32 %v2196, %v2198
      %v2200 = vadd.f32 %v2196, %v2199
      %vm2201 = vweird.f32 %v1744
      %vm2202 = vweird.f32 %v2196
      %vm2203 = vmor %vm2201, %vm2202
      %v2204 = vsel %vm2203, %v2196, %v2200
      %v2205 = vand.u32 2147483647, %v1744
      %vm2206 = vcmp.eq.f32.partialorder %v2205, 8.507059e+37
      %v2207 = vand.u32 %v1744, 2147483648
      %v2208 = vor.u32 1.1754944e-38, %v2207
      %v2209 = vsel %vm2206, %v2208, %v2204
      %v2210 = vmul.f32 1.0, %v2209
      %v2211 = vrcp.pop %v1745
      %v2212 = vmul.f32 %v1745, %v2211
      %v2213 = vsub.f32 1.0, %v2212
      %v2214 = vmul.f32 %v2211, %v2213
      %v2215 = vadd.f32 %v2211, %v2214
      %vm2216 = vweird.f32 %v1745
      %vm2217 = vweird.f32 %v2211
      %vm2218 = vmor %vm2216, %vm2217
      %v2219 = vsel %vm2218, %v2211, %v2215
      %v2220 = vand.u32 2147483647, %v1745
      %vm2221 = vcmp.eq.f32.partialorder %v2220, 8.507059e+37
      %v2222 = vand.u32 %v1745, 2147483648
      %v2223 = vor.u32 1.1754944e-38, %v2222
      %v2224 = vsel %vm2221, %v2223, %v2219
      %v2225 = vmul.f32 1.0, %v2224
      %vm2226 = vcmp.lt.f32.partialorder %v1392, 0.5
      %vm2227 = vcmp.lt.f32.partialorder %v1392, 1.5
      %v2228 = vsel %vm2227, %v1586, %v1760
      %v2229 = vsel %vm2227, %v1587, %v1775
      %v2230 = vsel %vm2227, %v1588, %v1790
      %v2231 = vsel %vm2227, %v1589, %v1805
      %v2232 = vsel %vm2227, %v1590, %v1820
      %v2233 = vsel %vm2227, %v1591, %v1835
      %v2234 = vsel %vm2227, %v1592, %v1850
      %v2235 = vsel %vm2227, %v1593, %v1865
      %v2236 = vsel %vm2227, %v1594, %v1880
      %v2237 = vsel %vm2227, %v1595, %v1895
      %v2238 = vsel %vm2227, %v1596, %v1910
      %v2239 = vsel %vm2227, %v1597, %v1925
      %v2240 = vsel %vm2227, %v1598, %v1940
      %v2241 = vsel %vm2227, %v1599, %v1955
      %v2242 = vsel %vm2227, %v1600, %v1970
      %v2243 = vsel %vm2227, %v1601, %v1985
      %v2244 = vsel %vm2227, %v1602, %v2000
      %v2245 = vsel %vm2227, %v1603, %v2015
      %v2246 = vsel %vm2227, %v1604, %v2030
      %v2247 = vsel %vm2227, %v1605, %v2045
      %v2248 = vsel %vm2227, %v1606, %v2060
      %v2249 = vsel %vm2227, %v1607, %v2075
      %v2250 = vsel %vm2227, %v1608, %v2090
      %v2251 = vsel %vm2227, %v1609, %v2105
      %v2252 = vsel %vm2227, %v1610, %v2120
      %v2253 = vsel %vm2227, %v1611, %v2135
      %v2254 = vsel %vm2227, %v1612, %v2150
      %v2255 = vsel %vm2227, %v1613, %v2165
      %v2256 = vsel %vm2227, %v1614, %v2180
      %v2257 = vsel %vm2227, %v1615, %v2195
      %v2258 = vsel %vm2227, %v1616, %v2210
      %v2259 = vsel %vm2227, %v1617, %v2225
      %v2260 = vsel %vm2226, %v1458, %v2228
      %v2261 = vsel %vm2226, %v1459, %v2229
      %v2262 = vsel %vm2226, %v1460, %v2230
      %v2263 = vsel %vm2226, %v1461, %v2231
      %v2264 = vsel %vm2226, %v1462, %v2232
      %v2265 = vsel %vm2226, %v1463, %v2233
      %v2266 = vsel %vm2226, %v1464, %v2234
      %v2267 = vsel %vm2226, %v1465, %v2235
      %v2268 = vsel %vm2226, %v1466, %v2236
      %v2269 = vsel %vm2226, %v1467, %v2237
      %v2270 = vsel %vm2226, %v1468, %v2238
      %v2271 = vsel %vm2226, %v1469, %v2239
      %v2272 = vsel %vm2226, %v1470, %v2240
      %v2273 = vsel %vm2226, %v1471, %v2241
      %v2274 = vsel %vm2226, %v1472, %v2242
      %v2275 = vsel %vm2226, %v1473, %v2243
      %v2276 = vsel %vm2226, %v1474, %v2244
      %v2277 = vsel %vm2226, %v1475, %v2245
      %v2278 = vsel %vm2226, %v1476, %v2246
      %v2279 = vsel %vm2226, %v1477, %v2247
      %v2280 = vsel %vm2226, %v1478, %v2248
      %v2281 = vsel %vm2226, %v1479, %v2249
      %v2282 = vsel %vm2226, %v1480, %v2250
      %v2283 = vsel %vm2226, %v1481, %v2251
      %v2284 = vsel %vm2226, %v1482, %v2252
      %v2285 = vsel %vm2226, %v1483, %v2253
      %v2286 = vsel %vm2226, %v1484, %v2254
      %v2287 = vsel %vm2226, %v1485, %v2255
      %v2288 = vsel %vm2226, %v1486, %v2256
      %v2289 = vsel %vm2226, %v1487, %v2257
      %v2290 = vsel %vm2226, %v1488, %v2258
      %v2291 = vsel %vm2226, %v1489, %v2259
      %2292 = vst [vmem:[%s392] sm:$0xff] %v2260
      %2293 = vst [vmem:[%s392 + $0x8] sm:$0xff] %v2261
      %2294 = vst [vmem:[%s392 + $0x10] sm:$0xff] %v2262
      %2295 = vst [vmem:[%s392 + $0x18] sm:$0xff] %v2263
      %2296 = vst [vmem:[%s392 + $0x20] sm:$0xff] %v2264
      %2297 = vst [vmem:[%s392 + $0x28] sm:$0xff] %v2265
      %2298 = vst [vmem:[%s392 + $0x30] sm:$0xff] %v2266
      %2299 = vst [vmem:[%s392 + $0x38] sm:$0xff] %v2267
      %2300 = vst [vmem:[%s392 + $0x40] sm:$0xff] %v2268
      %2301 = vst [vmem:[%s392 + $0x48] sm:$0xff] %v2269
      %2302 = vst [vmem:[%s392 + $0x50] sm:$0xff] %v2270
      %2303 = vst [vmem:[%s392 + $0x58] sm:$0xff] %v2271
      %2304 = vst [vmem:[%s392 + $0x60] sm:$0xff] %v2272
      %2305 = vst [vmem:[%s392 + $0x68] sm:$0xff] %v2273
      %2306 = vst [vmem:[%s392 + $0x70] sm:$0xff] %v2274
      %2307 = vst [vmem:[%s392 + $0x78] sm:$0xff] %v2275
      %2308 = vst [vmem:[%s392 + $0x80] sm:$0xff] %v2276
      %2309 = vst [vmem:[%s392 + $0x88] sm:$0xff] %v2277
      %2310 = vst [vmem:[%s392 + $0x90] sm:$0xff] %v2278
      %2311 = vst [vmem:[%s392 + $0x98] sm:$0xff] %v2279
      %2312 = vst [vmem:[%s392 + $0xa0] sm:$0xff] %v2280
      %2313 = vst [vmem:[%s392 + $0xa8] sm:$0xff] %v2281
      %2314 = vst [vmem:[%s392 + $0xb0] sm:$0xff] %v2282
      %2315 = vst [vmem:[%s392 + $0xb8] sm:$0xff] %v2283
      %2316 = vst [vmem:[%s392 + $0xc0] sm:$0xff] %v2284
      %2317 = vst [vmem:[%s392 + $0xc8] sm:$0xff] %v2285
      %2318 = vst [vmem:[%s392 + $0xd0] sm:$0xff] %v2286
      %2319 = vst [vmem:[%s392 + $0xd8] sm:$0xff] %v2287
      %2320 = vst [vmem:[%s392 + $0xe0] sm:$0xff] %v2288
      %2321 = vst [vmem:[%s392 + $0xe8] sm:$0xff] %v2289
      %2322 = vst [vmem:[%s392 + $0xf0] sm:$0xff] %v2290
      %2323 = vst [vmem:[%s392 + $0xf8] sm:$0xff] %v2291
      %s2324 = smul.u32 32, %s21
      %p2325 = scmp.lt.s32.totalorder %s2324, 63
      %s2326 = scalar_select %p2325, %s2324, 63
      %s2327 = smul.addr %s2326, 8
      %s2328 = scalar_lea.vmem %s8, %s2327
      %s2329 = smul.u32 32, %s21
      %p2330 = scmp.lt.s32.totalorder %s2329, 63
      %s2331 = scalar_select %p2330, %s2329, 63
      %s2332 = smul.addr %s2331, 8
      %s2333 = scalar_lea.vmem %s9, %s2332
      // Predicated region
      $region53: #{td_net_forward.4} parent=51 // pred_check
        %p2334 = pneg %p222
      $region54: #{td_net_forward.4} parent=51 // pred_check_branch
        %2336 = sbr.rel (%p2334) target = $region56
      $region55: #{td_net_forward.4} parent=51 // pred_region
        %s2337 = smul.u32 32, %s21
      $region56: #{td_net_forward.4} parent=51 // pred_fallthru
        _
      // Predicated region
      $region57: #{td_net_forward.4} parent=51 // pred_check
        %p2338 = pneg %p248
      $region58: #{td_net_forward.4} parent=51 // pred_check_branch
        %2340 = sbr.rel (%p2338) target = $region60
      $region59: #{td_net_forward.4} parent=51 // pred_region
        %s2341 = smul.u32 32, %s21
      $region60: #{td_net_forward.4} parent=51 // pred_fallthru
        _
    $region52: #{td_net_forward.4} parent=5 // pred_fallthru
      _
    %p2342 = scmp.le.s32.totalorder 2, %s16
    // Predicated region
    $region61: #{td_net_forward.4} parent=5 // pred_check
      %p2343 = pneg %p2342
    $region62: #{td_net_forward.4} parent=5 // pred_check_branch
      %2345 = sbr.rel (%p2343) target = $region64
    $region63: #{td_net_forward.4} parent=5 // pred_region
      %s2346 = ssub.s32 %s16, 2
      // Predicated region
      $region65: #{td_net_forward.4} parent=63 // pred_check
        %p2347 = pneg %p228
      $region66: #{td_net_forward.4} parent=63 // pred_check_branch
        %2349 = sbr.rel (%p2347) target = $region68
      $region67: #{td_net_forward.4} parent=63 // pred_region
        %s2350 = smul.u32 32, %s22
        %p2351 = scmp.lt.s32.totalorder %s2350, 63
        %s2352 = scalar_select %p2351, %s2350, 63
        %s2353 = smul.addr %s2352, 8
        %s2354 = scalar_lea.vmem %s8, %s2353
      $region68: #{td_net_forward.4} parent=63 // pred_fallthru
        _
      // Predicated region
      $region69: #{td_net_forward.4} parent=63 // pred_check
        %p2355 = pneg %p254
      $region70: #{td_net_forward.4} parent=63 // pred_check_branch
        %2357 = sbr.rel (%p2355) target = $region72
      $region71: #{td_net_forward.4} parent=63 // pred_region
        %s2358 = smul.u32 32, %s22
        %p2359 = scmp.lt.s32.totalorder %s2358, 63
        %s2360 = scalar_select %p2359, %s2358, 63
        %s2361 = smul.addr %s2360, 8
        %s2362 = scalar_lea.vmem %s9, %s2361
      $region72: #{td_net_forward.4} parent=63 // pred_fallthru
        _
    $region64: #{td_net_forward.4} parent=5 // pred_fallthru
      _
  $region6: #{td_net_forward.4} parent=0 // loop_footer
    %s20 = sadd.s32 1, %s16
  $region7: #{td_net_forward.4} parent=0 // loop_footer_branch
    %15 = sbr.rel target = $region3
  $region8: #{td_net_forward.4} parent=0 // loop_exit
    _

// kernel: td_net_forward.5
$region0: #{td_net_forward.5}
  #allocation0 [shape = 'u32[]', space=smem, size = 0x4, offset = 0x4, fixed_abs, tag = 'smem constant byte address 0x4 - core index']
  #allocation1 [shape = 'u32[72,128]{1,0:T(1,128)}', space=vmem, size = 0x9000, scoped, tag = 'internal scratch']
  %s0 = inlined_call_operand.vmem [shape: f32[128,3], index: 0, kind: input, shape index: {}]
  %s1 = inlined_call_operand.vmem [shape: f32[3,64], index: 1, kind: input, shape index: {}]
  %s2 = inlined_call_operand.vmem [shape: f32[1,64], index: 2, kind: input, shape index: {}]
  %s3 = inlined_call_operand.vmem [shape: f32[64,128], index: 3, kind: input, shape index: {}]
  %s4 = inlined_call_operand.vmem [shape: f32[1,128], index: 4, kind: input, shape index: {}]
  %s5 = inlined_call_operand.vmem [shape: f32[128,128], index: 5, kind: input, shape index: {}]
  %s6 = inlined_call_operand.vmem [shape: f32[128,128], index: 6, kind: input, shape index: {}]
  %s7 = inlined_call_operand.vmem [shape: f32[1,128], index: 7, kind: input, shape index: {}]
  %s8 = inlined_call_operand.vmem [shape: f32[128,128], index: 8, kind: output, shape index: {0}]
  %s9 = inlined_call_operand.vmem [shape: f32[128,128], index: 9, kind: output, shape index: {1}]
  %10 = xla_tuple %s8, %s9
  %s11 = sld [smem:[#allocation0]]
  $region50: #{td_net_forward.5} parent=0
    _
  %s13 = ssub.s32 1, %s11
  %s14 = scalar_select 0, %s13, %s11
  // Predicated region
  $region2: #{td_net_forward.5} parent=0 // pred_check
    _
  $region3: #{td_net_forward.5} parent=0 // pred_check_branch
    %16 = sbr.rel (0) target = $region5
  $region4: #{td_net_forward.5} parent=0 // pred_region
    _
  $region5: #{td_net_forward.5} parent=0 // pred_fallthru
    _
  // Predicated region
  $region6: #{td_net_forward.5} parent=0 // pred_check
    _
  $region7: #{td_net_forward.5} parent=0 // pred_check_branch
    %18 = sbr.rel (0) target = $region9
  $region8: #{td_net_forward.5} parent=0 // pred_region
    _
  $region9: #{td_net_forward.5} parent=0 // pred_fallthru
    _
  // Predicated region
  $region10: #{td_net_forward.5} parent=0 // pred_check
    _
  $region11: #{td_net_forward.5} parent=0 // pred_check_branch
    %20 = sbr.rel (0) target = $region13
  $region12: #{td_net_forward.5} parent=0 // pred_region
    _
  $region13: #{td_net_forward.5} parent=0 // pred_fallthru
    _
  // Predicated region
  $region14: #{td_net_forward.5} parent=0 // pred_check
    _
  $region15: #{td_net_forward.5} parent=0 // pred_check_branch
    %22 = sbr.rel (0) target = $region17
  $region16: #{td_net_forward.5} parent=0 // pred_region
    _
  $region17: #{td_net_forward.5} parent=0 // pred_fallthru
    _
  // Predicated region
  $region18: #{td_net_forward.5} parent=0 // pred_check
    _
  $region19: #{td_net_forward.5} parent=0 // pred_check_branch
    %24 = sbr.rel (0) target = $region21
  $region20: #{td_net_forward.5} parent=0 // pred_region
    _
  $region21: #{td_net_forward.5} parent=0 // pred_fallthru
    _
  // Predicated region
  $region22: #{td_net_forward.5} parent=0 // pred_check
    _
  $region23: #{td_net_forward.5} parent=0 // pred_check_branch
    %26 = sbr.rel (0) target = $region25
  $region24: #{td_net_forward.5} parent=0 // pred_region
    _
  $region25: #{td_net_forward.5} parent=0 // pred_fallthru
    _
  // Predicated region
  $region26: #{td_net_forward.5} parent=0 // pred_check
    _
  $region27: #{td_net_forward.5} parent=0 // pred_check_branch
    %28 = sbr.rel (0) target = $region29
  $region28: #{td_net_forward.5} parent=0 // pred_region
    _
  $region29: #{td_net_forward.5} parent=0 // pred_fallthru
    _
  // Predicated region
  $region30: #{td_net_forward.5} parent=0 // pred_check
    _
  $region31: #{td_net_forward.5} parent=0 // pred_check_branch
    %30 = sbr.rel (0) target = $region33
  $region32: #{td_net_forward.5} parent=0 // pred_region
    _
  $region33: #{td_net_forward.5} parent=0 // pred_fallthru
    _
  %v31 = vld [vmem:[%s0] sm:$0xff]
  %v32 = vld [vmem:[%s0 + $0x8] sm:$0xff]
  %v33 = vld [vmem:[%s0 + $0x10] sm:$0xff]
  %v34 = vld [vmem:[%s0 + $0x18] sm:$0xff]
  %v35 = vld [vmem:[%s0 + $0x20] sm:$0xff]
  %v36 = vld [vmem:[%s0 + $0x28] sm:$0xff]
  %v37 = vld [vmem:[%s0 + $0x30] sm:$0xff]
  %v38 = vld [vmem:[%s0 + $0x38] sm:$0xff]
  %v39 = vld [vmem:[%s0 + $0x40] sm:$0xff]
  %v40 = vld [vmem:[%s0 + $0x48] sm:$0xff]
  %v41 = vld [vmem:[%s0 + $0x50] sm:$0xff]
  %v42 = vld [vmem:[%s0 + $0x58] sm:$0xff]
  %v43 = vld [vmem:[%s0 + $0x60] sm:$0xff]
  %v44 = vld [vmem:[%s0 + $0x68] sm:$0xff]
  %v45 = vld [vmem:[%s0 + $0x70] sm:$0xff]
  %v46 = vld [vmem:[%s0 + $0x78] sm:$0xff]
  %v47 = vld [vmem:[%s2] sm:$0x1]
  %v48 = vld [vmem:[%s1] sm:$0x1]
  %50 = vset.pattern.permute.xlu0 0
  %51 = vperm.xlu0 %50, %v31
  %v52 = vpop.permute.xlu0 %51
  %55 = vset.pattern.permute.xlu0 0
  %56 = vperm.xlu0 %55, %v32
  %v57 = vpop.permute.xlu0 %56
  %60 = vset.pattern.permute.xlu0 0
  %61 = vperm.xlu0 %60, %v33
  %v62 = vpop.permute.xlu0 %61
  %65 = vset.pattern.permute.xlu0 0
  %66 = vperm.xlu0 %65, %v34
  %v67 = vpop.permute.xlu0 %66
  %70 = vset.pattern.permute.xlu0 0
  %71 = vperm.xlu0 %70, %v35
  %v72 = vpop.permute.xlu0 %71
  %75 = vset.pattern.permute.xlu0 0
  %76 = vperm.xlu0 %75, %v36
  %v77 = vpop.permute.xlu0 %76
  %80 = vset.pattern.permute.xlu0 0
  %81 = vperm.xlu0 %80, %v37
  %v82 = vpop.permute.xlu0 %81
  %85 = vset.pattern.permute.xlu0 0
  %86 = vperm.xlu0 %85, %v38
  %v87 = vpop.permute.xlu0 %86
  %90 = vset.pattern.permute.xlu0 0
  %91 = vperm.xlu0 %90, %v39
  %v92 = vpop.permute.xlu0 %91
  %95 = vset.pattern.permute.xlu0 0
  %96 = vperm.xlu0 %95, %v40
  %v97 = vpop.permute.xlu0 %96
  %100 = vset.pattern.permute.xlu0 0
  %101 = vperm.xlu0 %100, %v41
  %v102 = vpop.permute.xlu0 %101
  %105 = vset.pattern.permute.xlu0 0
  %106 = vperm.xlu0 %105, %v42
  %v107 = vpop.permute.xlu0 %106
  %110 = vset.pattern.permute.xlu0 0
  %111 = vperm.xlu0 %110, %v43
  %v112 = vpop.permute.xlu0 %111
  %115 = vset.pattern.permute.xlu0 0
  %116 = vperm.xlu0 %115, %v44
  %v117 = vpop.permute.xlu0 %116
  %120 = vset.pattern.permute.xlu0 0
  %121 = vperm.xlu0 %120, %v45
  %v122 = vpop.permute.xlu0 %121
  %125 = vset.pattern.permute.xlu0 0
  %126 = vperm.xlu0 %125, %v46
  %v127 = vpop.permute.xlu0 %126
  %v129 = vperm.slane %v48, 0
  %v130 = vmul.f32 %v52, %v129
  %v131 = vmul.f32 %v57, %v129
  %v132 = vmul.f32 %v62, %v129
  %v133 = vmul.f32 %v67, %v129
  %v134 = vmul.f32 %v72, %v129
  %v135 = vmul.f32 %v77, %v129
  %v136 = vmul.f32 %v82, %v129
  %v137 = vmul.f32 %v87, %v129
  %v138 = vmul.f32 %v92, %v129
  %v139 = vmul.f32 %v97, %v129
  %v140 = vmul.f32 %v102, %v129
  %v141 = vmul.f32 %v107, %v129
  %v142 = vmul.f32 %v112, %v129
  %v143 = vmul.f32 %v117, %v129
  %v144 = vmul.f32 %v122, %v129
  %v145 = vmul.f32 %v127, %v129
  %v147 = vperm.slane %v47, 0
  %v149 = vadd.f32 %v147, %v130
  %v150 = vadd.f32 %v147, %v131
  %v151 = vadd.f32 %v147, %v132
  %v152 = vadd.f32 %v147, %v133
  %v153 = vadd.f32 %v147, %v134
  %v154 = vadd.f32 %v147, %v135
  %v155 = vadd.f32 %v147, %v136
  %v156 = vadd.f32 %v147, %v137
  %v157 = vadd.f32 %v147, %v138
  %v158 = vadd.f32 %v147, %v139
  %v159 = vadd.f32 %v147, %v140
  %v160 = vadd.f32 %v147, %v141
  %v161 = vadd.f32 %v147, %v142
  %v162 = vadd.f32 %v147, %v143
  %v163 = vadd.f32 %v147, %v144
  %v164 = vadd.f32 %v147, %v145
  %v165 = vld [vmem:[%s1 + $0x1] sm:$0x1]
  %166 = vset.pattern.permute.xlu0 1
  %167 = vperm.xlu0 %166, %v31
  %v168 = vpop.permute.xlu0 %167
  %170 = vset.pattern.permute.xlu0 1
  %171 = vperm.xlu0 %170, %v32
  %v172 = vpop.permute.xlu0 %171
  %174 = vset.pattern.permute.xlu0 1
  %175 = vperm.xlu0 %174, %v33
  %v176 = vpop.permute.xlu0 %175
  %178 = vset.pattern.permute.xlu0 1
  %179 = vperm.xlu0 %178, %v34
  %v180 = vpop.permute.xlu0 %179
  %182 = vset.pattern.permute.xlu0 1
  %183 = vperm.xlu0 %182, %v35
  %v184 = vpop.permute.xlu0 %183
  %186 = vset.pattern.permute.xlu0 1
  %187 = vperm.xlu0 %186, %v36
  %v188 = vpop.permute.xlu0 %187
  %190 = vset.pattern.permute.xlu0 1
  %191 = vperm.xlu0 %190, %v37
  %v192 = vpop.permute.xlu0 %191
  %194 = vset.pattern.permute.xlu0 1
  %195 = vperm.xlu0 %194, %v38
  %v196 = vpop.permute.xlu0 %195
  %198 = vset.pattern.permute.xlu0 1
  %199 = vperm.xlu0 %198, %v39
  %v200 = vpop.permute.xlu0 %199
  %202 = vset.pattern.permute.xlu0 1
  %203 = vperm.xlu0 %202, %v40
  %v204 = vpop.permute.xlu0 %203
  %206 = vset.pattern.permute.xlu0 1
  %207 = vperm.xlu0 %206, %v41
  %v208 = vpop.permute.xlu0 %207
  %210 = vset.pattern.permute.xlu0 1
  %211 = vperm.xlu0 %210, %v42
  %v212 = vpop.permute.xlu0 %211
  %214 = vset.pattern.permute.xlu0 1
  %215 = vperm.xlu0 %214, %v43
  %v216 = vpop.permute.xlu0 %215
  %218 = vset.pattern.permute.xlu0 1
  %219 = vperm.xlu0 %218, %v44
  %v220 = vpop.permute.xlu0 %219
  %222 = vset.pattern.permute.xlu0 1
  %223 = vperm.xlu0 %222, %v45
  %v224 = vpop.permute.xlu0 %223
  %226 = vset.pattern.permute.xlu0 1
  %227 = vperm.xlu0 %226, %v46
  %v228 = vpop.permute.xlu0 %227
  %v230 = vperm.slane %v165, 0
  %v231 = vmul.f32 %v168, %v230
  %v232 = vmul.f32 %v172, %v230
  %v233 = vmul.f32 %v176, %v230
  %v234 = vmul.f32 %v180, %v230
  %v235 = vmul.f32 %v184, %v230
  %v236 = vmul.f32 %v188, %v230
  %v237 = vmul.f32 %v192, %v230
  %v238 = vmul.f32 %v196, %v230
  %v239 = vmul.f32 %v200, %v230
  %v240 = vmul.f32 %v204, %v230
  %v241 = vmul.f32 %v208, %v230
  %v242 = vmul.f32 %v212, %v230
  %v243 = vmul.f32 %v216, %v230
  %v244 = vmul.f32 %v220, %v230
  %v245 = vmul.f32 %v224, %v230
  %v246 = vmul.f32 %v228, %v230
  %v247 = vadd.f32 %v149, %v231
  %v248 = vadd.f32 %v150, %v232
  %v249 = vadd.f32 %v151, %v233
  %v250 = vadd.f32 %v152, %v234
  %v251 = vadd.f32 %v153, %v235
  %v252 = vadd.f32 %v154, %v236
  %v253 = vadd.f32 %v155, %v237
  %v254 = vadd.f32 %v156, %v238
  %v255 = vadd.f32 %v157, %v239
  %v256 = vadd.f32 %v158, %v240
  %v257 = vadd.f32 %v159, %v241
  %v258 = vadd.f32 %v160, %v242
  %v259 = vadd.f32 %v161, %v243
  %v260 = vadd.f32 %v162, %v244
  %v261 = vadd.f32 %v163, %v245
  %v262 = vadd.f32 %v164, %v246
  %v263 = vld [vmem:[%s1 + $0x2] sm:$0x1]
  %264 = vset.pattern.permute.xlu0 2
  %265 = vperm.xlu0 %264, %v31
  %v266 = vpop.permute.xlu0 %265
  %268 = vset.pattern.permute.xlu0 2
  %269 = vperm.xlu0 %268, %v32
  %v270 = vpop.permute.xlu0 %269
  %272 = vset.pattern.permute.xlu0 2
  %273 = vperm.xlu0 %272, %v33
  %v274 = vpop.permute.xlu0 %273
  %276 = vset.pattern.permute.xlu0 2
  %277 = vperm.xlu0 %276, %v34
  %v278 = vpop.permute.xlu0 %277
  %280 = vset.pattern.permute.xlu0 2
  %281 = vperm.xlu0 %280, %v35
  %v282 = vpop.permute.xlu0 %281
  %284 = vset.pattern.permute.xlu0 2
  %285 = vperm.xlu0 %284, %v36
  %v286 = vpop.permute.xlu0 %285
  %288 = vset.pattern.permute.xlu0 2
  %289 = vperm.xlu0 %288, %v37
  %v290 = vpop.permute.xlu0 %289
  %292 = vset.pattern.permute.xlu0 2
  %293 = vperm.xlu0 %292, %v38
  %v294 = vpop.permute.xlu0 %293
  %296 = vset.pattern.permute.xlu0 2
  %297 = vperm.xlu0 %296, %v39
  %v298 = vpop.permute.xlu0 %297
  %300 = vset.pattern.permute.xlu0 2
  %301 = vperm.xlu0 %300, %v40
  %v302 = vpop.permute.xlu0 %301
  %304 = vset.pattern.permute.xlu0 2
  %305 = vperm.xlu0 %304, %v41
  %v306 = vpop.permute.xlu0 %305
  %308 = vset.pattern.permute.xlu0 2
  %309 = vperm.xlu0 %308, %v42
  %v310 = vpop.permute.xlu0 %309
  %312 = vset.pattern.permute.xlu0 2
  %313 = vperm.xlu0 %312, %v43
  %v314 = vpop.permute.xlu0 %313
  %316 = vset.pattern.permute.xlu0 2
  %317 = vperm.xlu0 %316, %v44
  %v318 = vpop.permute.xlu0 %317
  %320 = vset.pattern.permute.xlu0 2
  %321 = vperm.xlu0 %320, %v45
  %v322 = vpop.permute.xlu0 %321
  %324 = vset.pattern.permute.xlu0 2
  %325 = vperm.xlu0 %324, %v46
  %v326 = vpop.permute.xlu0 %325
  %v328 = vperm.slane %v263, 0
  %v329 = vmul.f32 %v266, %v328
  %v330 = vmul.f32 %v270, %v328
  %v331 = vmul.f32 %v274, %v328
  %v332 = vmul.f32 %v278, %v328
  %v333 = vmul.f32 %v282, %v328
  %v334 = vmul.f32 %v286, %v328
  %v335 = vmul.f32 %v290, %v328
  %v336 = vmul.f32 %v294, %v328
  %v337 = vmul.f32 %v298, %v328
  %v338 = vmul.f32 %v302, %v328
  %v339 = vmul.f32 %v306, %v328
  %v340 = vmul.f32 %v310, %v328
  %v341 = vmul.f32 %v314, %v328
  %v342 = vmul.f32 %v318, %v328
  %v343 = vmul.f32 %v322, %v328
  %v344 = vmul.f32 %v326, %v328
  %v345 = vadd.f32 %v247, %v329
  %v346 = vadd.f32 %v248, %v330
  %v347 = vadd.f32 %v249, %v331
  %v348 = vadd.f32 %v250, %v332
  %v349 = vadd.f32 %v251, %v333
  %v350 = vadd.f32 %v252, %v334
  %v351 = vadd.f32 %v253, %v335
  %v352 = vadd.f32 %v254, %v336
  %v353 = vadd.f32 %v255, %v337
  %v354 = vadd.f32 %v256, %v338
  %v355 = vadd.f32 %v257, %v339
  %v356 = vadd.f32 %v258, %v340
  %v357 = vadd.f32 %v259, %v341
  %v358 = vadd.f32 %v260, %v342
  %v359 = vadd.f32 %v261, %v343
  %v360 = vadd.f32 %v262, %v344
  %v361 = vmax.f32 %v345, 0.0
  %v362 = vmax.f32 %v346, 0.0
  %v363 = vmax.f32 %v347, 0.0
  %v364 = vmax.f32 %v348, 0.0
  %v365 = vmax.f32 %v349, 0.0
  %v366 = vmax.f32 %v350, 0.0
  %v367 = vmax.f32 %v351, 0.0
  %v368 = vmax.f32 %v352, 0.0
  %v369 = vmax.f32 %v353, 0.0
  %v370 = vmax.f32 %v354, 0.0
  %v371 = vmax.f32 %v355, 0.0
  %v372 = vmax.f32 %v356, 0.0
  %v373 = vmax.f32 %v357, 0.0
  %v374 = vmax.f32 %v358, 0.0
  %v375 = vmax.f32 %v359, 0.0
  %v376 = vmax.f32 %v360, 0.0
  %v377 = vld [vmem:[%s3] sm:$0xff]
  %v378 = vld [vmem:[%s3 + $0x8] sm:$0xff]
  %v379 = vld [vmem:[%s3 + $0x10] sm:$0xff]
  %v380 = vld [vmem:[%s3 + $0x18] sm:$0xff]
  %v381 = vld [vmem:[%s3 + $0x20] sm:$0xff]
  %v382 = vld [vmem:[%s3 + $0x28] sm:$0xff]
  %v383 = vld [vmem:[%s3 + $0x30] sm:$0xff]
  %v384 = vld [vmem:[%s3 + $0x38] sm:$0xff]
  %v385 = vld [vmem:[%s4] sm:$0x1]
  %v387 = vperm.slane %v385, 0
  %vm389 = vcmask 523264
  %v391 = vsel %vm389, %v361, 0
  %v394 = vsel %vm389, %v362, 0
  %v397 = vsel %vm389, %v363, 0
  %v400 = vsel %vm389, %v364, 0
  %v403 = vsel %vm389, %v365, 0
  %v406 = vsel %vm389, %v366, 0
  %v409 = vsel %vm389, %v367, 0
  %v412 = vsel %vm389, %v368, 0
  %v415 = vsel %vm389, %v369, 0
  %v418 = vsel %vm389, %v370, 0
  %v421 = vsel %vm389, %v371, 0
  %v424 = vsel %vm389, %v372, 0
  %v427 = vsel %vm389, %v373, 0
  %v430 = vsel %vm389, %v374, 0
  %v433 = vsel %vm389, %v375, 0
  %v436 = vsel %vm389, %v376, 0
  %438 = vmatpush.msra.mxu0 0.0
  %439 = vmatpush.msra.mxu0 0.0
  %440 = vmatpush.msra.mxu0 0.0
  %441 = vmatpush.msra.mxu0 0.0
  %442 = vmatpush.msra.mxu0 0.0
  %443 = vmatpush.msra.mxu0 0.0
  %444 = vmatpush.msra.mxu0 0.0
  %445 = vmatpush.msra.mxu0 0.0
  %446 = vmatpush.msra.mxu0 %v384
  %447 = vmatpush.msra.mxu0 %v383
  %448 = vmatpush.msra.mxu0 %v382
  %449 = vmatpush.msra.mxu0 %v381
  %450 = vmatpush.msra.mxu0 %v380
  %451 = vmatpush.msra.mxu0 %v379
  %452 = vmatpush.msra.mxu0 %v378
  %453 = vmatpush.msra.mxu0 %v377
  %454 = vmatmul.f32.gmra.mxu0 %v391
  %v455 = vpop.f32.mrf.mxu0
  %v456 = vadd.f32 %v387, %v455
  %457 = vmatmul.f32.gmra.mxu0 %v394
  %v458 = vpop.f32.mrf.mxu0
  %v459 = vadd.f32 %v387, %v458
  %460 = vmatmul.f32.gmra.mxu0 %v397
  %v461 = vpop.f32.mrf.mxu0
  %v462 = vadd.f32 %v387, %v461
  %463 = vmatmul.f32.gmra.mxu0 %v400
  %v464 = vpop.f32.mrf.mxu0
  %v465 = vadd.f32 %v387, %v464
  %466 = vmatmul.f32.gmra.mxu0 %v403
  %v467 = vpop.f32.mrf.mxu0
  %v468 = vadd.f32 %v387, %v467
  %469 = vmatmul.f32.gmra.mxu0 %v406
  %v470 = vpop.f32.mrf.mxu0
  %v471 = vadd.f32 %v387, %v470
  %472 = vmatmul.f32.gmra.mxu0 %v409
  %v473 = vpop.f32.mrf.mxu0
  %v474 = vadd.f32 %v387, %v473
  %475 = vmatmul.f32.gmra.mxu0 %v412
  %v476 = vpop.f32.mrf.mxu0
  %v477 = vadd.f32 %v387, %v476
  %478 = vmatmul.f32.gmra.mxu0 %v415
  %v479 = vpop.f32.mrf.mxu0
  %v480 = vadd.f32 %v387, %v479
  %481 = vmatmul.f32.gmra.mxu0 %v418
  %v482 = vpop.f32.mrf.mxu0
  %v483 = vadd.f32 %v387, %v482
  %484 = vmatmul.f32.gmra.mxu0 %v421
  %v485 = vpop.f32.mrf.mxu0
  %v486 = vadd.f32 %v387, %v485
  %487 = vmatmul.f32.gmra.mxu0 %v424
  %v488 = vpop.f32.mrf.mxu0
  %v489 = vadd.f32 %v387, %v488
  %490 = vmatmul.f32.gmra.mxu0 %v427
  %v491 = vpop.f32.mrf.mxu0
  %v492 = vadd.f32 %v387, %v491
  %493 = vmatmul.f32.gmra.mxu0 %v430
  %v494 = vpop.f32.mrf.mxu0
  %v495 = vadd.f32 %v387, %v494
  %496 = vmatmul.f32.gmra.mxu0 %v433
  %v497 = vpop.f32.mrf.mxu0
  %v498 = vadd.f32 %v387, %v497
  %499 = vmatmul.f32.gmra.mxu0 %v436
  %v500 = vpop.f32.mrf.mxu0
  %v501 = vadd.f32 %v387, %v500
  %502 = vdwg.mxu0
  %503 = vst [vmem:[%s8] sm:$0xff] %v456
  %504 = vst [vmem:[%s8 + $0x8] sm:$0xff] %v459
  %505 = vst [vmem:[%s8 + $0x10] sm:$0xff] %v462
  %506 = vst [vmem:[%s8 + $0x18] sm:$0xff] %v465
  %507 = vst [vmem:[%s8 + $0x20] sm:$0xff] %v468
  %508 = vst [vmem:[%s8 + $0x28] sm:$0xff] %v471
  %509 = vst [vmem:[%s8 + $0x30] sm:$0xff] %v474
  %510 = vst [vmem:[%s8 + $0x38] sm:$0xff] %v477
  %511 = vst [vmem:[%s8 + $0x40] sm:$0xff] %v480
  %512 = vst [vmem:[%s8 + $0x48] sm:$0xff] %v483
  %513 = vst [vmem:[%s8 + $0x50] sm:$0xff] %v486
  %514 = vst [vmem:[%s8 + $0x58] sm:$0xff] %v489
  %515 = vst [vmem:[%s8 + $0x60] sm:$0xff] %v492
  %516 = vst [vmem:[%s8 + $0x68] sm:$0xff] %v495
  %517 = vst [vmem:[%s8 + $0x70] sm:$0xff] %v498
  %518 = vst [vmem:[%s8 + $0x78] sm:$0xff] %v501
  %v519 = vld [vmem:[%s5] sm:$0xff]
  %v520 = vld [vmem:[%s5 + $0x8] sm:$0xff]
  %v521 = vld [vmem:[%s5 + $0x10] sm:$0xff]
  %v522 = vld [vmem:[%s5 + $0x18] sm:$0xff]
  %v523 = vld [vmem:[%s5 + $0x20] sm:$0xff]
  %v524 = vld [vmem:[%s5 + $0x28] sm:$0xff]
  %v525 = vld [vmem:[%s5 + $0x30] sm:$0xff]
  %v526 = vld [vmem:[%s5 + $0x38] sm:$0xff]
  %v527 = vld [vmem:[%s5 + $0x40] sm:$0xff]
  %v528 = vld [vmem:[%s5 + $0x48] sm:$0xff]
  %v529 = vld [vmem:[%s5 + $0x50] sm:$0xff]
  %v530 = vld [vmem:[%s5 + $0x58] sm:$0xff]
  %v531 = vld [vmem:[%s5 + $0x60] sm:$0xff]
  %v532 = vld [vmem:[%s5 + $0x68] sm:$0xff]
  %v533 = vld [vmem:[%s5 + $0x70] sm:$0xff]
  %v534 = vld [vmem:[%s5 + $0x78] sm:$0xff]
  %v535 = vld [vmem:[%s6] sm:$0xff]
  %v536 = vld [vmem:[%s6 + $0x8] sm:$0xff]
  %v537 = vld [vmem:[%s6 + $0x10] sm:$0xff]
  %v538 = vld [vmem:[%s6 + $0x18] sm:$0xff]
  %v539 = vld [vmem:[%s6 + $0x20] sm:$0xff]
  %v540 = vld [vmem:[%s6 + $0x28] sm:$0xff]
  %v541 = vld [vmem:[%s6 + $0x30] sm:$0xff]
  %v542 = vld [vmem:[%s6 + $0x38] sm:$0xff]
  %v543 = vld [vmem:[%s6 + $0x40] sm:$0xff]
  %v544 = vld [vmem:[%s6 + $0x48] sm:$0xff]
  %v545 = vld [vmem:[%s6 + $0x50] sm:$0xff]
  %v546 = vld [vmem:[%s6 + $0x58] sm:$0xff]
  %v547 = vld [vmem:[%s6 + $0x60] sm:$0xff]
  %v548 = vld [vmem:[%s6 + $0x68] sm:$0xff]
  %v549 = vld [vmem:[%s6 + $0x70] sm:$0xff]
  %v550 = vld [vmem:[%s6 + $0x78] sm:$0xff]
  %v551 = vld [vmem:[%s7] sm:$0x1]
  %v553 = vperm.slane %v551, 0
  %v555 = vmul.f32 %v456, 0.1
  %v556 = vmul.f32 %v459, 0.1
  %v557 = vmul.f32 %v462, 0.1
  %v558 = vmul.f32 %v465, 0.1
  %v559 = vmul.f32 %v468, 0.1
  %v560 = vmul.f32 %v471, 0.1
  %v561 = vmul.f32 %v474, 0.1
  %v562 = vmul.f32 %v477, 0.1
  %v563 = vmul.f32 %v480, 0.1
  %v564 = vmul.f32 %v483, 0.1
  %v565 = vmul.f32 %v486, 0.1
  %v566 = vmul.f32 %v489, 0.1
  %v567 = vmul.f32 %v492, 0.1
  %v568 = vmul.f32 %v495, 0.1
  %v569 = vmul.f32 %v498, 0.1
  %v570 = vmul.f32 %v501, 0.1
  %v571 = vmul.f32 %v555, %v519
  %v572 = vmul.f32 %v556, %v520
  %v573 = vmul.f32 %v557, %v521
  %v574 = vmul.f32 %v558, %v522
  %v575 = vmul.f32 %v559, %v523
  %v576 = vmul.f32 %v560, %v524
  %v577 = vmul.f32 %v561, %v525
  %v578 = vmul.f32 %v562, %v526
  %v579 = vmul.f32 %v563, %v527
  %v580 = vmul.f32 %v564, %v528
  %v581 = vmul.f32 %v565, %v529
  %v582 = vmul.f32 %v566, %v530
  %v583 = vmul.f32 %v567, %v531
  %v584 = vmul.f32 %v568, %v532
  %v585 = vmul.f32 %v569, %v533
  %v586 = vmul.f32 %v570, %v534
  %v587 = vadd.f32 %v571, %v535
  %v588 = vadd.f32 %v572, %v536
  %v589 = vadd.f32 %v573, %v537
  %v590 = vadd.f32 %v574, %v538
  %v591 = vadd.f32 %v575, %v539
  %v592 = vadd.f32 %v576, %v540
  %v593 = vadd.f32 %v577, %v541
  %v594 = vadd.f32 %v578, %v542
  %v595 = vadd.f32 %v579, %v543
  %v596 = vadd.f32 %v580, %v544
  %v597 = vadd.f32 %v581, %v545
  %v598 = vadd.f32 %v582, %v546
  %v599 = vadd.f32 %v583, %v547
  %v600 = vadd.f32 %v584, %v548
  %v601 = vadd.f32 %v585, %v549
  %v602 = vadd.f32 %v586, %v550
  %v603 = vmul.f32 %v456, 0.2
  %v604 = vmul.f32 %v459, 0.2
  %v605 = vmul.f32 %v462, 0.2
  %v606 = vmul.f32 %v465, 0.2
  %v607 = vmul.f32 %v468, 0.2
  %v608 = vmul.f32 %v471, 0.2
  %v609 = vmul.f32 %v474, 0.2
  %v610 = vmul.f32 %v477, 0.2
  %v611 = vmul.f32 %v480, 0.2
  %v612 = vmul.f32 %v483, 0.2
  %v613 = vmul.f32 %v486, 0.2
  %v614 = vmul.f32 %v489, 0.2
  %v615 = vmul.f32 %v492, 0.2
  %v616 = vmul.f32 %v495, 0.2
  %v617 = vmul.f32 %v498, 0.2
  %v618 = vmul.f32 %v501, 0.2
  %v619 = vmul.f32 %v603, 1.442695
  %v620 = vpow.pop %v619
  %v621 = vmul.f32 %v604, 1.442695
  %v622 = vpow.pop %v621
  %v623 = vmul.f32 %v605, 1.442695
  %v624 = vpow.pop %v623
  %v625 = vmul.f32 %v606, 1.442695
  %v626 = vpow.pop %v625
  %v627 = vmul.f32 %v607, 1.442695
  %v628 = vpow.pop %v627
  %v629 = vmul.f32 %v608, 1.442695
  %v630 = vpow.pop %v629
  %v631 = vmul.f32 %v609, 1.442695
  %v632 = vpow.pop %v631
  %v633 = vmul.f32 %v610, 1.442695
  %v634 = vpow.pop %v633
  %v635 = vmul.f32 %v611, 1.442695
  %v636 = vpow.pop %v635
  %v637 = vmul.f32 %v612, 1.442695
  %v638 = vpow.pop %v637
  %v639 = vmul.f32 %v613, 1.442695
  %v640 = vpow.pop %v639
  %v641 = vmul.f32 %v614, 1.442695
  %v642 = vpow.pop %v641
  %v643 = vmul.f32 %v615, 1.442695
  %v644 = vpow.pop %v643
  %v645 = vmul.f32 %v616, 1.442695
  %v646 = vpow.pop %v645
  %v647 = vmul.f32 %v617, 1.442695
  %v648 = vpow.pop %v647
  %v649 = vmul.f32 %v618, 1.442695
  %v650 = vpow.pop %v649
  %v651 = vmul.f32 %v620, %v519
  %v652 = vmul.f32 %v622, %v520
  %v653 = vmul.f32 %v624, %v521
  %v654 = vmul.f32 %v626, %v522
  %v655 = vmul.f32 %v628, %v523
  %v656 = vmul.f32 %v630, %v524
  %v657 = vmul.f32 %v632, %v525
  %v658 = vmul.f32 %v634, %v526
  %v659 = vmul.f32 %v636, %v527
  %v660 = vmul.f32 %v638, %v528
  %v661 = vmul.f32 %v640, %v529
  %v662 = vmul.f32 %v642, %v530
  %v663 = vmul.f32 %v644, %v531
  %v664 = vmul.f32 %v646, %v532
  %v665 = vmul.f32 %v648, %v533
  %v666 = vmul.f32 %v650, %v534
  %v667 = vxor.u32 %v456, 2147483648
  %v668 = vxor.u32 %v459, 2147483648
  %v669 = vxor.u32 %v462, 2147483648
  %v670 = vxor.u32 %v465, 2147483648
  %v671 = vxor.u32 %v468, 2147483648
  %v672 = vxor.u32 %v471, 2147483648
  %v673 = vxor.u32 %v474, 2147483648
  %v674 = vxor.u32 %v477, 2147483648
  %v675 = vxor.u32 %v480, 2147483648
  %v676 = vxor.u32 %v483, 2147483648
  %v677 = vxor.u32 %v486, 2147483648
  %v678 = vxor.u32 %v489, 2147483648
  %v679 = vxor.u32 %v492, 2147483648
  %v680 = vxor.u32 %v495, 2147483648
  %v681 = vxor.u32 %v498, 2147483648
  %v682 = vxor.u32 %v501, 2147483648
  %v683 = vmul.f32 %v667, 1.442695
  %v684 = vpow.pop %v683
  %v685 = vmul.f32 %v668, 1.442695
  %v686 = vpow.pop %v685
  %v687 = vmul.f32 %v669, 1.442695
  %v688 = vpow.pop %v687
  %v689 = vmul.f32 %v670, 1.442695
  %v690 = vpow.pop %v689
  %v691 = vmul.f32 %v671, 1.442695
  %v692 = vpow.pop %v691
  %v693 = vmul.f32 %v672, 1.442695
  %v694 = vpow.pop %v693
  %v695 = vmul.f32 %v673, 1.442695
  %v696 = vpow.pop %v695
  %v697 = vmul.f32 %v674, 1.442695
  %v698 = vpow.pop %v697
  %v699 = vmul.f32 %v675, 1.442695
  %v700 = vpow.pop %v699
  %v701 = vmul.f32 %v676, 1.442695
  %v702 = vpow.pop %v701
  %v703 = vmul.f32 %v677, 1.442695
  %v704 = vpow.pop %v703
  %v705 = vmul.f32 %v678, 1.442695
  %v706 = vpow.pop %v705
  %v707 = vmul.f32 %v679, 1.442695
  %v708 = vpow.pop %v707
  %v709 = vmul.f32 %v680, 1.442695
  %v710 = vpow.pop %v709
  %v711 = vmul.f32 %v681, 1.442695
  %v712 = vpow.pop %v711
  %v713 = vmul.f32 %v682, 1.442695
  %v714 = vpow.pop %v713
  %v715 = vadd.f32 %v684, 1.0
  %v716 = vadd.f32 %v686, 1.0
  %v717 = vadd.f32 %v688, 1.0
  %v718 = vadd.f32 %v690, 1.0
  %v719 = vadd.f32 %v692, 1.0
  %v720 = vadd.f32 %v694, 1.0
  %v721 = vadd.f32 %v696, 1.0
  %v722 = vadd.f32 %v698, 1.0
  %v723 = vadd.f32 %v700, 1.0
  %v724 = vadd.f32 %v702, 1.0
  %v725 = vadd.f32 %v704, 1.0
  %v726 = vadd.f32 %v706, 1.0
  %v727 = vadd.f32 %v708, 1.0
  %v728 = vadd.f32 %v710, 1.0
  %v729 = vadd.f32 %v712, 1.0
  %v730 = vadd.f32 %v714, 1.0
  %v731 = vrcp.pop %v715
  %v732 = vmul.f32 %v715, %v731
  %v733 = vsub.f32 1.0, %v732
  %v734 = vmul.f32 %v731, %v733
  %v735 = vadd.f32 %v731, %v734
  %vm736 = vweird.f32 %v715
  %vm737 = vweird.f32 %v731
  %vm738 = vmor %vm736, %vm737
  %v739 = vsel %vm738, %v731, %v735
  %v740 = vand.u32 2147483647, %v715
  %vm741 = vcmp.eq.f32.partialorder %v740, 8.507059e+37
  %v742 = vand.u32 %v715, 2147483648
  %v743 = vor.u32 1.1754944e-38, %v742
  %v744 = vsel %vm741, %v743, %v739
  %v745 = vmul.f32 1.0, %v744
  %v746 = vrcp.pop %v716
  %v747 = vmul.f32 %v716, %v746
  %v748 = vsub.f32 1.0, %v747
  %v749 = vmul.f32 %v746, %v748
  %v750 = vadd.f32 %v746, %v749
  %vm751 = vweird.f32 %v716
  %vm752 = vweird.f32 %v746
  %vm753 = vmor %vm751, %vm752
  %v754 = vsel %vm753, %v746, %v750
  %v755 = vand.u32 2147483647, %v716
  %vm756 = vcmp.eq.f32.partialorder %v755, 8.507059e+37
  %v757 = vand.u32 %v716, 2147483648
  %v758 = vor.u32 1.1754944e-38, %v757
  %v759 = vsel %vm756, %v758, %v754
  %v760 = vmul.f32 1.0, %v759
  %v761 = vrcp.pop %v717
  %v762 = vmul.f32 %v717, %v761
  %v763 = vsub.f32 1.0, %v762
  %v764 = vmul.f32 %v761, %v763
  %v765 = vadd.f32 %v761, %v764
  %vm766 = vweird.f32 %v717
  %vm767 = vweird.f32 %v761
  %vm768 = vmor %vm766, %vm767
  %v769 = vsel %vm768, %v761, %v765
  %v770 = vand.u32 2147483647, %v717
  %vm771 = vcmp.eq.f32.partialorder %v770, 8.507059e+37
  %v772 = vand.u32 %v717, 2147483648
  %v773 = vor.u32 1.1754944e-38, %v772
  %v774 = vsel %vm771, %v773, %v769
  %v775 = vmul.f32 1.0, %v774
  %v776 = vrcp.pop %v718
  %v777 = vmul.f32 %v718, %v776
  %v778 = vsub.f32 1.0, %v777
  %v779 = vmul.f32 %v776, %v778
  %v780 = vadd.f32 %v776, %v779
  %vm781 = vweird.f32 %v718
  %vm782 = vweird.f32 %v776
  %vm783 = vmor %vm781, %vm782
  %v784 = vsel %vm783, %v776, %v780
  %v785 = vand.u32 2147483647, %v718
  %vm786 = vcmp.eq.f32.partialorder %v785, 8.507059e+37
  %v787 = vand.u32 %v718, 2147483648
  %v788 = vor.u32 1.1754944e-38, %v787
  %v789 = vsel %vm786, %v788, %v784
  %v790 = vmul.f32 1.0, %v789
  %v791 = vrcp.pop %v719
  %v792 = vmul.f32 %v719, %v791
  %v793 = vsub.f32 1.0, %v792
  %v794 = vmul.f32 %v791, %v793
  %v795 = vadd.f32 %v791, %v794
  %vm796 = vweird.f32 %v719
  %vm797 = vweird.f32 %v791
  %vm798 = vmor %vm796, %vm797
  %v799 = vsel %vm798, %v791, %v795
  %v800 = vand.u32 2147483647, %v719
  %vm801 = vcmp.eq.f32.partialorder %v800, 8.507059e+37
  %v802 = vand.u32 %v719, 2147483648
  %v803 = vor.u32 1.1754944e-38, %v802
  %v804 = vsel %vm801, %v803, %v799
  %v805 = vmul.f32 1.0, %v804
  %v806 = vrcp.pop %v720
  %v807 = vmul.f32 %v720, %v806
  %v808 = vsub.f32 1.0, %v807
  %v809 = vmul.f32 %v806, %v808
  %v810 = vadd.f32 %v806, %v809
  %vm811 = vweird.f32 %v720
  %vm812 = vweird.f32 %v806
  %vm813 = vmor %vm811, %vm812
  %v814 = vsel %vm813, %v806, %v810
  %v815 = vand.u32 2147483647, %v720
  %vm816 = vcmp.eq.f32.partialorder %v815, 8.507059e+37
  %v817 = vand.u32 %v720, 2147483648
  %v818 = vor.u32 1.1754944e-38, %v817
  %v819 = vsel %vm816, %v818, %v814
  %v820 = vmul.f32 1.0, %v819
  %v821 = vrcp.pop %v721
  %v822 = vmul.f32 %v721, %v821
  %v823 = vsub.f32 1.0, %v822
  %v824 = vmul.f32 %v821, %v823
  %v825 = vadd.f32 %v821, %v824
  %vm826 = vweird.f32 %v721
  %vm827 = vweird.f32 %v821
  %vm828 = vmor %vm826, %vm827
  %v829 = vsel %vm828, %v821, %v825
  %v830 = vand.u32 2147483647, %v721
  %vm831 = vcmp.eq.f32.partialorder %v830, 8.507059e+37
  %v832 = vand.u32 %v721, 2147483648
  %v833 = vor.u32 1.1754944e-38, %v832
  %v834 = vsel %vm831, %v833, %v829
  %v835 = vmul.f32 1.0, %v834
  %v836 = vrcp.pop %v722
  %v837 = vmul.f32 %v722, %v836
  %v838 = vsub.f32 1.0, %v837
  %v839 = vmul.f32 %v836, %v838
  %v840 = vadd.f32 %v836, %v839
  %vm841 = vweird.f32 %v722
  %vm842 = vweird.f32 %v836
  %vm843 = vmor %vm841, %vm842
  %v844 = vsel %vm843, %v836, %v840
  %v845 = vand.u32 2147483647, %v722
  %vm846 = vcmp.eq.f32.partialorder %v845, 8.507059e+37
  %v847 = vand.u32 %v722, 2147483648
  %v848 = vor.u32 1.1754944e-38, %v847
  %v849 = vsel %vm846, %v848, %v844
  %v850 = vmul.f32 1.0, %v849
  %v851 = vrcp.pop %v723
  %v852 = vmul.f32 %v723, %v851
  %v853 = vsub.f32 1.0, %v852
  %v854 = vmul.f32 %v851, %v853
  %v855 = vadd.f32 %v851, %v854
  %vm856 = vweird.f32 %v723
  %vm857 = vweird.f32 %v851
  %vm858 = vmor %vm856, %vm857
  %v859 = vsel %vm858, %v851, %v855
  %v860 = vand.u32 2147483647, %v723
  %vm861 = vcmp.eq.f32.partialorder %v860, 8.507059e+37
  %v862 = vand.u32 %v723, 2147483648
  %v863 = vor.u32 1.1754944e-38, %v862
  %v864 = vsel %vm861, %v863, %v859
  %v865 = vmul.f32 1.0, %v864
  %v866 = vrcp.pop %v724
  %v867 = vmul.f32 %v724, %v866
  %v868 = vsub.f32 1.0, %v867
  %v869 = vmul.f32 %v866, %v868
  %v870 = vadd.f32 %v866, %v869
  %vm871 = vweird.f32 %v724
  %vm872 = vweird.f32 %v866
  %vm873 = vmor %vm871, %vm872
  %v874 = vsel %vm873, %v866, %v870
  %v875 = vand.u32 2147483647, %v724
  %vm876 = vcmp.eq.f32.partialorder %v875, 8.507059e+37
  %v877 = vand.u32 %v724, 2147483648
  %v878 = vor.u32 1.1754944e-38, %v877
  %v879 = vsel %vm876, %v878, %v874
  %v880 = vmul.f32 1.0, %v879
  %v881 = vrcp.pop %v725
  %v882 = vmul.f32 %v725, %v881
  %v883 = vsub.f32 1.0, %v882
  %v884 = vmul.f32 %v881, %v883
  %v885 = vadd.f32 %v881, %v884
  %vm886 = vweird.f32 %v725
  %vm887 = vweird.f32 %v881
  %vm888 = vmor %vm886, %vm887
  %v889 = vsel %vm888, %v881, %v885
  %v890 = vand.u32 2147483647, %v725
  %vm891 = vcmp.eq.f32.partialorder %v890, 8.507059e+37
  %v892 = vand.u32 %v725, 2147483648
  %v893 = vor.u32 1.1754944e-38, %v892
  %v894 = vsel %vm891, %v893, %v889
  %v895 = vmul.f32 1.0, %v894
  %v896 = vrcp.pop %v726
  %v897 = vmul.f32 %v726, %v896
  %v898 = vsub.f32 1.0, %v897
  %v899 = vmul.f32 %v896, %v898
  %v900 = vadd.f32 %v896, %v899
  %vm901 = vweird.f32 %v726
  %vm902 = vweird.f32 %v896
  %vm903 = vmor %vm901, %vm902
  %v904 = vsel %vm903, %v896, %v900
  %v905 = vand.u32 2147483647, %v726
  %vm906 = vcmp.eq.f32.partialorder %v905, 8.507059e+37
  %v907 = vand.u32 %v726, 2147483648
  %v908 = vor.u32 1.1754944e-38, %v907
  %v909 = vsel %vm906, %v908, %v904
  %v910 = vmul.f32 1.0, %v909
  %v911 = vrcp.pop %v727
  %v912 = vmul.f32 %v727, %v911
  %v913 = vsub.f32 1.0, %v912
  %v914 = vmul.f32 %v911, %v913
  %v915 = vadd.f32 %v911, %v914
  %vm916 = vweird.f32 %v727
  %vm917 = vweird.f32 %v911
  %vm918 = vmor %vm916, %vm917
  %v919 = vsel %vm918, %v911, %v915
  %v920 = vand.u32 2147483647, %v727
  %vm921 = vcmp.eq.f32.partialorder %v920, 8.507059e+37
  %v922 = vand.u32 %v727, 2147483648
  %v923 = vor.u32 1.1754944e-38, %v922
  %v924 = vsel %vm921, %v923, %v919
  %v925 = vmul.f32 1.0, %v924
  %v926 = vrcp.pop %v728
  %v927 = vmul.f32 %v728, %v926
  %v928 = vsub.f32 1.0, %v927
  %v929 = vmul.f32 %v926, %v928
  %v930 = vadd.f32 %v926, %v929
  %vm931 = vweird.f32 %v728
  %vm932 = vweird.f32 %v926
  %vm933 = vmor %vm931, %vm932
  %v934 = vsel %vm933, %v926, %v930
  %v935 = vand.u32 2147483647, %v728
  %vm936 = vcmp.eq.f32.partialorder %v935, 8.507059e+37
  %v937 = vand.u32 %v728, 2147483648
  %v938 = vor.u32 1.1754944e-38, %v937
  %v939 = vsel %vm936, %v938, %v934
  %v940 = vmul.f32 1.0, %v939
  %v941 = vrcp.pop %v729
  %v942 = vmul.f32 %v729, %v941
  %v943 = vsub.f32 1.0, %v942
  %v944 = vmul.f32 %v941, %v943
  %v945 = vadd.f32 %v941, %v944
  %vm946 = vweird.f32 %v729
  %vm947 = vweird.f32 %v941
  %vm948 = vmor %vm946, %vm947
  %v949 = vsel %vm948, %v941, %v945
  %v950 = vand.u32 2147483647, %v729
  %vm951 = vcmp.eq.f32.partialorder %v950, 8.507059e+37
  %v952 = vand.u32 %v729, 2147483648
  %v953 = vor.u32 1.1754944e-38, %v952
  %v954 = vsel %vm951, %v953, %v949
  %v955 = vmul.f32 1.0, %v954
  %v956 = vrcp.pop %v730
  %v957 = vmul.f32 %v730, %v956
  %v958 = vsub.f32 1.0, %v957
  %v959 = vmul.f32 %v956, %v958
  %v960 = vadd.f32 %v956, %v959
  %vm961 = vweird.f32 %v730
  %vm962 = vweird.f32 %v956
  %vm963 = vmor %vm961, %vm962
  %v964 = vsel %vm963, %v956, %v960
  %v965 = vand.u32 2147483647, %v730
  %vm966 = vcmp.eq.f32.partialorder %v965, 8.507059e+37
  %v967 = vand.u32 %v730, 2147483648
  %v968 = vor.u32 1.1754944e-38, %v967
  %v969 = vsel %vm966, %v968, %v964
  %v970 = vmul.f32 1.0, %v969
  %vm971 = vcmp.lt.f32.partialorder %v553, 0.5
  %vm972 = vcmp.lt.f32.partialorder %v553, 1.5
  %v973 = vsel %vm972, %v651, %v745
  %v974 = vsel %vm972, %v652, %v760
  %v975 = vsel %vm972, %v653, %v775
  %v976 = vsel %vm972, %v654, %v790
  %v977 = vsel %vm972, %v655, %v805
  %v978 = vsel %vm972, %v656, %v820
  %v979 = vsel %vm972, %v657, %v835
  %v980 = vsel %vm972, %v658, %v850
  %v981 = vsel %vm972, %v659, %v865
  %v982 = vsel %vm972, %v660, %v880
  %v983 = vsel %vm972, %v661, %v895
  %v984 = vsel %vm972, %v662, %v910
  %v985 = vsel %vm972, %v663, %v925
  %v986 = vsel %vm972, %v664, %v940
  %v987 = vsel %vm972, %v665, %v955
  %v988 = vsel %vm972, %v666, %v970
  %v989 = vsel %vm971, %v587, %v973
  %v990 = vsel %vm971, %v588, %v974
  %v991 = vsel %vm971, %v589, %v975
  %v992 = vsel %vm971, %v590, %v976
  %v993 = vsel %vm971, %v591, %v977
  %v994 = vsel %vm971, %v592, %v978
  %v995 = vsel %vm971, %v593, %v979
  %v996 = vsel %vm971, %v594, %v980
  %v997 = vsel %vm971, %v595, %v981
  %v998 = vsel %vm971, %v596, %v982
  %v999 = vsel %vm971, %v597, %v983
  %v1000 = vsel %vm971, %v598, %v984
  %v1001 = vsel %vm971, %v599, %v985
  %v1002 = vsel %vm971, %v600, %v986
  %v1003 = vsel %vm971, %v601, %v987
  %v1004 = vsel %vm971, %v602, %v988
  %1005 = vst [vmem:[%s9] sm:$0xff] %v989
  %1006 = vst [vmem:[%s9 + $0x8] sm:$0xff] %v990
  %1007 = vst [vmem:[%s9 + $0x10] sm:$0xff] %v991
  %1008 = vst [vmem:[%s9 + $0x18] sm:$0xff] %v992
  %1009 = vst [vmem:[%s9 + $0x20] sm:$0xff] %v993
  %1010 = vst [vmem:[%s9 + $0x28] sm:$0xff] %v994
  %1011 = vst [vmem:[%s9 + $0x30] sm:$0xff] %v995
  %1012 = vst [vmem:[%s9 + $0x38] sm:$0xff] %v996
  %1013 = vst [vmem:[%s9 + $0x40] sm:$0xff] %v997
  %1014 = vst [vmem:[%s9 + $0x48] sm:$0xff] %v998
  %1015 = vst [vmem:[%s9 + $0x50] sm:$0xff] %v999
  %1016 = vst [vmem:[%s9 + $0x58] sm:$0xff] %v1000
  %1017 = vst [vmem:[%s9 + $0x60] sm:$0xff] %v1001
  %1018 = vst [vmem:[%s9 + $0x68] sm:$0xff] %v1002
  %1019 = vst [vmem:[%s9 + $0x70] sm:$0xff] %v1003
  %1020 = vst [vmem:[%s9 + $0x78] sm:$0xff] %v1004
  // Predicated region
  $region34: #{td_net_forward.5} parent=0 // pred_check
    _
  $region35: #{td_net_forward.5} parent=0 // pred_check_branch
    %1022 = sbr.rel (0) target = $region37
  $region36: #{td_net_forward.5} parent=0 // pred_region
    _
  $region37: #{td_net_forward.5} parent=0 // pred_fallthru
    _
  // Predicated region
  $region38: #{td_net_forward.5} parent=0 // pred_check
    _
  $region39: #{td_net_forward.5} parent=0 // pred_check_branch
    %1024 = sbr.rel (0) target = $region41
  $region40: #{td_net_forward.5} parent=0 // pred_region
    _
  $region41: #{td_net_forward.5} parent=0 // pred_fallthru
    _
  // Predicated region
  $region42: #{td_net_forward.5} parent=0 // pred_check
    _
  $region43: #{td_net_forward.5} parent=0 // pred_check_branch
    %1026 = sbr.rel (0) target = $region45
  $region44: #{td_net_forward.5} parent=0 // pred_region
    _
  $region45: #{td_net_forward.5} parent=0 // pred_fallthru
    _
  // Predicated region
  $region46: #{td_net_forward.5} parent=0 // pred_check
    _
  $region47: #{td_net_forward.5} parent=0 // pred_check_branch
    %1028 = sbr.rel (0) target = $region49
  $region48: #{td_net_forward.5} parent=0 // pred_region
    _
  $region49: #{td_net_forward.5} parent=0 // pred_fallthru
    _

// kernel: td_net_forward.6
$region0: #{td_net_forward.6}
  #allocation0 [shape = 'u32[]', space=smem, size = 0x4, offset = 0x4, fixed_abs, tag = 'smem constant byte address 0x4 - core index']
  #allocation1 [shape = 'u32[72,128]{1,0:T(1,128)}', space=vmem, size = 0x9000, scoped, tag = 'internal scratch']
  %s0 = inlined_call_operand.vmem [shape: f32[32,3], index: 0, kind: input, shape index: {}]
  %s1 = inlined_call_operand.vmem [shape: f32[3,128], index: 1, kind: input, shape index: {}]
  %s2 = inlined_call_operand.vmem [shape: f32[1,128], index: 2, kind: input, shape index: {}]
  %s3 = inlined_call_operand.vmem [shape: f32[128,128], index: 3, kind: input, shape index: {}]
  %s4 = inlined_call_operand.vmem [shape: f32[1,128], index: 4, kind: input, shape index: {}]
  %s5 = inlined_call_operand.vmem [shape: f32[32,128], index: 5, kind: input, shape index: {}]
  %s6 = inlined_call_operand.vmem [shape: f32[32,128], index: 6, kind: input, shape index: {}]
  %s7 = inlined_call_operand.vmem [shape: f32[1,128], index: 7, kind: input, shape index: {}]
  %s8 = inlined_call_operand.vmem [shape: f32[32,128], index: 8, kind: output, shape index: {0}]
  %s9 = inlined_call_operand.vmem [shape: f32[32,128], index: 9, kind: output, shape index: {1}]
  %10 = xla_tuple %s8, %s9
  %s11 = sld [smem:[#allocation0]]
  $region50: #{td_net_forward.6} parent=0
    _
  %s13 = ssub.s32 1, %s11
  %s14 = scalar_select 0, %s13, %s11
  // Predicated region
  $region2: #{td_net_forward.6} parent=0 // pred_check
    _
  $region3: #{td_net_forward.6} parent=0 // pred_check_branch
    %16 = sbr.rel (0) target = $region5
  $region4: #{td_net_forward.6} parent=0 // pred_region
    _
  $region5: #{td_net_forward.6} parent=0 // pred_fallthru
    _
  // Predicated region
  $region6: #{td_net_forward.6} parent=0 // pred_check
    _
  $region7: #{td_net_forward.6} parent=0 // pred_check_branch
    %18 = sbr.rel (0) target = $region9
  $region8: #{td_net_forward.6} parent=0 // pred_region
    _
  $region9: #{td_net_forward.6} parent=0 // pred_fallthru
    _
  // Predicated region
  $region10: #{td_net_forward.6} parent=0 // pred_check
    _
  $region11: #{td_net_forward.6} parent=0 // pred_check_branch
    %20 = sbr.rel (0) target = $region13
  $region12: #{td_net_forward.6} parent=0 // pred_region
    _
  $region13: #{td_net_forward.6} parent=0 // pred_fallthru
    _
  // Predicated region
  $region14: #{td_net_forward.6} parent=0 // pred_check
    _
  $region15: #{td_net_forward.6} parent=0 // pred_check_branch
    %22 = sbr.rel (0) target = $region17
  $region16: #{td_net_forward.6} parent=0 // pred_region
    _
  $region17: #{td_net_forward.6} parent=0 // pred_fallthru
    _
  // Predicated region
  $region18: #{td_net_forward.6} parent=0 // pred_check
    _
  $region19: #{td_net_forward.6} parent=0 // pred_check_branch
    %24 = sbr.rel (0) target = $region21
  $region20: #{td_net_forward.6} parent=0 // pred_region
    _
  $region21: #{td_net_forward.6} parent=0 // pred_fallthru
    _
  // Predicated region
  $region22: #{td_net_forward.6} parent=0 // pred_check
    _
  $region23: #{td_net_forward.6} parent=0 // pred_check_branch
    %26 = sbr.rel (0) target = $region25
  $region24: #{td_net_forward.6} parent=0 // pred_region
    _
  $region25: #{td_net_forward.6} parent=0 // pred_fallthru
    _
  // Predicated region
  $region26: #{td_net_forward.6} parent=0 // pred_check
    _
  $region27: #{td_net_forward.6} parent=0 // pred_check_branch
    %28 = sbr.rel (0) target = $region29
  $region28: #{td_net_forward.6} parent=0 // pred_region
    _
  $region29: #{td_net_forward.6} parent=0 // pred_fallthru
    _
  // Predicated region
  $region30: #{td_net_forward.6} parent=0 // pred_check
    _
  $region31: #{td_net_forward.6} parent=0 // pred_check_branch
    %30 = sbr.rel (0) target = $region33
  $region32: #{td_net_forward.6} parent=0 // pred_region
    _
  $region33: #{td_net_forward.6} parent=0 // pred_fallthru
    _
  %v31 = vld [vmem:[%s0] sm:$0xff]
  %v32 = vld [vmem:[%s0 + $0x8] sm:$0xff]
  %v33 = vld [vmem:[%s0 + $0x10] sm:$0xff]
  %v34 = vld [vmem:[%s0 + $0x18] sm:$0xff]
  %v35 = vld [vmem:[%s2] sm:$0x1]
  %v36 = vld [vmem:[%s1] sm:$0x1]
  %38 = vset.pattern.permute.xlu0 0
  %39 = vperm.xlu0 %38, %v31
  %v40 = vpop.permute.xlu0 %39
  %43 = vset.pattern.permute.xlu0 0
  %44 = vperm.xlu0 %43, %v32
  %v45 = vpop.permute.xlu0 %44
  %48 = vset.pattern.permute.xlu0 0
  %49 = vperm.xlu0 %48, %v33
  %v50 = vpop.permute.xlu0 %49
  %53 = vset.pattern.permute.xlu0 0
  %54 = vperm.xlu0 %53, %v34
  %v55 = vpop.permute.xlu0 %54
  %v57 = vperm.slane %v36, 0
  %v58 = vmul.f32 %v40, %v57
  %v59 = vmul.f32 %v45, %v57
  %v60 = vmul.f32 %v50, %v57
  %v61 = vmul.f32 %v55, %v57
  %v63 = vperm.slane %v35, 0
  %v65 = vadd.f32 %v63, %v58
  %v66 = vadd.f32 %v63, %v59
  %v67 = vadd.f32 %v63, %v60
  %v68 = vadd.f32 %v63, %v61
  %v69 = vld [vmem:[%s1 + $0x1] sm:$0x1]
  %70 = vset.pattern.permute.xlu0 1
  %71 = vperm.xlu0 %70, %v31
  %v72 = vpop.permute.xlu0 %71
  %74 = vset.pattern.permute.xlu0 1
  %75 = vperm.xlu0 %74, %v32
  %v76 = vpop.permute.xlu0 %75
  %78 = vset.pattern.permute.xlu0 1
  %79 = vperm.xlu0 %78, %v33
  %v80 = vpop.permute.xlu0 %79
  %82 = vset.pattern.permute.xlu0 1
  %83 = vperm.xlu0 %82, %v34
  %v84 = vpop.permute.xlu0 %83
  %v86 = vperm.slane %v69, 0
  %v87 = vmul.f32 %v72, %v86
  %v88 = vmul.f32 %v76, %v86
  %v89 = vmul.f32 %v80, %v86
  %v90 = vmul.f32 %v84, %v86
  %v91 = vadd.f32 %v65, %v87
  %v92 = vadd.f32 %v66, %v88
  %v93 = vadd.f32 %v67, %v89
  %v94 = vadd.f32 %v68, %v90
  %v95 = vld [vmem:[%s1 + $0x2] sm:$0x1]
  %96 = vset.pattern.permute.xlu0 2
  %97 = vperm.xlu0 %96, %v31
  %v98 = vpop.permute.xlu0 %97
  %100 = vset.pattern.permute.xlu0 2
  %101 = vperm.xlu0 %100, %v32
  %v102 = vpop.permute.xlu0 %101
  %104 = vset.pattern.permute.xlu0 2
  %105 = vperm.xlu0 %104, %v33
  %v106 = vpop.permute.xlu0 %105
  %108 = vset.pattern.permute.xlu0 2
  %109 = vperm.xlu0 %108, %v34
  %v110 = vpop.permute.xlu0 %109
  %v112 = vperm.slane %v95, 0
  %v113 = vmul.f32 %v98, %v112
  %v114 = vmul.f32 %v102, %v112
  %v115 = vmul.f32 %v106, %v112
  %v116 = vmul.f32 %v110, %v112
  %v117 = vadd.f32 %v91, %v113
  %v118 = vadd.f32 %v92, %v114
  %v119 = vadd.f32 %v93, %v115
  %v120 = vadd.f32 %v94, %v116
  %v121 = vmax.f32 %v117, 0.0
  %v122 = vmax.f32 %v118, 0.0
  %v123 = vmax.f32 %v119, 0.0
  %v124 = vmax.f32 %v120, 0.0
  %v125 = vld [vmem:[%s3] sm:$0xff]
  %v126 = vld [vmem:[%s3 + $0x8] sm:$0xff]
  %v127 = vld [vmem:[%s3 + $0x10] sm:$0xff]
  %v128 = vld [vmem:[%s3 + $0x18] sm:$0xff]
  %v129 = vld [vmem:[%s3 + $0x20] sm:$0xff]
  %v130 = vld [vmem:[%s3 + $0x28] sm:$0xff]
  %v131 = vld [vmem:[%s3 + $0x30] sm:$0xff]
  %v132 = vld [vmem:[%s3 + $0x38] sm:$0xff]
  %v133 = vld [vmem:[%s3 + $0x40] sm:$0xff]
  %v134 = vld [vmem:[%s3 + $0x48] sm:$0xff]
  %v135 = vld [vmem:[%s3 + $0x50] sm:$0xff]
  %v136 = vld [vmem:[%s3 + $0x58] sm:$0xff]
  %v137 = vld [vmem:[%s3 + $0x60] sm:$0xff]
  %v138 = vld [vmem:[%s3 + $0x68] sm:$0xff]
  %v139 = vld [vmem:[%s3 + $0x70] sm:$0xff]
  %v140 = vld [vmem:[%s3 + $0x78] sm:$0xff]
  %v141 = vld [vmem:[%s4] sm:$0x1]
  %v143 = vperm.slane %v141, 0
  %145 = vmatpush.msra.mxu0 %v140
  %146 = vmatpush.msra.mxu0 %v139
  %147 = vmatpush.msra.mxu0 %v138
  %148 = vmatpush.msra.mxu0 %v137
  %149 = vmatpush.msra.mxu0 %v136
  %150 = vmatpush.msra.mxu0 %v135
  %151 = vmatpush.msra.mxu0 %v134
  %152 = vmatpush.msra.mxu0 %v133
  %153 = vmatpush.msra.mxu0 %v132
  %154 = vmatpush.msra.mxu0 %v131
  %155 = vmatpush.msra.mxu0 %v130
  %156 = vmatpush.msra.mxu0 %v129
  %157 = vmatpush.msra.mxu0 %v128
  %158 = vmatpush.msra.mxu0 %v127
  %159 = vmatpush.msra.mxu0 %v126
  %160 = vmatpush.msra.mxu0 %v125
  %161 = vmatmul.f32.gmra.mxu0 %v121
  %v162 = vpop.f32.mrf.mxu0
  %v163 = vadd.f32 %v143, %v162
  %164 = vmatmul.f32.gmra.mxu0 %v122
  %v165 = vpop.f32.mrf.mxu0
  %v166 = vadd.f32 %v143, %v165
  %167 = vmatmul.f32.gmra.mxu0 %v123
  %v168 = vpop.f32.mrf.mxu0
  %v169 = vadd.f32 %v143, %v168
  %170 = vmatmul.f32.gmra.mxu0 %v124
  %v171 = vpop.f32.mrf.mxu0
  %v172 = vadd.f32 %v143, %v171
  %173 = vdwg.mxu0
  %174 = vst [vmem:[%s8] sm:$0xff] %v163
  %175 = vst [vmem:[%s8 + $0x8] sm:$0xff] %v166
  %176 = vst [vmem:[%s8 + $0x10] sm:$0xff] %v169
  %177 = vst [vmem:[%s8 + $0x18] sm:$0xff] %v172
  %v178 = vld [vmem:[%s5] sm:$0xff]
  %v179 = vld [vmem:[%s5 + $0x8] sm:$0xff]
  %v180 = vld [vmem:[%s5 + $0x10] sm:$0xff]
  %v181 = vld [vmem:[%s5 + $0x18] sm:$0xff]
  %v182 = vld [vmem:[%s6] sm:$0xff]
  %v183 = vld [vmem:[%s6 + $0x8] sm:$0xff]
  %v184 = vld [vmem:[%s6 + $0x10] sm:$0xff]
  %v185 = vld [vmem:[%s6 + $0x18] sm:$0xff]
  %v186 = vld [vmem:[%s7] sm:$0x1]
  %v188 = vperm.slane %v186, 0
  %v190 = vmul.f32 %v163, 0.1
  %v191 = vmul.f32 %v166, 0.1
  %v192 = vmul.f32 %v169, 0.1
  %v193 = vmul.f32 %v172, 0.1
  %v194 = vmul.f32 %v190, %v178
  %v195 = vmul.f32 %v191, %v179
  %v196 = vmul.f32 %v192, %v180
  %v197 = vmul.f32 %v193, %v181
  %v198 = vadd.f32 %v194, %v182
  %v199 = vadd.f32 %v195, %v183
  %v200 = vadd.f32 %v196, %v184
  %v201 = vadd.f32 %v197, %v185
  %v202 = vmul.f32 %v163, 0.2
  %v203 = vmul.f32 %v166, 0.2
  %v204 = vmul.f32 %v169, 0.2
  %v205 = vmul.f32 %v172, 0.2
  %v206 = vmul.f32 %v202, 1.442695
  %v207 = vpow.pop %v206
  %v208 = vmul.f32 %v203, 1.442695
  %v209 = vpow.pop %v208
  %v210 = vmul.f32 %v204, 1.442695
  %v211 = vpow.pop %v210
  %v212 = vmul.f32 %v205, 1.442695
  %v213 = vpow.pop %v212
  %v214 = vmul.f32 %v207, %v178
  %v215 = vmul.f32 %v209, %v179
  %v216 = vmul.f32 %v211, %v180
  %v217 = vmul.f32 %v213, %v181
  %v218 = vxor.u32 %v163, 2147483648
  %v219 = vxor.u32 %v166, 2147483648
  %v220 = vxor.u32 %v169, 2147483648
  %v221 = vxor.u32 %v172, 2147483648
  %v222 = vmul.f32 %v218, 1.442695
  %v223 = vpow.pop %v222
  %v224 = vmul.f32 %v219, 1.442695
  %v225 = vpow.pop %v224
  %v226 = vmul.f32 %v220, 1.442695
  %v227 = vpow.pop %v226
  %v228 = vmul.f32 %v221, 1.442695
  %v229 = vpow.pop %v228
  %v230 = vadd.f32 %v223, 1.0
  %v231 = vadd.f32 %v225, 1.0
  %v232 = vadd.f32 %v227, 1.0
  %v233 = vadd.f32 %v229, 1.0
  %v234 = vrcp.pop %v230
  %v235 = vmul.f32 %v230, %v234
  %v236 = vsub.f32 1.0, %v235
  %v237 = vmul.f32 %v234, %v236
  %v238 = vadd.f32 %v234, %v237
  %vm239 = vweird.f32 %v230
  %vm240 = vweird.f32 %v234
  %vm241 = vmor %vm239, %vm240
  %v242 = vsel %vm241, %v234, %v238
  %v243 = vand.u32 2147483647, %v230
  %vm244 = vcmp.eq.f32.partialorder %v243, 8.507059e+37
  %v245 = vand.u32 %v230, 2147483648
  %v246 = vor.u32 1.1754944e-38, %v245
  %v247 = vsel %vm244, %v246, %v242
  %v248 = vmul.f32 1.0, %v247
  %v249 = vrcp.pop %v231
  %v250 = vmul.f32 %v231, %v249
  %v251 = vsub.f32 1.0, %v250
  %v252 = vmul.f32 %v249, %v251
  %v253 = vadd.f32 %v249, %v252
  %vm254 = vweird.f32 %v231
  %vm255 = vweird.f32 %v249
  %vm256 = vmor %vm254, %vm255
  %v257 = vsel %vm256, %v249, %v253
  %v258 = vand.u32 2147483647, %v231
  %vm259 = vcmp.eq.f32.partialorder %v258, 8.507059e+37
  %v260 = vand.u32 %v231, 2147483648
  %v261 = vor.u32 1.1754944e-38, %v260
  %v262 = vsel %vm259, %v261, %v257
  %v263 = vmul.f32 1.0, %v262
  %v264 = vrcp.pop %v232
  %v265 = vmul.f32 %v232, %v264
  %v266 = vsub.f32 1.0, %v265
  %v267 = vmul.f32 %v264, %v266
  %v268 = vadd.f32 %v264, %v267
  %vm269 = vweird.f32 %v232
  %vm270 = vweird.f32 %v264
  %vm271 = vmor %vm269, %vm270
  %v272 = vsel %vm271, %v264, %v268
  %v273 = vand.u32 2147483647, %v232
  %vm274 = vcmp.eq.f32.partialorder %v273, 8.507059e+37
  %v275 = vand.u32 %v232, 2147483648
  %v276 = vor.u32 1.1754944e-38, %v275
  %v277 = vsel %vm274, %v276, %v272
  %v278 = vmul.f32 1.0, %v277
  %v279 = vrcp.pop %v233
  %v280 = vmul.f32 %v233, %v279
  %v281 = vsub.f32 1.0, %v280
  %v282 = vmul.f32 %v279, %v281
  %v283 = vadd.f32 %v279, %v282
  %vm284 = vweird.f32 %v233
  %vm285 = vweird.f32 %v279
  %vm286 = vmor %vm284, %vm285
  %v287 = vsel %vm286, %v279, %v283
  %v288 = vand.u32 2147483647, %v233
  %vm289 = vcmp.eq.f32.partialorder %v288, 8.507059e+37
  %v290 = vand.u32 %v233, 2147483648
  %v291 = vor.u32 1.1754944e-38, %v290
  %v292 = vsel %vm289, %v291, %v287
  %v293 = vmul.f32 1.0, %v292
  %vm294 = vcmp.lt.f32.partialorder %v188, 0.5
  %vm295 = vcmp.lt.f32.partialorder %v188, 1.5
  %v296 = vsel %vm295, %v214, %v248
  %v297 = vsel %vm295, %v215, %v263
  %v298 = vsel %vm295, %v216, %v278
  %v299 = vsel %vm295, %v217, %v293
  %v300 = vsel %vm294, %v198, %v296
  %v301 = vsel %vm294, %v199, %v297
  %v302 = vsel %vm294, %v200, %v298
  %v303 = vsel %vm294, %v201, %v299
  %304 = vst [vmem:[%s9] sm:$0xff] %v300
  %305 = vst [vmem:[%s9 + $0x8] sm:$0xff] %v301
  %306 = vst [vmem:[%s9 + $0x10] sm:$0xff] %v302
  %307 = vst [vmem:[%s9 + $0x18] sm:$0xff] %v303
  // Predicated region
  $region34: #{td_net_forward.6} parent=0 // pred_check
    _
  $region35: #{td_net_forward.6} parent=0 // pred_check_branch
    %309 = sbr.rel (0) target = $region37
  $region36: #{td_net_forward.6} parent=0 // pred_region
    _
  $region37: #{td_net_forward.6} parent=0 // pred_fallthru
    _
  // Predicated region
  $region38: #{td_net_forward.6} parent=0 // pred_check
    _
  $region39: #{td_net_forward.6} parent=0 // pred_check_branch
    %311 = sbr.rel (0) target = $region41
  $region40: #{td_net_forward.6} parent=0 // pred_region
    _
  $region41: #{td_net_forward.6} parent=0 // pred_fallthru
    _
  // Predicated region
  $region42: #{td_net_forward.6} parent=0 // pred_check
    _
  $region43: #{td_net_forward.6} parent=0 // pred_check_branch
    %313 = sbr.rel (0) target = $region45
  $region44: #{td_net_forward.6} parent=0 // pred_region
    _
  $region45: #{td_net_forward.6} parent=0 // pred_fallthru
    _
  // Predicated region
  $region46: #{td_net_forward.6} parent=0 // pred_check
    _
  $region47: #{td_net_forward.6} parent=0 // pred_check_branch
    %315 = sbr.rel (0) target = $region49
  $region48: #{td_net_forward.6} parent=0 // pred_region
    _
  $region49: #{td_net_forward.6} parent=0 // pred_fallthru
    _

// kernel: td_net_forward.7
$region0: #{td_net_forward.7}
  #allocation0 [shape = 'u32[]', space=smem, size = 0x4, offset = 0x4, fixed_abs, tag = 'smem constant byte address 0x4 - core index']
  #allocation1 [shape = 'u32[72,128]{1,0:T(1,128)}', space=vmem, size = 0x9000, scoped, tag = 'internal scratch']
  %s0 = inlined_call_operand.vmem [shape: f32[8,3], index: 0, kind: input, shape index: {}]
  %s1 = inlined_call_operand.vmem [shape: f32[3,256], index: 1, kind: input, shape index: {}]
  %s2 = inlined_call_operand.vmem [shape: f32[1,256], index: 2, kind: input, shape index: {}]
  %s3 = inlined_call_operand.vmem [shape: f32[256,128], index: 3, kind: input, shape index: {}]
  %s4 = inlined_call_operand.vmem [shape: f32[1,128], index: 4, kind: input, shape index: {}]
  %s5 = inlined_call_operand.vmem [shape: f32[8,128], index: 5, kind: input, shape index: {}]
  %s6 = inlined_call_operand.vmem [shape: f32[8,128], index: 6, kind: input, shape index: {}]
  %s7 = inlined_call_operand.vmem [shape: f32[1,128], index: 7, kind: input, shape index: {}]
  %s8 = inlined_call_operand.vmem [shape: f32[8,128], index: 8, kind: output, shape index: {0}]
  %s9 = inlined_call_operand.vmem [shape: f32[8,128], index: 9, kind: output, shape index: {1}]
  %10 = xla_tuple %s8, %s9
  %s11 = sld [smem:[#allocation0]]
  $region50: #{td_net_forward.7} parent=0
    _
  %s13 = ssub.s32 1, %s11
  %s14 = scalar_select 0, %s13, %s11
  // Predicated region
  $region2: #{td_net_forward.7} parent=0 // pred_check
    _
  $region3: #{td_net_forward.7} parent=0 // pred_check_branch
    %16 = sbr.rel (0) target = $region5
  $region4: #{td_net_forward.7} parent=0 // pred_region
    _
  $region5: #{td_net_forward.7} parent=0 // pred_fallthru
    _
  // Predicated region
  $region6: #{td_net_forward.7} parent=0 // pred_check
    _
  $region7: #{td_net_forward.7} parent=0 // pred_check_branch
    %18 = sbr.rel (0) target = $region9
  $region8: #{td_net_forward.7} parent=0 // pred_region
    _
  $region9: #{td_net_forward.7} parent=0 // pred_fallthru
    _
  // Predicated region
  $region10: #{td_net_forward.7} parent=0 // pred_check
    _
  $region11: #{td_net_forward.7} parent=0 // pred_check_branch
    %20 = sbr.rel (0) target = $region13
  $region12: #{td_net_forward.7} parent=0 // pred_region
    _
  $region13: #{td_net_forward.7} parent=0 // pred_fallthru
    _
  // Predicated region
  $region14: #{td_net_forward.7} parent=0 // pred_check
    _
  $region15: #{td_net_forward.7} parent=0 // pred_check_branch
    %22 = sbr.rel (0) target = $region17
  $region16: #{td_net_forward.7} parent=0 // pred_region
    _
  $region17: #{td_net_forward.7} parent=0 // pred_fallthru
    _
  // Predicated region
  $region18: #{td_net_forward.7} parent=0 // pred_check
    _
  $region19: #{td_net_forward.7} parent=0 // pred_check_branch
    %24 = sbr.rel (0) target = $region21
  $region20: #{td_net_forward.7} parent=0 // pred_region
    _
  $region21: #{td_net_forward.7} parent=0 // pred_fallthru
    _
  // Predicated region
  $region22: #{td_net_forward.7} parent=0 // pred_check
    _
  $region23: #{td_net_forward.7} parent=0 // pred_check_branch
    %26 = sbr.rel (0) target = $region25
  $region24: #{td_net_forward.7} parent=0 // pred_region
    _
  $region25: #{td_net_forward.7} parent=0 // pred_fallthru
    _
  // Predicated region
  $region26: #{td_net_forward.7} parent=0 // pred_check
    _
  $region27: #{td_net_forward.7} parent=0 // pred_check_branch
    %28 = sbr.rel (0) target = $region29
  $region28: #{td_net_forward.7} parent=0 // pred_region
    _
  $region29: #{td_net_forward.7} parent=0 // pred_fallthru
    _
  // Predicated region
  $region30: #{td_net_forward.7} parent=0 // pred_check
    _
  $region31: #{td_net_forward.7} parent=0 // pred_check_branch
    %30 = sbr.rel (0) target = $region33
  $region32: #{td_net_forward.7} parent=0 // pred_region
    _
  $region33: #{td_net_forward.7} parent=0 // pred_fallthru
    _
  %v31 = vld [vmem:[%s0] sm:$0xff]
  %v32 = vld [vmem:[%s2] sm:$0x3]
  %v33 = vld [vmem:[%s1] ss:$4 sm:$0x3]
  %35 = vset.pattern.permute.xlu0 0
  %36 = vperm.xlu0 %35, %v31
  %v37 = vpop.permute.xlu0 %36
  %v40 = vperm.slane %v33, 0
  %v41 = vperm.slane %v33, 1
  %v44 = vmul.f32 %v37, %v40
  %v45 = vmul.f32 %v37, %v41
  %v47 = vperm.slane %v32, 0
  %v48 = vperm.slane %v32, 1
  %v51 = vadd.f32 %v47, %v44
  %v52 = vadd.f32 %v48, %v45
  %s53 = scalar_lea.vmem %s1, 1
  %v54 = vld [vmem:[%s53] ss:$4 sm:$0x3]
  %55 = vset.pattern.permute.xlu0 1
  %56 = vperm.xlu0 %55, %v31
  %v57 = vpop.permute.xlu0 %56
  %v60 = vperm.slane %v54, 0
  %v61 = vperm.slane %v54, 1
  %v64 = vmul.f32 %v57, %v60
  %v65 = vmul.f32 %v57, %v61
  %v66 = vadd.f32 %v51, %v64
  %v67 = vadd.f32 %v52, %v65
  %s68 = scalar_lea.vmem %s1, 2
  %v69 = vld [vmem:[%s68] ss:$4 sm:$0x3]
  %70 = vset.pattern.permute.xlu0 2
  %71 = vperm.xlu0 %70, %v31
  %v72 = vpop.permute.xlu0 %71
  %v75 = vperm.slane %v69, 0
  %v76 = vperm.slane %v69, 1
  %v79 = vmul.f32 %v72, %v75
  %v80 = vmul.f32 %v72, %v76
  %v81 = vadd.f32 %v66, %v79
  %v82 = vadd.f32 %v67, %v80
  %v83 = vmax.f32 %v81, 0.0
  %v84 = vmax.f32 %v82, 0.0
  %v85 = vld [vmem:[%s3] sm:$0xff]
  %v86 = vld [vmem:[%s3 + $0x8] sm:$0xff]
  %v87 = vld [vmem:[%s3 + $0x10] sm:$0xff]
  %v88 = vld [vmem:[%s3 + $0x18] sm:$0xff]
  %v89 = vld [vmem:[%s3 + $0x20] sm:$0xff]
  %v90 = vld [vmem:[%s3 + $0x28] sm:$0xff]
  %v91 = vld [vmem:[%s3 + $0x30] sm:$0xff]
  %v92 = vld [vmem:[%s3 + $0x38] sm:$0xff]
  %v93 = vld [vmem:[%s3 + $0x40] sm:$0xff]
  %v94 = vld [vmem:[%s3 + $0x48] sm:$0xff]
  %v95 = vld [vmem:[%s3 + $0x50] sm:$0xff]
  %v96 = vld [vmem:[%s3 + $0x58] sm:$0xff]
  %v97 = vld [vmem:[%s3 + $0x60] sm:$0xff]
  %v98 = vld [vmem:[%s3 + $0x68] sm:$0xff]
  %v99 = vld [vmem:[%s3 + $0x70] sm:$0xff]
  %v100 = vld [vmem:[%s3 + $0x78] sm:$0xff]
  %v101 = vld [vmem:[%s3 + $0x80] sm:$0xff]
  %v102 = vld [vmem:[%s3 + $0x88] sm:$0xff]
  %v103 = vld [vmem:[%s3 + $0x90] sm:$0xff]
  %v104 = vld [vmem:[%s3 + $0x98] sm:$0xff]
  %v105 = vld [vmem:[%s3 + $0xa0] sm:$0xff]
  %v106 = vld [vmem:[%s3 + $0xa8] sm:$0xff]
  %v107 = vld [vmem:[%s3 + $0xb0] sm:$0xff]
  %v108 = vld [vmem:[%s3 + $0xb8] sm:$0xff]
  %v109 = vld [vmem:[%s3 + $0xc0] sm:$0xff]
  %v110 = vld [vmem:[%s3 + $0xc8] sm:$0xff]
  %v111 = vld [vmem:[%s3 + $0xd0] sm:$0xff]
  %v112 = vld [vmem:[%s3 + $0xd8] sm:$0xff]
  %v113 = vld [vmem:[%s3 + $0xe0] sm:$0xff]
  %v114 = vld [vmem:[%s3 + $0xe8] sm:$0xff]
  %v115 = vld [vmem:[%s3 + $0xf0] sm:$0xff]
  %v116 = vld [vmem:[%s3 + $0xf8] sm:$0xff]
  %v117 = vld [vmem:[%s4] sm:$0x1]
  %v119 = vperm.slane %v117, 0
  %121 = vmatpush.msra.mxu0 %v100
  %122 = vmatpush.msra.mxu0 %v99
  %123 = vmatpush.msra.mxu0 %v98
  %124 = vmatpush.msra.mxu0 %v97
  %125 = vmatpush.msra.mxu0 %v96
  %126 = vmatpush.msra.mxu0 %v95
  %127 = vmatpush.msra.mxu0 %v94
  %128 = vmatpush.msra.mxu0 %v93
  %129 = vmatpush.msra.mxu0 %v92
  %130 = vmatpush.msra.mxu0 %v91
  %131 = vmatpush.msra.mxu0 %v90
  %132 = vmatpush.msra.mxu0 %v89
  %133 = vmatpush.msra.mxu0 %v88
  %134 = vmatpush.msra.mxu0 %v87
  %135 = vmatpush.msra.mxu0 %v86
  %136 = vmatpush.msra.mxu0 %v85
  %137 = vmatmul.f32.gmra.mxu0 %v83
  %v138 = vpop.f32.mrf.mxu0
  %v139 = vadd.f32 %v119, %v138
  %140 = vdwg.mxu0
  %141 = vmatpush.msra.mxu0 %v116
  %142 = vmatpush.msra.mxu0 %v115
  %143 = vmatpush.msra.mxu0 %v114
  %144 = vmatpush.msra.mxu0 %v113
  %145 = vmatpush.msra.mxu0 %v112
  %146 = vmatpush.msra.mxu0 %v111
  %147 = vmatpush.msra.mxu0 %v110
  %148 = vmatpush.msra.mxu0 %v109
  %149 = vmatpush.msra.mxu0 %v108
  %150 = vmatpush.msra.mxu0 %v107
  %151 = vmatpush.msra.mxu0 %v106
  %152 = vmatpush.msra.mxu0 %v105
  %153 = vmatpush.msra.mxu0 %v104
  %154 = vmatpush.msra.mxu0 %v103
  %155 = vmatpush.msra.mxu0 %v102
  %156 = vmatpush.msra.mxu0 %v101
  %157 = vmatmul.f32.gmra.mxu0 %v84
  %v158 = vpop.f32.mrf.mxu0
  %v159 = vadd.f32 %v139, %v158
  %160 = vdwg.mxu0
  %161 = vst [vmem:[%s8] sm:$0xff] %v159
  %v162 = vld [vmem:[%s5] sm:$0xff]
  %v163 = vld [vmem:[%s6] sm:$0xff]
  %v164 = vld [vmem:[%s7] sm:$0x1]
  %v166 = vperm.slane %v164, 0
  %v168 = vmul.f32 %v159, 0.1
  %v169 = vmul.f32 %v168, %v162
  %v170 = vadd.f32 %v169, %v163
  %v171 = vmul.f32 %v159, 0.2
  %v172 = vmul.f32 %v171, 1.442695
  %v173 = vpow.pop %v172
  %v174 = vmul.f32 %v173, %v162
  %v175 = vxor.u32 %v159, 2147483648
  %v176 = vmul.f32 %v175, 1.442695
  %v177 = vpow.pop %v176
  %v178 = vadd.f32 %v177, 1.0
  %v179 = vrcp.pop %v178
  %v180 = vmul.f32 %v178, %v179
  %v181 = vsub.f32 1.0, %v180
  %v182 = vmul.f32 %v179, %v181
  %v183 = vadd.f32 %v179, %v182
  %vm184 = vweird.f32 %v178
  %vm185 = vweird.f32 %v179
  %vm186 = vmor %vm184, %vm185
  %v187 = vsel %vm186, %v179, %v183
  %v188 = vand.u32 2147483647, %v178
  %vm189 = vcmp.eq.f32.partialorder %v188, 8.507059e+37
  %v190 = vand.u32 %v178, 2147483648
  %v191 = vor.u32 1.1754944e-38, %v190
  %v192 = vsel %vm189, %v191, %v187
  %v193 = vmul.f32 1.0, %v192
  %vm194 = vcmp.lt.f32.partialorder %v166, 0.5
  %vm195 = vcmp.lt.f32.partialorder %v166, 1.5
  %v196 = vsel %vm195, %v174, %v193
  %v197 = vsel %vm194, %v170, %v196
  %198 = vst [vmem:[%s9] sm:$0xff] %v197
  // Predicated region
  $region34: #{td_net_forward.7} parent=0 // pred_check
    _
  $region35: #{td_net_forward.7} parent=0 // pred_check_branch
    %200 = sbr.rel (0) target = $region37
  $region36: #{td_net_forward.7} parent=0 // pred_region
    _
  $region37: #{td_net_forward.7} parent=0 // pred_fallthru
    _
  // Predicated region
  $region38: #{td_net_forward.7} parent=0 // pred_check
    _
  $region39: #{td_net_forward.7} parent=0 // pred_check_branch
    %202 = sbr.rel (0) target = $region41
  $region40: #{td_net_forward.7} parent=0 // pred_region
    _
  $region41: #{td_net_forward.7} parent=0 // pred_fallthru
    _
  // Predicated region
  $region42: #{td_net_forward.7} parent=0 // pred_check
    _
  $region43: #{td_net_forward.7} parent=0 // pred_check_branch
    %204 = sbr.rel (0) target = $region45
  $region44: #{td_net_forward.7} parent=0 // pred_region
    _
  $region45: #{td_net_forward.7} parent=0 // pred_fallthru
    _
  // Predicated region
  $region46: #{td_net_forward.7} parent=0 // pred_check
    _
  $region47: #{td_net_forward.7} parent=0 // pred_check_branch
    %206 = sbr.rel (0) target = $region49
  $region48: #{td_net_forward.7} parent=0 // pred_region
    _
  $region49: #{td_net_forward.7} parent=0 // pred_fallthru
    _

</llo_original>
